<compile_context>
chip_gen: v7x
topology: tpu7x:2x2x1
jax: 0.10.0
libtpu: 0.0.40
codegen_flags: <defaults>
</compile_context>

<pallas_src>
import math
from functools import partial

import jax
import jax.numpy as jnp
from jax.experimental import pallas as pl
from jax.experimental.pallas import tpu as pltpu


def _round_up(v, m):
    return ((v + m - 1) // m) * m


def _padded_cout(W, cout):
    """Pad the head channel count so W*CP is a multiple of 128 (lane-dense)."""
    unit = (128 // W) if (W <= 128 and 128 % W == 0) else 1
    return _round_up(cout, unit)


# -----------------------------------------------------------------------------
# Kernel: both pyramid levels, sep1 -> sep2 -> combined cls/obj head
# -----------------------------------------------------------------------------
def _level_body(x_ref, dw_ref, wm_ref, b_ref, o_ref, pbuf, *, N, H, W, C, CP):
    # x_ref : (N*(H+4), (W+4)*C)   zero-halo spatially padded packed input slab
    # dw_ref: (50, W*C)            depthwise weights, BN scale folded, W-tiled
    #                              rows [0:25] = sep1, [25:50] = sep2
    # wm_ref: (W*C, 2*SEG + W*CP)  [pw1 | pw2 | head] block-diagonal matmul weights
    # b_ref : (5, max(SEG, W*CP))  rows: db1, pb1, db2, pb2, head bias (W-tiled)
    # o_ref : (N*H, W*CP)          lane-dense head output
    # pbuf  : VMEM scratch (N*(H+4), (W+4)*C) — padded slab for sep2
    WC = W * C
    HP = H + 4
    HCP = W * CP
    SEG = _round_up(WC, 128)

    # Zero the scratch once; its halo region is never written afterwards.
    pbuf[...] = jnp.zeros_like(pbuf)

    # Biases: each read exactly once (reused across the stacked batch).
    db1 = b_ref[0:1, 0:WC]
    pb1 = b_ref[1:2, 0:WC]
    db2 = b_ref[2:3, 0:WC]
    pb2 = b_ref[3:4, 0:WC]
    hb = b_ref[4:5, 0:HCP]

    def separable(src_ref, row0, db, pw_col, pb):
        # Depthwise 5x5 (BN scale folded) + bias + ReLU, then pointwise 1x1 + bias.
        # src_ref holds all N batches stacked with zero halos.
        accs = [jnp.broadcast_to(db, (H, WC)) for _ in range(N)]     # bias-init
        for kw in range(5):
            # Lane shift hoisted out of the kh/batch loops: ONE lane-offset
            # load per kw covers every (kh, n) tap.
            shifted = src_ref[:, kw * C:kw * C + WC]                 # (N*HP, WC)
            for kh in range(5):
                r = row0 + kh * 5 + kw
                contrib = shifted * dw_ref[r:r + 1, :]               # (N*HP, WC)
                for n in range(N):
                    accs[n] = accs[n] + contrib[n * HP + kh:n * HP + kh + H, :]
        # Batch stacked into the matmul M dimension -> ONE MXU matmul.
        act = jnp.concatenate([jnp.maximum(a, 0.0) for a in accs], axis=0)
        pw = wm_ref[:, pw_col:pw_col + WC]
        # no_out_act=True -> no activation after the pointwise conv.
        return jnp.dot(act, pw, preferred_element_type=jnp.float32) + pb

    # sep_conv_1: taps come straight from the pre-padded input slab.
    y1 = separable(x_ref, 0, db1, 0, pb1)                            # (N*H, WC)

    # Re-pad into the scratch for sep_conv_2 (interior only; halo stays zero).
    for n in range(N):
        pbuf[n * HP + 2:n * HP + 2 + H, 2 * C:2 * C + WC] = y1[n * H:(n + 1) * H, :]
    y2 = separable(pbuf, 25, db2, SEG, pb2)                          # (N*H, WC)

    # Combined cls|obj 1x1 head: one lane-dense MXU matmul, full-block store.
    hw = wm_ref[:, 2 * SEG:2 * SEG + HCP]
    o_ref[...] = jnp.dot(y2, hw, preferred_element_type=jnp.float32) + hb


def _two_level_kernel(x0_ref, dw0_ref, wm0_ref, b0_ref,
                      x1_ref, dw1_ref, wm1_ref, b1_ref,
                      o0_ref, o1_ref, pbuf0, pbuf1, *, N, meta0, meta1):
    _level_body(x0_ref, dw0_ref, wm0_ref, b0_ref, o0_ref, pbuf0, N=N, **meta0)
    _level_body(x1_ref, dw1_ref, wm1_ref, b1_ref, o1_ref, pbuf1, N=N, **meta1)


def _full_spec(shape):
    zeros = (0,) * len(shape)
    return pl.BlockSpec(shape, lambda i, _z=zeros: _z)


# -----------------------------------------------------------------------------
# Forward wrapper (jit-ed; one pallas_call for both levels)
# -----------------------------------------------------------------------------
def _pack_and_pad(x_nchw):
    """NCHW -> zero-halo padded packed slab (N*(H+4), (W+4)*C), fused by XLA."""
    N, C, H, W = x_nchw.shape
    feat = jnp.transpose(x_nchw, (0, 2, 3, 1)).astype(jnp.float32)
    feat = jnp.pad(feat, ((0, 0), (2, 2), (2, 2), (0, 0)))
    return feat.reshape(N * (H + 4), (W + 4) * C)


def _fused_forward(x0, x1, ops0, ops1, num_anchors, num_classes):
    A, K = num_anchors, num_classes
    cout = A * K + A
    N, C, H0, W0 = x0.shape
    _, _, H1, W1 = x1.shape
    CP0 = _padded_cout(W0, cout)
    CP1 = _padded_cout(W1, cout)

    packed0 = _pack_and_pad(x0)
    packed1 = _pack_and_pad(x1)
    args = (packed0, ops0["dw"], ops0["wm"], ops0["b"],
            packed1, ops1["dw"], ops1["wm"], ops1["b"])
    out_shapes = (jax.ShapeDtypeStruct((N * H0, W0 * CP0), jnp.float32),
                  jax.ShapeDtypeStruct((N * H1, W1 * CP1), jnp.float32))

    out0, out1 = pl.pallas_call(
        partial(_two_level_kernel, N=N,
                meta0=dict(H=H0, W=W0, C=C, CP=CP0),
                meta1=dict(H=H1, W=W1, C=C, CP=CP1)),
        out_shape=out_shapes,
        grid=(1,),
        in_specs=[_full_spec(a.shape) for a in args],
        out_specs=[_full_spec(s.shape) for s in out_shapes],
        scratch_shapes=[pltpu.VMEM((N * (H0 + 4), (W0 + 4) * C), jnp.float32),
                        pltpu.VMEM((N * (H1 + 4), (W1 + 4) * C), jnp.float32)],
        compiler_params=pltpu.CompilerParams(dimension_semantics=("arbitrary",)),
    )(*args)

    def unpack(out, H, W, CP):
        o = out.reshape(N, H, W, CP)
        cls = o[..., :A * K].reshape(N, H * W * A, K)
        obj = o[..., A * K:A * K + A].reshape(N, H * W * A, 1)
        return cls, obj

    cls0, obj0 = unpack(out0, H0, W0, CP0)
    cls1, obj1 = unpack(out1, H1, W1, CP1)
    return [cls0, cls1], [obj0, obj1]


_jitted_forward = jax.jit(_fused_forward, static_argnums=(4, 5))


def yolo_fastest_cls_head_pallas(xs, prepared, num_anchors, num_classes):
    return _jitted_forward(xs[0], xs[1], prepared[0], prepared[1],
                           num_anchors, num_classes)


# -----------------------------------------------------------------------------
# One-time operand packing (parameter-build time, NOT per forward call)
# -----------------------------------------------------------------------------
def prepare_level_operands(sep1, sep2, head_w, head_b, W, C):
    WC = W * C
    f32 = jnp.float32
    eye_w = jnp.eye(W, dtype=f32)

    def sep_ops(s):
        dww = s["dww"] * s["dws"][None, None, :]                 # fold dw BN scale
        dw_tiled = jnp.tile(dww, (1, 1, W)).reshape(25, WC)
        db = jnp.tile(s["dwb"], W)
        pww = s["pww"] * s["pws"][None, :]                       # fold pw BN scale
        pw_bd = jnp.kron(eye_w, pww)                             # (W*C, W*C)
        pb = jnp.tile(s["pwb"], W)
        return dw_tiled, db, pw_bd, pb

    dw1, db1, pw1, pb1 = sep_ops(sep1)
    dw2, db2, pw2, pb2 = sep_ops(sep2)

    cout = head_w.shape[1]
    CP = _padded_cout(W, cout)
    HCP = W * CP
    hw_bd = jnp.kron(eye_w, jnp.pad(head_w, ((0, 0), (0, CP - cout))))
    hb = jnp.tile(jnp.pad(head_b, (0, CP - cout)), W)

    SEG = _round_up(WC, 128)
    dw = jnp.concatenate([dw1, dw2], axis=0)                     # (50, WC)
    wm = jnp.zeros((WC, 2 * SEG + HCP), f32)                     # [pw1|pw2|head]
    wm = wm.at[:, 0:WC].set(pw1)
    wm = wm.at[:, SEG:SEG + WC].set(pw2)
    wm = wm.at[:, 2 * SEG:2 * SEG + HCP].set(hw_bd)
    BW = max(SEG, HCP)
    b = jnp.zeros((5, BW), f32)
    b = b.at[0, 0:WC].set(db1)
    b = b.at[1, 0:WC].set(pb1)
    b = b.at[2, 0:WC].set(db2)
    b = b.at[3, 0:WC].set(pb2)
    b = b.at[4, 0:HCP].set(hb)
    return dict(dw=dw, wm=wm, b=b)


# -----------------------------------------------------------------------------
# Module parameters (deterministic)
# -----------------------------------------------------------------------------
def make_params(key, in_channels, num_anchors, num_classes, prior_prob=0.01):
    C, A, K = in_channels, num_anchors, num_classes
    eps = 1e-5
    # BN default init (gamma=1, beta=0, mean=0, var=1), eval mode.
    bn_scale = jnp.full((C,), 1.0 / math.sqrt(1.0 + eps), jnp.float32)
    bn_bias = jnp.zeros((C,), jnp.float32)

    keys = jax.random.split(key, 16)
    kit = iter(keys)

    def sep_params():
        dw_torch = jax.random.normal(next(kit), (C, 1, 5, 5), jnp.float32) * 0.1
        pw_torch = jax.random.normal(next(kit), (C, C, 1, 1), jnp.float32) * 0.1
        return dict(
            torch=(dw_torch, pw_torch),
            dww=jnp.transpose(dw_torch[:, 0], (1, 2, 0)),        # (5,5,C)
            dws=bn_scale, dwb=bn_bias,
            pww=jnp.transpose(pw_torch[:, :, 0, 0], (1, 0)),     # (Cin, Cout)
            pws=bn_scale, pwb=bn_bias,
        )

    # layer_1 and layer_2, each two SeparableConvLayers
    layers = [[sep_params(), sep_params()], [sep_params(), sep_params()]]

    cls_w_torch = jax.random.normal(next(kit), (A * K, C, 1, 1), jnp.float32) * 0.01
    cls_b = jnp.full((A * K,), -math.log((1.0 - prior_prob) / prior_prob), jnp.float32)
    obj_w_torch = jax.random.normal(next(kit), (A, C, 1, 1), jnp.float32) * 0.05
    obj_b = jax.random.normal(next(kit), (A,), jnp.float32) * 0.05

    # Combined 1x1 head weight, NHWC matmul form: (C, A*K + A), columns [cls|obj]
    head_w = jnp.concatenate(
        [jnp.transpose(cls_w_torch[:, :, 0, 0], (1, 0)),
         jnp.transpose(obj_w_torch[:, :, 0, 0], (1, 0))], axis=1)
    head_b = jnp.concatenate([cls_b, obj_b])

    return dict(layers=layers,
                cls_torch=(cls_w_torch, cls_b),
                obj_torch=(obj_w_torch, obj_b),
                head_w=head_w, head_b=head_b)


# -----------------------------------------------------------------------------
# Pure-JAX reference (NCHW, mirrors the PyTorch module exactly)
# -----------------------------------------------------------------------------
def _ref_separable(x, dw_torch, pw_torch):
    C = x.shape[1]
    eps = 1e-5
    scale = 1.0 / math.sqrt(1.0 + eps)
    y = jax.lax.conv_general_dilated(
        x, dw_torch, (1, 1), ((2, 2), (2, 2)),
        feature_group_count=C, dimension_numbers=("NCHW", "OIHW", "NCHW"),
        precision=jax.lax.Precision.HIGHEST)
    y = jnp.maximum(y * scale, 0.0)
    y = jax.lax.conv_general_dilated(
        y, pw_torch, (1, 1), "VALID", dimension_numbers=("NCHW", "OIHW", "NCHW"),
        precision=jax.lax.Precision.HIGHEST)
    return y * scale


def yolo_fastest_cls_head_ref(xs_nchw, params, num_anchors, num_classes):
    A, K = num_anchors, num_classes
    cls_w, cls_b = params["cls_torch"]
    obj_w, obj_b = params["obj_torch"]
    all_cls, all_obj = [], []
    for idx, x in enumerate(xs_nchw):
        feat = x.astype(jnp.float32)
        for sep in params["layers"][idx]:
            feat = _ref_separable(feat, *sep["torch"])
        cls = jax.lax.conv_general_dilated(
            feat, cls_w, (1, 1), "VALID",
            dimension_numbers=("NCHW", "OIHW", "NCHW"),
            precision=jax.lax.Precision.HIGHEST) + cls_b[None, :, None, None]
        obj = jax.lax.conv_general_dilated(
            feat, obj_w, (1, 1), "VALID",
            dimension_numbers=("NCHW", "OIHW", "NCHW"),
            precision=jax.lax.Precision.HIGHEST) + obj_b[None, :, None, None]
        N, _, H, W = cls.shape
        cls = cls.reshape(N, A, K, H, W).transpose(0, 3, 4, 1, 2).reshape(N, -1, K)
        obj = obj.reshape(N, A, 1, H, W).transpose(0, 3, 4, 1, 2).reshape(N, -1, 1)
        all_cls.append(cls)
        all_obj.append(obj)
    return all_cls, all_obj


# -----------------------------------------------------------------------------
if __name__ == "__main__":
    in_channels, num_anchors, num_classes = 8, 3, 4
    key = jax.random.PRNGKey(0)
    kp, k0, k1 = jax.random.split(key, 3)

    # Two pyramid levels (PyTorch input is a list of NCHW feature maps).
    x0 = jax.random.normal(k0, (2, in_channels, 16, 16), jnp.float32)
    x1 = jax.random.normal(k1, (2, in_channels, 8, 8), jnp.float32)
    xs = [x0, x1]

    params = make_params(kp, in_channels, num_anchors, num_classes)

    # One-time operand packing (per review: at parameter-build time, not per call).
    prepared = [
        prepare_level_operands(params["layers"][i][0], params["layers"][i][1],
                               params["head_w"], params["head_b"],
                               W=xs[i].shape[3], C=in_channels)
        for i in range(2)
    ]

    cls_out, obj_out = yolo_fastest_cls_head_pallas(xs, prepared,
                                                    num_anchors, num_classes)
    cls_ref, obj_ref = yolo_fastest_cls_head_ref(xs, params,
                                                 num_anchors, num_classes)

    for a, b in zip(cls_out + obj_out, cls_ref + obj_ref):
        jax.block_until_ready(a)
        assert a.shape == b.shape, (a.shape, b.shape)
        err = float(jnp.max(jnp.abs(a - b)))
        assert jnp.allclose(a, b, atol=1e-4, rtol=1e-4), err

    # shapes: cls[i] = (N, H_i*W_i*num_anchors, K), obj[i] = (N, H_i*W_i*num_anchors, 1)
    print("KERNEL_OK")
</pallas_src>

<mosaic_0001>
module attributes {stable_mosaic.version = 11 : i64} {
  func.func @_two_level_kernel(%arg0: i32, %arg1: memref<40x160xf32, #tpu.memory_space<vmem>>, %arg2: memref<50x128xf32, #tpu.memory_space<vmem>>, %arg3: memref<128x512xf32, #tpu.memory_space<vmem>>, %arg4: memref<5x256xf32, #tpu.memory_space<vmem>>, %arg5: memref<24x96xf32, #tpu.memory_space<vmem>>, %arg6: memref<50x64xf32, #tpu.memory_space<vmem>>, %arg7: memref<64x384xf32, #tpu.memory_space<vmem>>, %arg8: memref<5x128xf32, #tpu.memory_space<vmem>>, %arg9: memref<32x256xf32, #tpu.memory_space<vmem>>, %arg10: memref<16x128xf32, #tpu.memory_space<vmem>>, %arg11: memref<40x160xf32, #tpu.memory_space<vmem>>, %arg12: memref<24x96xf32, #tpu.memory_space<vmem>>) attributes {dimension_semantics = [#tpu.dimension_semantics<arbitrary>], iteration_bounds = array<i64: 1>, scalar_prefetch = 0 : i64, scratch_operands = 2 : i64, tpu.core_type = #tpu.core_type<tc>, window_params = [{pipeline_mode = #tpu.pipeline_mode<synchronous>, transform_indices = @transform_0, window_bounds = array<i64: 40, 160>}, {pipeline_mode = #tpu.pipeline_mode<synchronous>, transform_indices = @transform_1, window_bounds = array<i64: 50, 128>}, {pipeline_mode = #tpu.pipeline_mode<synchronous>, transform_indices = @transform_2, window_bounds = array<i64: 128, 512>}, {pipeline_mode = #tpu.pipeline_mode<synchronous>, transform_indices = @transform_3, window_bounds = array<i64: 5, 256>}, {pipeline_mode = #tpu.pipeline_mode<synchronous>, transform_indices = @transform_4, window_bounds = array<i64: 24, 96>}, {pipeline_mode = #tpu.pipeline_mode<synchronous>, transform_indices = @transform_5, window_bounds = array<i64: 50, 64>}, {pipeline_mode = #tpu.pipeline_mode<synchronous>, transform_indices = @transform_6, window_bounds = array<i64: 64, 384>}, {pipeline_mode = #tpu.pipeline_mode<synchronous>, transform_indices = @transform_7, window_bounds = array<i64: 5, 128>}, {pipeline_mode = #tpu.pipeline_mode<synchronous>, transform_indices = @transform_8, window_bounds = array<i64: 32, 256>}, {pipeline_mode = #tpu.pipeline_mode<synchronous>, transform_indices = @transform_9, window_bounds = array<i64: 16, 128>}]} {
    %cst = arith.constant 0.000000e+00 : f32
    %0 = vector.broadcast %cst : f32 to vector<40x160xf32>
    %c0 = arith.constant 0 : index
    %c0_0 = arith.constant 0 : index
    %1 = vector.load %arg11[%c0, %c0_0] : memref<40x160xf32, #tpu.memory_space<vmem>>, vector<40x160xf32>
    tpu.vector_store %arg11[%c0, %c0_0], %0 {strides = array<i32>} : memref<40x160xf32, #tpu.memory_space<vmem>>, vector<40x160xf32>,
    %c0_1 = arith.constant 0 : index
    %c0_2 = arith.constant 0 : index
    %2 = vector.load %arg4[%c0_1, %c0_2] : memref<5x256xf32, #tpu.memory_space<vmem>>, vector<1x128xf32>
    %c1 = arith.constant 1 : index
    %c0_3 = arith.constant 0 : index
    %3 = vector.load %arg4[%c1, %c0_3] : memref<5x256xf32, #tpu.memory_space<vmem>>, vector<1x128xf32>
    %c2 = arith.constant 2 : index
    %c0_4 = arith.constant 0 : index
    %4 = vector.load %arg4[%c2, %c0_4] : memref<5x256xf32, #tpu.memory_space<vmem>>, vector<1x128xf32>
    %c3 = arith.constant 3 : index
    %c0_5 = arith.constant 0 : index
    %5 = vector.load %arg4[%c3, %c0_5] : memref<5x256xf32, #tpu.memory_space<vmem>>, vector<1x128xf32>
    %c4 = arith.constant 4 : index
    %c0_6 = arith.constant 0 : index
    %6 = vector.load %arg4[%c4, %c0_6] : memref<5x256xf32, #tpu.memory_space<vmem>>, vector<1x256xf32>
    %7 = vector.shape_cast %2 : vector<1x128xf32> to vector<1x128xf32>
    %8 = vector.broadcast %7 : vector<1x128xf32> to vector<16x128xf32>
    %9 = vector.shape_cast %2 : vector<1x128xf32> to vector<1x128xf32>
    %10 = vector.broadcast %9 : vector<1x128xf32> to vector<16x128xf32>
    %c0_7 = arith.constant 0 : index
    %c0_8 = arith.constant 0 : index
    %11 = vector.load %arg1[%c0_7, %c0_8] : memref<40x160xf32, #tpu.memory_space<vmem>>, vector<40x128xf32>
    %c0_9 = arith.constant 0 : index
    %c0_10 = arith.constant 0 : index
    %12 = vector.load %arg2[%c0_9, %c0_10] : memref<50x128xf32, #tpu.memory_space<vmem>>, vector<1x128xf32>
    %13 = vector.broadcast %12 : vector<1x128xf32> to vector<40x128xf32>
    %14 = arith.mulf %11, %13 : vector<40x128xf32>
    %15 = vector.extract_strided_slice %14 {offsets = [0, 0], sizes = [16, 128], strides = [1, 1]} : vector<40x128xf32> to vector<16x128xf32>
    %16 = arith.addf %8, %15 : vector<16x128xf32>
    %17 = vector.extract_strided_slice %14 {offsets = [20, 0], sizes = [16, 128], strides = [1, 1]} : vector<40x128xf32> to vector<16x128xf32>
    %18 = arith.addf %10, %17 : vector<16x128xf32>
    %c5 = arith.constant 5 : index
    %c0_11 = arith.constant 0 : index
    %19 = vector.load %arg2[%c5, %c0_11] : memref<50x128xf32, #tpu.memory_space<vmem>>, vector<1x128xf32>
    %20 = vector.broadcast %19 : vector<1x128xf32> to vector<40x128xf32>
    %21 = arith.mulf %11, %20 : vector<40x128xf32>
    %22 = vector.extract_strided_slice %21 {offsets = [1, 0], sizes = [16, 128], strides = [1, 1]} : vector<40x128xf32> to vector<16x128xf32>
    %23 = arith.addf %16, %22 : vector<16x128xf32>
    %24 = vector.extract_strided_slice %21 {offsets = [21, 0], sizes = [16, 128], strides = [1, 1]} : vector<40x128xf32> to vector<16x128xf32>
    %25 = arith.addf %18, %24 : vector<16x128xf32>
    %c10 = arith.constant 10 : index
    %c0_12 = arith.constant 0 : index
    %26 = vector.load %arg2[%c10, %c0_12] : memref<50x128xf32, #tpu.memory_space<vmem>>, vector<1x128xf32>
    %27 = vector.broadcast %26 : vector<1x128xf32> to vector<40x128xf32>
    %28 = arith.mulf %11, %27 : vector<40x128xf32>
    %29 = vector.extract_strided_slice %28 {offsets = [2, 0], sizes = [16, 128], strides = [1, 1]} : vector<40x128xf32> to vector<16x128xf32>
    %30 = arith.addf %23, %29 : vector<16x128xf32>
    %31 = vector.extract_strided_slice %28 {offsets = [22, 0], sizes = [16, 128], strides = [1, 1]} : vector<40x128xf32> to vector<16x128xf32>
    %32 = arith.addf %25, %31 : vector<16x128xf32>
    %c15 = arith.constant 15 : index
    %c0_13 = arith.constant 0 : index
    %33 = vector.load %arg2[%c15, %c0_13] : memref<50x128xf32, #tpu.memory_space<vmem>>, vector<1x128xf32>
    %34 = vector.broadcast %33 : vector<1x128xf32> to vector<40x128xf32>
    %35 = arith.mulf %11, %34 : vector<40x128xf32>
    %36 = vector.extract_strided_slice %35 {offsets = [3, 0], sizes = [16, 128], strides = [1, 1]} : vector<40x128xf32> to vector<16x128xf32>
    %37 = arith.addf %30, %36 : vector<16x128xf32>
    %38 = vector.extract_strided_slice %35 {offsets = [23, 0], sizes = [16, 128], strides = [1, 1]} : vector<40x128xf32> to vector<16x128xf32>
    %39 = arith.addf %32, %38 : vector<16x128xf32>
    %c20 = arith.constant 20 : index
    %c0_14 = arith.constant 0 : index
    %40 = vector.load %arg2[%c20, %c0_14] : memref<50x128xf32, #tpu.memory_space<vmem>>, vector<1x128xf32>
    %41 = vector.broadcast %40 : vector<1x128xf32> to vector<40x128xf32>
    %42 = arith.mulf %11, %41 : vector<40x128xf32>
    %43 = vector.extract_strided_slice %42 {offsets = [4, 0], sizes = [16, 128], strides = [1, 1]} : vector<40x128xf32> to vector<16x128xf32>
    %44 = arith.addf %37, %43 : vector<16x128xf32>
    %45 = vector.extract_strided_slice %42 {offsets = [24, 0], sizes = [16, 128], strides = [1, 1]} : vector<40x128xf32> to vector<16x128xf32>
    %46 = arith.addf %39, %45 : vector<16x128xf32>
    %c0_15 = arith.constant 0 : index
    %c8 = arith.constant 8 : index
    %47 = vector.load %arg1[%c0_15, %c8] : memref<40x160xf32, #tpu.memory_space<vmem>>, vector<40x128xf32>
    %c1_16 = arith.constant 1 : index
    %c0_17 = arith.constant 0 : index
    %48 = vector.load %arg2[%c1_16, %c0_17] : memref<50x128xf32, #tpu.memory_space<vmem>>, vector<1x128xf32>
    %49 = vector.broadcast %48 : vector<1x128xf32> to vector<40x128xf32>
    %50 = arith.mulf %47, %49 : vector<40x128xf32>
    %51 = vector.extract_strided_slice %50 {offsets = [0, 0], sizes = [16, 128], strides = [1, 1]} : vector<40x128xf32> to vector<16x128xf32>
    %52 = arith.addf %44, %51 : vector<16x128xf32>
    %53 = vector.extract_strided_slice %50 {offsets = [20, 0], sizes = [16, 128], strides = [1, 1]} : vector<40x128xf32> to vector<16x128xf32>
    %54 = arith.addf %46, %53 : vector<16x128xf32>
    %c6 = arith.constant 6 : index
    %c0_18 = arith.constant 0 : index
    %55 = vector.load %arg2[%c6, %c0_18] : memref<50x128xf32, #tpu.memory_space<vmem>>, vector<1x128xf32>
    %56 = vector.broadcast %55 : vector<1x128xf32> to vector<40x128xf32>
    %57 = arith.mulf %47, %56 : vector<40x128xf32>
    %58 = vector.extract_strided_slice %57 {offsets = [1, 0], sizes = [16, 128], strides = [1, 1]} : vector<40x128xf32> to vector<16x128xf32>
    %59 = arith.addf %52, %58 : vector<16x128xf32>
    %60 = vector.extract_strided_slice %57 {offsets = [21, 0], sizes = [16, 128], strides = [1, 1]} : vector<40x128xf32> to vector<16x128xf32>
    %61 = arith.addf %54, %60 : vector<16x128xf32>
    %c11 = arith.constant 11 : index
    %c0_19 = arith.constant 0 : index
    %62 = vector.load %arg2[%c11, %c0_19] : memref<50x128xf32, #tpu.memory_space<vmem>>, vector<1x128xf32>
    %63 = vector.broadcast %62 : vector<1x128xf32> to vector<40x128xf32>
    %64 = arith.mulf %47, %63 : vector<40x128xf32>
    %65 = vector.extract_strided_slice %64 {offsets = [2, 0], sizes = [16, 128], strides = [1, 1]} : vector<40x128xf32> to vector<16x128xf32>
    %66 = arith.addf %59, %65 : vector<16x128xf32>
    %67 = vector.extract_strided_slice %64 {offsets = [22, 0], sizes = [16, 128], strides = [1, 1]} : vector<40x128xf32> to vector<16x128xf32>
    %68 = arith.addf %61, %67 : vector<16x128xf32>
    %c16 = arith.constant 16 : index
    %c0_20 = arith.constant 0 : index
    %69 = vector.load %arg2[%c16, %c0_20] : memref<50x128xf32, #tpu.memory_space<vmem>>, vector<1x128xf32>
    %70 = vector.broadcast %69 : vector<1x128xf32> to vector<40x128xf32>
    %71 = arith.mulf %47, %70 : vector<40x128xf32>
    %72 = vector.extract_strided_slice %71 {offsets = [3, 0], sizes = [16, 128], strides = [1, 1]} : vector<40x128xf32> to vector<16x128xf32>
    %73 = arith.addf %66, %72 : vector<16x128xf32>
    %74 = vector.extract_strided_slice %71 {offsets = [23, 0], sizes = [16, 128], strides = [1, 1]} : vector<40x128xf32> to vector<16x128xf32>
    %75 = arith.addf %68, %74 : vector<16x128xf32>
    %c21 = arith.constant 21 : index
    %c0_21 = arith.constant 0 : index
    %76 = vector.load %arg2[%c21, %c0_21] : memref<50x128xf32, #tpu.memory_space<vmem>>, vector<1x128xf32>
    %77 = vector.broadcast %76 : vector<1x128xf32> to vector<40x128xf32>
    %78 = arith.mulf %47, %77 : vector<40x128xf32>
    %79 = vector.extract_strided_slice %78 {offsets = [4, 0], sizes = [16, 128], strides = [1, 1]} : vector<40x128xf32> to vector<16x128xf32>
    %80 = arith.addf %73, %79 : vector<16x128xf32>
    %81 = vector.extract_strided_slice %78 {offsets = [24, 0], sizes = [16, 128], strides = [1, 1]} : vector<40x128xf32> to vector<16x128xf32>
    %82 = arith.addf %75, %81 : vector<16x128xf32>
    %c0_22 = arith.constant 0 : index
    %c16_23 = arith.constant 16 : index
    %83 = vector.load %arg1[%c0_22, %c16_23] : memref<40x160xf32, #tpu.memory_space<vmem>>, vector<40x128xf32>
    %c2_24 = arith.constant 2 : index
    %c0_25 = arith.constant 0 : index
    %84 = vector.load %arg2[%c2_24, %c0_25] : memref<50x128xf32, #tpu.memory_space<vmem>>, vector<1x128xf32>
    %85 = vector.broadcast %84 : vector<1x128xf32> to vector<40x128xf32>
    %86 = arith.mulf %83, %85 : vector<40x128xf32>
    %87 = vector.extract_strided_slice %86 {offsets = [0, 0], sizes = [16, 128], strides = [1, 1]} : vector<40x128xf32> to vector<16x128xf32>
    %88 = arith.addf %80, %87 : vector<16x128xf32>
    %89 = vector.extract_strided_slice %86 {offsets = [20, 0], sizes = [16, 128], strides = [1, 1]} : vector<40x128xf32> to vector<16x128xf32>
    %90 = arith.addf %82, %89 : vector<16x128xf32>
    %c7 = arith.constant 7 : index
    %c0_26 = arith.constant 0 : index
    %91 = vector.load %arg2[%c7, %c0_26] : memref<50x128xf32, #tpu.memory_space<vmem>>, vector<1x128xf32>
    %92 = vector.broadcast %91 : vector<1x128xf32> to vector<40x128xf32>
    %93 = arith.mulf %83, %92 : vector<40x128xf32>
    %94 = vector.extract_strided_slice %93 {offsets = [1, 0], sizes = [16, 128], strides = [1, 1]} : vector<40x128xf32> to vector<16x128xf32>
    %95 = arith.addf %88, %94 : vector<16x128xf32>
    %96 = vector.extract_strided_slice %93 {offsets = [21, 0], sizes = [16, 128], strides = [1, 1]} : vector<40x128xf32> to vector<16x128xf32>
    %97 = arith.addf %90, %96 : vector<16x128xf32>
    %c12 = arith.constant 12 : index
    %c0_27 = arith.constant 0 : index
    %98 = vector.load %arg2[%c12, %c0_27] : memref<50x128xf32, #tpu.memory_space<vmem>>, vector<1x128xf32>
    %99 = vector.broadcast %98 : vector<1x128xf32> to vector<40x128xf32>
    %100 = arith.mulf %83, %99 : vector<40x128xf32>
    %101 = vector.extract_strided_slice %100 {offsets = [2, 0], sizes = [16, 128], strides = [1, 1]} : vector<40x128xf32> to vector<16x128xf32>
    %102 = arith.addf %95, %101 : vector<16x128xf32>
    %103 = vector.extract_strided_slice %100 {offsets = [22, 0], sizes = [16, 128], strides = [1, 1]} : vector<40x128xf32> to vector<16x128xf32>
    %104 = arith.addf %97, %103 : vector<16x128xf32>
    %c17 = arith.constant 17 : index
    %c0_28 = arith.constant 0 : index
    %105 = vector.load %arg2[%c17, %c0_28] : memref<50x128xf32, #tpu.memory_space<vmem>>, vector<1x128xf32>
    %106 = vector.broadcast %105 : vector<1x128xf32> to vector<40x128xf32>
    %107 = arith.mulf %83, %106 : vector<40x128xf32>
    %108 = vector.extract_strided_slice %107 {offsets = [3, 0], sizes = [16, 128], strides = [1, 1]} : vector<40x128xf32> to vector<16x128xf32>
    %109 = arith.addf %102, %108 : vector<16x128xf32>
    %110 = vector.extract_strided_slice %107 {offsets = [23, 0], sizes = [16, 128], strides = [1, 1]} : vector<40x128xf32> to vector<16x128xf32>
    %111 = arith.addf %104, %110 : vector<16x128xf32>
    %c22 = arith.constant 22 : index
    %c0_29 = arith.constant 0 : index
    %112 = vector.load %arg2[%c22, %c0_29] : memref<50x128xf32, #tpu.memory_space<vmem>>, vector<1x128xf32>
    %113 = vector.broadcast %112 : vector<1x128xf32> to vector<40x128xf32>
    %114 = arith.mulf %83, %113 : vector<40x128xf32>
    %115 = vector.extract_strided_slice %114 {offsets = [4, 0], sizes = [16, 128], strides = [1, 1]} : vector<40x128xf32> to vector<16x128xf32>
    %116 = arith.addf %109, %115 : vector<16x128xf32>
    %117 = vector.extract_strided_slice %114 {offsets = [24, 0], sizes = [16, 128], strides = [1, 1]} : vector<40x128xf32> to vector<16x128xf32>
    %118 = arith.addf %111, %117 : vector<16x128xf32>
    %c0_30 = arith.constant 0 : index
    %c24 = arith.constant 24 : index
    %119 = vector.load %arg1[%c0_30, %c24] : memref<40x160xf32, #tpu.memory_space<vmem>>, vector<40x128xf32>
    %c3_31 = arith.constant 3 : index
    %c0_32 = arith.constant 0 : index
    %120 = vector.load %arg2[%c3_31, %c0_32] : memref<50x128xf32, #tpu.memory_space<vmem>>, vector<1x128xf32>
    %121 = vector.broadcast %120 : vector<1x128xf32> to vector<40x128xf32>
    %122 = arith.mulf %119, %121 : vector<40x128xf32>
    %123 = vector.extract_strided_slice %122 {offsets = [0, 0], sizes = [16, 128], strides = [1, 1]} : vector<40x128xf32> to vector<16x128xf32>
    %124 = arith.addf %116, %123 : vector<16x128xf32>
    %125 = vector.extract_strided_slice %122 {offsets = [20, 0], sizes = [16, 128], strides = [1, 1]} : vector<40x128xf32> to vector<16x128xf32>
    %126 = arith.addf %118, %125 : vector<16x128xf32>
    %c8_33 = arith.constant 8 : index
    %c0_34 = arith.constant 0 : index
    %127 = vector.load %arg2[%c8_33, %c0_34] : memref<50x128xf32, #tpu.memory_space<vmem>>, vector<1x128xf32>
    %128 = vector.broadcast %127 : vector<1x128xf32> to vector<40x128xf32>
    %129 = arith.mulf %119, %128 : vector<40x128xf32>
    %130 = vector.extract_strided_slice %129 {offsets = [1, 0], sizes = [16, 128], strides = [1, 1]} : vector<40x128xf32> to vector<16x128xf32>
    %131 = arith.addf %124, %130 : vector<16x128xf32>
    %132 = vector.extract_strided_slice %129 {offsets = [21, 0], sizes = [16, 128], strides = [1, 1]} : vector<40x128xf32> to vector<16x128xf32>
    %133 = arith.addf %126, %132 : vector<16x128xf32>
    %c13 = arith.constant 13 : index
    %c0_35 = arith.constant 0 : index
    %134 = vector.load %arg2[%c13, %c0_35] : memref<50x128xf32, #tpu.memory_space<vmem>>, vector<1x128xf32>
    %135 = vector.broadcast %134 : vector<1x128xf32> to vector<40x128xf32>
    %136 = arith.mulf %119, %135 : vector<40x128xf32>
    %137 = vector.extract_strided_slice %136 {offsets = [2, 0], sizes = [16, 128], strides = [1, 1]} : vector<40x128xf32> to vector<16x128xf32>
    %138 = arith.addf %131, %137 : vector<16x128xf32>
    %139 = vector.extract_strided_slice %136 {offsets = [22, 0], sizes = [16, 128], strides = [1, 1]} : vector<40x128xf32> to vector<16x128xf32>
    %140 = arith.addf %133, %139 : vector<16x128xf32>
    %c18 = arith.constant 18 : index
    %c0_36 = arith.constant 0 : index
    %141 = vector.load %arg2[%c18, %c0_36] : memref<50x128xf32, #tpu.memory_space<vmem>>, vector<1x128xf32>
    %142 = vector.broadcast %141 : vector<1x128xf32> to vector<40x128xf32>
    %143 = arith.mulf %119, %142 : vector<40x128xf32>
    %144 = vector.extract_strided_slice %143 {offsets = [3, 0], sizes = [16, 128], strides = [1, 1]} : vector<40x128xf32> to vector<16x128xf32>
    %145 = arith.addf %138, %144 : vector<16x128xf32>
    %146 = vector.extract_strided_slice %143 {offsets = [23, 0], sizes = [16, 128], strides = [1, 1]} : vector<40x128xf32> to vector<16x128xf32>
    %147 = arith.addf %140, %146 : vector<16x128xf32>
    %c23 = arith.constant 23 : index
    %c0_37 = arith.constant 0 : index
    %148 = vector.load %arg2[%c23, %c0_37] : memref<50x128xf32, #tpu.memory_space<vmem>>, vector<1x128xf32>
    %149 = vector.broadcast %148 : vector<1x128xf32> to vector<40x128xf32>
    %150 = arith.mulf %119, %149 : vector<40x128xf32>
    %151 = vector.extract_strided_slice %150 {offsets = [4, 0], sizes = [16, 128], strides = [1, 1]} : vector<40x128xf32> to vector<16x128xf32>
    %152 = arith.addf %145, %151 : vector<16x128xf32>
    %153 = vector.extract_strided_slice %150 {offsets = [24, 0], sizes = [16, 128], strides = [1, 1]} : vector<40x128xf32> to vector<16x128xf32>
    %154 = arith.addf %147, %153 : vector<16x128xf32>
    %c0_38 = arith.constant 0 : index
    %c32 = arith.constant 32 : index
    %155 = vector.load %arg1[%c0_38, %c32] : memref<40x160xf32, #tpu.memory_space<vmem>>, vector<40x128xf32>
    %c4_39 = arith.constant 4 : index
    %c0_40 = arith.constant 0 : index
    %156 = vector.load %arg2[%c4_39, %c0_40] : memref<50x128xf32, #tpu.memory_space<vmem>>, vector<1x128xf32>
    %157 = vector.broadcast %156 : vector<1x128xf32> to vector<40x128xf32>
    %158 = arith.mulf %155, %157 : vector<40x128xf32>
    %159 = vector.extract_strided_slice %158 {offsets = [0, 0], sizes = [16, 128], strides = [1, 1]} : vector<40x128xf32> to vector<16x128xf32>
    %160 = arith.addf %152, %159 : vector<16x128xf32>
    %161 = vector.extract_strided_slice %158 {offsets = [20, 0], sizes = [16, 128], strides = [1, 1]} : vector<40x128xf32> to vector<16x128xf32>
    %162 = arith.addf %154, %161 : vector<16x128xf32>
    %c9 = arith.constant 9 : index
    %c0_41 = arith.constant 0 : index
    %163 = vector.load %arg2[%c9, %c0_41] : memref<50x128xf32, #tpu.memory_space<vmem>>, vector<1x128xf32>
    %164 = vector.broadcast %163 : vector<1x128xf32> to vector<40x128xf32>
    %165 = arith.mulf %155, %164 : vector<40x128xf32>
    %166 = vector.extract_strided_slice %165 {offsets = [1, 0], sizes = [16, 128], strides = [1, 1]} : vector<40x128xf32> to vector<16x128xf32>
    %167 = arith.addf %160, %166 : vector<16x128xf32>
    %168 = vector.extract_strided_slice %165 {offsets = [21, 0], sizes = [16, 128], strides = [1, 1]} : vector<40x128xf32> to vector<16x128xf32>
    %169 = arith.addf %162, %168 : vector<16x128xf32>
    %c14 = arith.constant 14 : index
    %c0_42 = arith.constant 0 : index
    %170 = vector.load %arg2[%c14, %c0_42] : memref<50x128xf32, #tpu.memory_space<vmem>>, vector<1x128xf32>
    %171 = vector.broadcast %170 : vector<1x128xf32> to vector<40x128xf32>
    %172 = arith.mulf %155, %171 : vector<40x128xf32>
    %173 = vector.extract_strided_slice %172 {offsets = [2, 0], sizes = [16, 128], strides = [1, 1]} : vector<40x128xf32> to vector<16x128xf32>
    %174 = arith.addf %167, %173 : vector<16x128xf32>
    %175 = vector.extract_strided_slice %172 {offsets = [22, 0], sizes = [16, 128], strides = [1, 1]} : vector<40x128xf32> to vector<16x128xf32>
    %176 = arith.addf %169, %175 : vector<16x128xf32>
    %c19 = arith.constant 19 : index
    %c0_43 = arith.constant 0 : index
    %177 = vector.load %arg2[%c19, %c0_43] : memref<50x128xf32, #tpu.memory_space<vmem>>, vector<1x128xf32>
    %178 = vector.broadcast %177 : vector<1x128xf32> to vector<40x128xf32>
    %179 = arith.mulf %155, %178 : vector<40x128xf32>
    %180 = vector.extract_strided_slice %179 {offsets = [3, 0], sizes = [16, 128], strides = [1, 1]} : vector<40x128xf32> to vector<16x128xf32>
    %181 = arith.addf %174, %180 : vector<16x128xf32>
    %182 = vector.extract_strided_slice %179 {offsets = [23, 0], sizes = [16, 128], strides = [1, 1]} : vector<40x128xf32> to vector<16x128xf32>
    %183 = arith.addf %176, %182 : vector<16x128xf32>
    %c24_44 = arith.constant 24 : index
    %c0_45 = arith.constant 0 : index
    %184 = vector.load %arg2[%c24_44, %c0_45] : memref<50x128xf32, #tpu.memory_space<vmem>>, vector<1x128xf32>
    %185 = vector.broadcast %184 : vector<1x128xf32> to vector<40x128xf32>
    %186 = arith.mulf %155, %185 : vector<40x128xf32>
    %187 = vector.extract_strided_slice %186 {offsets = [4, 0], sizes = [16, 128], strides = [1, 1]} : vector<40x128xf32> to vector<16x128xf32>
    %188 = arith.addf %181, %187 : vector<16x128xf32>
    %189 = vector.extract_strided_slice %186 {offsets = [24, 0], sizes = [16, 128], strides = [1, 1]} : vector<40x128xf32> to vector<16x128xf32>
    %190 = arith.addf %183, %189 : vector<16x128xf32>
    %cst_46 = arith.constant 0.000000e+00 : f32
    %191 = vector.broadcast %cst_46 : f32 to vector<16x128xf32>
    %192 = arith.maximumf %188, %191 : vector<16x128xf32>
    %cst_47 = arith.constant 0.000000e+00 : f32
    %193 = vector.broadcast %cst_47 : f32 to vector<16x128xf32>
    %194 = arith.maximumf %190, %193 : vector<16x128xf32>
    %195 = tpu.concatenate %192, %194 in 0 : vector<16x128xf32>, vector<16x128xf32> -> vector<32x128xf32>
    %c0_48 = arith.constant 0 : index
    %c0_49 = arith.constant 0 : index
    %196 = vector.load %arg3[%c0_48, %c0_49] : memref<128x512xf32, #tpu.memory_space<vmem>>, vector<128x128xf32>
    %cst_50 = arith.constant dense<0.000000e+00> : vector<32x128xf32>
    %197 = tpu.matmul %195, %196, %cst_50 {dimension_numbers = #tpu.dot_dimension_numbers<[1], [0], [0], [1], [0, 0, 1, 1], [], []>} : vector<32x128xf32>, vector<128x128xf32>, vector<32x128xf32> -> vector<32x128xf32>
    %198 = vector.broadcast %3 : vector<1x128xf32> to vector<32x128xf32>
    %199 = arith.addf %197, %198 : vector<32x128xf32>
    %200 = vector.extract_strided_slice %199 {offsets = [0, 0], sizes = [16, 128], strides = [1, 1]} : vector<32x128xf32> to vector<16x128xf32>
    %c2_51 = arith.constant 2 : index
    %c16_52 = arith.constant 16 : index
    %201 = vector.load %arg11[%c2_51, %c16_52] : memref<40x160xf32, #tpu.memory_space<vmem>>, vector<16x128xf32>
    tpu.vector_store %arg11[%c2_51, %c16_52], %200 {strides = array<i32>} : memref<40x160xf32, #tpu.memory_space<vmem>>, vector<16x128xf32>,
    %202 = vector.extract_strided_slice %199 {offsets = [16, 0], sizes = [16, 128], strides = [1, 1]} : vector<32x128xf32> to vector<16x128xf32>
    %c22_53 = arith.constant 22 : index
    %c16_54 = arith.constant 16 : index
    %203 = vector.load %arg11[%c22_53, %c16_54] : memref<40x160xf32, #tpu.memory_space<vmem>>, vector<16x128xf32>
    tpu.vector_store %arg11[%c22_53, %c16_54], %202 {strides = array<i32>} : memref<40x160xf32, #tpu.memory_space<vmem>>, vector<16x128xf32>,
    %204 = vector.shape_cast %4 : vector<1x128xf32> to vector<1x128xf32>
    %205 = vector.broadcast %204 : vector<1x128xf32> to vector<16x128xf32>
    %206 = vector.shape_cast %4 : vector<1x128xf32> to vector<1x128xf32>
    %207 = vector.broadcast %206 : vector<1x128xf32> to vector<16x128xf32>
    %c0_55 = arith.constant 0 : index
    %c0_56 = arith.constant 0 : index
    %208 = vector.load %arg11[%c0_55, %c0_56] : memref<40x160xf32, #tpu.memory_space<vmem>>, vector<40x128xf32>
    %c25 = arith.constant 25 : index
    %c0_57 = arith.constant 0 : index
    %209 = vector.load %arg2[%c25, %c0_57] : memref<50x128xf32, #tpu.memory_space<vmem>>, vector<1x128xf32>
    %210 = vector.broadcast %209 : vector<1x128xf32> to vector<40x128xf32>
    %211 = arith.mulf %208, %210 : vector<40x128xf32>
    %212 = vector.extract_strided_slice %211 {offsets = [0, 0], sizes = [16, 128], strides = [1, 1]} : vector<40x128xf32> to vector<16x128xf32>
    %213 = arith.addf %205, %212 : vector<16x128xf32>
    %214 = vector.extract_strided_slice %211 {offsets = [20, 0], sizes = [16, 128], strides = [1, 1]} : vector<40x128xf32> to vector<16x128xf32>
    %215 = arith.addf %207, %214 : vector<16x128xf32>
    %c30 = arith.constant 30 : index
    %c0_58 = arith.constant 0 : index
    %216 = vector.load %arg2[%c30, %c0_58] : memref<50x128xf32, #tpu.memory_space<vmem>>, vector<1x128xf32>
    %217 = vector.broadcast %216 : vector<1x128xf32> to vector<40x128xf32>
    %218 = arith.mulf %208, %217 : vector<40x128xf32>
    %219 = vector.extract_strided_slice %218 {offsets = [1, 0], sizes = [16, 128], strides = [1, 1]} : vector<40x128xf32> to vector<16x128xf32>
    %220 = arith.addf %213, %219 : vector<16x128xf32>
    %221 = vector.extract_strided_slice %218 {offsets = [21, 0], sizes = [16, 128], strides = [1, 1]} : vector<40x128xf32> to vector<16x128xf32>
    %222 = arith.addf %215, %221 : vector<16x128xf32>
    %c35 = arith.constant 35 : index
    %c0_59 = arith.constant 0 : index
    %223 = vector.load %arg2[%c35, %c0_59] : memref<50x128xf32, #tpu.memory_space<vmem>>, vector<1x128xf32>
    %224 = vector.broadcast %223 : vector<1x128xf32> to vector<40x128xf32>
    %225 = arith.mulf %208, %224 : vector<40x128xf32>
    %226 = vector.extract_strided_slice %225 {offsets = [2, 0], sizes = [16, 128], strides = [1, 1]} : vector<40x128xf32> to vector<16x128xf32>
    %227 = arith.addf %220, %226 : vector<16x128xf32>
    %228 = vector.extract_strided_slice %225 {offsets = [22, 0], sizes = [16, 128], strides = [1, 1]} : vector<40x128xf32> to vector<16x128xf32>
    %229 = arith.addf %222, %228 : vector<16x128xf32>
    %c40 = arith.constant 40 : index
    %c0_60 = arith.constant 0 : index
    %230 = vector.load %arg2[%c40, %c0_60] : memref<50x128xf32, #tpu.memory_space<vmem>>, vector<1x128xf32>
    %231 = vector.broadcast %230 : vector<1x128xf32> to vector<40x128xf32>
    %232 = arith.mulf %208, %231 : vector<40x128xf32>
    %233 = vector.extract_strided_slice %232 {offsets = [3, 0], sizes = [16, 128], strides = [1, 1]} : vector<40x128xf32> to vector<16x128xf32>
    %234 = arith.addf %227, %233 : vector<16x128xf32>
    %235 = vector.extract_strided_slice %232 {offsets = [23, 0], sizes = [16, 128], strides = [1, 1]} : vector<40x128xf32> to vector<16x128xf32>
    %236 = arith.addf %229, %235 : vector<16x128xf32>
    %c45 = arith.constant 45 : index
    %c0_61 = arith.constant 0 : index
    %237 = vector.load %arg2[%c45, %c0_61] : memref<50x128xf32, #tpu.memory_space<vmem>>, vector<1x128xf32>
    %238 = vector.broadcast %237 : vector<1x128xf32> to vector<40x128xf32>
    %239 = arith.mulf %208, %238 : vector<40x128xf32>
    %240 = vector.extract_strided_slice %239 {offsets = [4, 0], sizes = [16, 128], strides = [1, 1]} : vector<40x128xf32> to vector<16x128xf32>
    %241 = arith.addf %234, %240 : vector<16x128xf32>
    %242 = vector.extract_strided_slice %239 {offsets = [24, 0], sizes = [16, 128], strides = [1, 1]} : vector<40x128xf32> to vector<16x128xf32>
    %243 = arith.addf %236, %242 : vector<16x128xf32>
    %c0_62 = arith.constant 0 : index
    %c8_63 = arith.constant 8 : index
    %244 = vector.load %arg11[%c0_62, %c8_63] : memref<40x160xf32, #tpu.memory_space<vmem>>, vector<40x128xf32>
    %c26 = arith.constant 26 : index
    %c0_64 = arith.constant 0 : index
    %245 = vector.load %arg2[%c26, %c0_64] : memref<50x128xf32, #tpu.memory_space<vmem>>, vector<1x128xf32>
    %246 = vector.broadcast %245 : vector<1x128xf32> to vector<40x128xf32>
    %247 = arith.mulf %244, %246 : vector<40x128xf32>
    %248 = vector.extract_strided_slice %247 {offsets = [0, 0], sizes = [16, 128], strides = [1, 1]} : vector<40x128xf32> to vector<16x128xf32>
    %249 = arith.addf %241, %248 : vector<16x128xf32>
    %250 = vector.extract_strided_slice %247 {offsets = [20, 0], sizes = [16, 128], strides = [1, 1]} : vector<40x128xf32> to vector<16x128xf32>
    %251 = arith.addf %243, %250 : vector<16x128xf32>
    %c31 = arith.constant 31 : index
    %c0_65 = arith.constant 0 : index
    %252 = vector.load %arg2[%c31, %c0_65] : memref<50x128xf32, #tpu.memory_space<vmem>>, vector<1x128xf32>
    %253 = vector.broadcast %252 : vector<1x128xf32> to vector<40x128xf32>
    %254 = arith.mulf %244, %253 : vector<40x128xf32>
    %255 = vector.extract_strided_slice %254 {offsets = [1, 0], sizes = [16, 128], strides = [1, 1]} : vector<40x128xf32> to vector<16x128xf32>
    %256 = arith.addf %249, %255 : vector<16x128xf32>
    %257 = vector.extract_strided_slice %254 {offsets = [21, 0], sizes = [16, 128], strides = [1, 1]} : vector<40x128xf32> to vector<16x128xf32>
    %258 = arith.addf %251, %257 : vector<16x128xf32>
    %c36 = arith.constant 36 : index
    %c0_66 = arith.constant 0 : index
    %259 = vector.load %arg2[%c36, %c0_66] : memref<50x128xf32, #tpu.memory_space<vmem>>, vector<1x128xf32>
    %260 = vector.broadcast %259 : vector<1x128xf32> to vector<40x128xf32>
    %261 = arith.mulf %244, %260 : vector<40x128xf32>
    %262 = vector.extract_strided_slice %261 {offsets = [2, 0], sizes = [16, 128], strides = [1, 1]} : vector<40x128xf32> to vector<16x128xf32>
    %263 = arith.addf %256, %262 : vector<16x128xf32>
    %264 = vector.extract_strided_slice %261 {offsets = [22, 0], sizes = [16, 128], strides = [1, 1]} : vector<40x128xf32> to vector<16x128xf32>
    %265 = arith.addf %258, %264 : vector<16x128xf32>
    %c41 = arith.constant 41 : index
    %c0_67 = arith.constant 0 : index
    %266 = vector.load %arg2[%c41, %c0_67] : memref<50x128xf32, #tpu.memory_space<vmem>>, vector<1x128xf32>
    %267 = vector.broadcast %266 : vector<1x128xf32> to vector<40x128xf32>
    %268 = arith.mulf %244, %267 : vector<40x128xf32>
    %269 = vector.extract_strided_slice %268 {offsets = [3, 0], sizes = [16, 128], strides = [1, 1]} : vector<40x128xf32> to vector<16x128xf32>
    %270 = arith.addf %263, %269 : vector<16x128xf32>
    %271 = vector.extract_strided_slice %268 {offsets = [23, 0], sizes = [16, 128], strides = [1, 1]} : vector<40x128xf32> to vector<16x128xf32>
    %272 = arith.addf %265, %271 : vector<16x128xf32>
    %c46 = arith.constant 46 : index
    %c0_68 = arith.constant 0 : index
    %273 = vector.load %arg2[%c46, %c0_68] : memref<50x128xf32, #tpu.memory_space<vmem>>, vector<1x128xf32>
    %274 = vector.broadcast %273 : vector<1x128xf32> to vector<40x128xf32>
    %275 = arith.mulf %244, %274 : vector<40x128xf32>
    %276 = vector.extract_strided_slice %275 {offsets = [4, 0], sizes = [16, 128], strides = [1, 1]} : vector<40x128xf32> to vector<16x128xf32>
    %277 = arith.addf %270, %276 : vector<16x128xf32>
    %278 = vector.extract_strided_slice %275 {offsets = [24, 0], sizes = [16, 128], strides = [1, 1]} : vector<40x128xf32> to vector<16x128xf32>
    %279 = arith.addf %272, %278 : vector<16x128xf32>
    %c0_69 = arith.constant 0 : index
    %c16_70 = arith.constant 16 : index
    %280 = vector.load %arg11[%c0_69, %c16_70] : memref<40x160xf32, #tpu.memory_space<vmem>>, vector<40x128xf32>
    %c27 = arith.constant 27 : index
    %c0_71 = arith.constant 0 : index
    %281 = vector.load %arg2[%c27, %c0_71] : memref<50x128xf32, #tpu.memory_space<vmem>>, vector<1x128xf32>
    %282 = vector.broadcast %281 : vector<1x128xf32> to vector<40x128xf32>
    %283 = arith.mulf %280, %282 : vector<40x128xf32>
    %284 = vector.extract_strided_slice %283 {offsets = [0, 0], sizes = [16, 128], strides = [1, 1]} : vector<40x128xf32> to vector<16x128xf32>
    %285 = arith.addf %277, %284 : vector<16x128xf32>
    %286 = vector.extract_strided_slice %283 {offsets = [20, 0], sizes = [16, 128], strides = [1, 1]} : vector<40x128xf32> to vector<16x128xf32>
    %287 = arith.addf %279, %286 : vector<16x128xf32>
    %c32_72 = arith.constant 32 : index
    %c0_73 = arith.constant 0 : index
    %288 = vector.load %arg2[%c32_72, %c0_73] : memref<50x128xf32, #tpu.memory_space<vmem>>, vector<1x128xf32>
    %289 = vector.broadcast %288 : vector<1x128xf32> to vector<40x128xf32>
    %290 = arith.mulf %280, %289 : vector<40x128xf32>
    %291 = vector.extract_strided_slice %290 {offsets = [1, 0], sizes = [16, 128], strides = [1, 1]} : vector<40x128xf32> to vector<16x128xf32>
    %292 = arith.addf %285, %291 : vector<16x128xf32>
    %293 = vector.extract_strided_slice %290 {offsets = [21, 0], sizes = [16, 128], strides = [1, 1]} : vector<40x128xf32> to vector<16x128xf32>
    %294 = arith.addf %287, %293 : vector<16x128xf32>
    %c37 = arith.constant 37 : index
    %c0_74 = arith.constant 0 : index
    %295 = vector.load %arg2[%c37, %c0_74] : memref<50x128xf32, #tpu.memory_space<vmem>>, vector<1x128xf32>
    %296 = vector.broadcast %295 : vector<1x128xf32> to vector<40x128xf32>
    %297 = arith.mulf %280, %296 : vector<40x128xf32>
    %298 = vector.extract_strided_slice %297 {offsets = [2, 0], sizes = [16, 128], strides = [1, 1]} : vector<40x128xf32> to vector<16x128xf32>
    %299 = arith.addf %292, %298 : vector<16x128xf32>
    %300 = vector.extract_strided_slice %297 {offsets = [22, 0], sizes = [16, 128], strides = [1, 1]} : vector<40x128xf32> to vector<16x128xf32>
    %301 = arith.addf %294, %300 : vector<16x128xf32>
    %c42 = arith.constant 42 : index
    %c0_75 = arith.constant 0 : index
    %302 = vector.load %arg2[%c42, %c0_75] : memref<50x128xf32, #tpu.memory_space<vmem>>, vector<1x128xf32>
    %303 = vector.broadcast %302 : vector<1x128xf32> to vector<40x128xf32>
    %304 = arith.mulf %280, %303 : vector<40x128xf32>
    %305 = vector.extract_strided_slice %304 {offsets = [3, 0], sizes = [16, 128], strides = [1, 1]} : vector<40x128xf32> to vector<16x128xf32>
    %306 = arith.addf %299, %305 : vector<16x128xf32>
    %307 = vector.extract_strided_slice %304 {offsets = [23, 0], sizes = [16, 128], strides = [1, 1]} : vector<40x128xf32> to vector<16x128xf32>
    %308 = arith.addf %301, %307 : vector<16x128xf32>
    %c47 = arith.constant 47 : index
    %c0_76 = arith.constant 0 : index
    %309 = vector.load %arg2[%c47, %c0_76] : memref<50x128xf32, #tpu.memory_space<vmem>>, vector<1x128xf32>
    %310 = vector.broadcast %309 : vector<1x128xf32> to vector<40x128xf32>
    %311 = arith.mulf %280, %310 : vector<40x128xf32>
    %312 = vector.extract_strided_slice %311 {offsets = [4, 0], sizes = [16, 128], strides = [1, 1]} : vector<40x128xf32> to vector<16x128xf32>
    %313 = arith.addf %306, %312 : vector<16x128xf32>
    %314 = vector.extract_strided_slice %311 {offsets = [24, 0], sizes = [16, 128], strides = [1, 1]} : vector<40x128xf32> to vector<16x128xf32>
    %315 = arith.addf %308, %314 : vector<16x128xf32>
    %c0_77 = arith.constant 0 : index
    %c24_78 = arith.constant 24 : index
    %316 = vector.load %arg11[%c0_77, %c24_78] : memref<40x160xf32, #tpu.memory_space<vmem>>, vector<40x128xf32>
    %c28 = arith.constant 28 : index
    %c0_79 = arith.constant 0 : index
    %317 = vector.load %arg2[%c28, %c0_79] : memref<50x128xf32, #tpu.memory_space<vmem>>, vector<1x128xf32>
    %318 = vector.broadcast %317 : vector<1x128xf32> to vector<40x128xf32>
    %319 = arith.mulf %316, %318 : vector<40x128xf32>
    %320 = vector.extract_strided_slice %319 {offsets = [0, 0], sizes = [16, 128], strides = [1, 1]} : vector<40x128xf32> to vector<16x128xf32>
    %321 = arith.addf %313, %320 : vector<16x128xf32>
    %322 = vector.extract_strided_slice %319 {offsets = [20, 0], sizes = [16, 128], strides = [1, 1]} : vector<40x128xf32> to vector<16x128xf32>
    %323 = arith.addf %315, %322 : vector<16x128xf32>
    %c33 = arith.constant 33 : index
    %c0_80 = arith.constant 0 : index
    %324 = vector.load %arg2[%c33, %c0_80] : memref<50x128xf32, #tpu.memory_space<vmem>>, vector<1x128xf32>
    %325 = vector.broadcast %324 : vector<1x128xf32> to vector<40x128xf32>
    %326 = arith.mulf %316, %325 : vector<40x128xf32>
    %327 = vector.extract_strided_slice %326 {offsets = [1, 0], sizes = [16, 128], strides = [1, 1]} : vector<40x128xf32> to vector<16x128xf32>
    %328 = arith.addf %321, %327 : vector<16x128xf32>
    %329 = vector.extract_strided_slice %326 {offsets = [21, 0], sizes = [16, 128], strides = [1, 1]} : vector<40x128xf32> to vector<16x128xf32>
    %330 = arith.addf %323, %329 : vector<16x128xf32>
    %c38 = arith.constant 38 : index
    %c0_81 = arith.constant 0 : index
    %331 = vector.load %arg2[%c38, %c0_81] : memref<50x128xf32, #tpu.memory_space<vmem>>, vector<1x128xf32>
    %332 = vector.broadcast %331 : vector<1x128xf32> to vector<40x128xf32>
    %333 = arith.mulf %316, %332 : vector<40x128xf32>
    %334 = vector.extract_strided_slice %333 {offsets = [2, 0], sizes = [16, 128], strides = [1, 1]} : vector<40x128xf32> to vector<16x128xf32>
    %335 = arith.addf %328, %334 : vector<16x128xf32>
    %336 = vector.extract_strided_slice %333 {offsets = [22, 0], sizes = [16, 128], strides = [1, 1]} : vector<40x128xf32> to vector<16x128xf32>
    %337 = arith.addf %330, %336 : vector<16x128xf32>
    %c43 = arith.constant 43 : index
    %c0_82 = arith.constant 0 : index
    %338 = vector.load %arg2[%c43, %c0_82] : memref<50x128xf32, #tpu.memory_space<vmem>>, vector<1x128xf32>
    %339 = vector.broadcast %338 : vector<1x128xf32> to vector<40x128xf32>
    %340 = arith.mulf %316, %339 : vector<40x128xf32>
    %341 = vector.extract_strided_slice %340 {offsets = [3, 0], sizes = [16, 128], strides = [1, 1]} : vector<40x128xf32> to vector<16x128xf32>
    %342 = arith.addf %335, %341 : vector<16x128xf32>
    %343 = vector.extract_strided_slice %340 {offsets = [23, 0], sizes = [16, 128], strides = [1, 1]} : vector<40x128xf32> to vector<16x128xf32>
    %344 = arith.addf %337, %343 : vector<16x128xf32>
    %c48 = arith.constant 48 : index
    %c0_83 = arith.constant 0 : index
    %345 = vector.load %arg2[%c48, %c0_83] : memref<50x128xf32, #tpu.memory_space<vmem>>, vector<1x128xf32>
    %346 = vector.broadcast %345 : vector<1x128xf32> to vector<40x128xf32>
    %347 = arith.mulf %316, %346 : vector<40x128xf32>
    %348 = vector.extract_strided_slice %347 {offsets = [4, 0], sizes = [16, 128], strides = [1, 1]} : vector<40x128xf32> to vector<16x128xf32>
    %349 = arith.addf %342, %348 : vector<16x128xf32>
    %350 = vector.extract_strided_slice %347 {offsets = [24, 0], sizes = [16, 128], strides = [1, 1]} : vector<40x128xf32> to vector<16x128xf32>
    %351 = arith.addf %344, %350 : vector<16x128xf32>
    %c0_84 = arith.constant 0 : index
    %c32_85 = arith.constant 32 : index
    %352 = vector.load %arg11[%c0_84, %c32_85] : memref<40x160xf32, #tpu.memory_space<vmem>>, vector<40x128xf32>
    %c29 = arith.constant 29 : index
    %c0_86 = arith.constant 0 : index
    %353 = vector.load %arg2[%c29, %c0_86] : memref<50x128xf32, #tpu.memory_space<vmem>>, vector<1x128xf32>
    %354 = vector.broadcast %353 : vector<1x128xf32> to vector<40x128xf32>
    %355 = arith.mulf %352, %354 : vector<40x128xf32>
    %356 = vector.extract_strided_slice %355 {offsets = [0, 0], sizes = [16, 128], strides = [1, 1]} : vector<40x128xf32> to vector<16x128xf32>
    %357 = arith.addf %349, %356 : vector<16x128xf32>
    %358 = vector.extract_strided_slice %355 {offsets = [20, 0], sizes = [16, 128], strides = [1, 1]} : vector<40x128xf32> to vector<16x128xf32>
    %359 = arith.addf %351, %358 : vector<16x128xf32>
    %c34 = arith.constant 34 : index
    %c0_87 = arith.constant 0 : index
    %360 = vector.load %arg2[%c34, %c0_87] : memref<50x128xf32, #tpu.memory_space<vmem>>, vector<1x128xf32>
    %361 = vector.broadcast %360 : vector<1x128xf32> to vector<40x128xf32>
    %362 = arith.mulf %352, %361 : vector<40x128xf32>
    %363 = vector.extract_strided_slice %362 {offsets = [1, 0], sizes = [16, 128], strides = [1, 1]} : vector<40x128xf32> to vector<16x128xf32>
    %364 = arith.addf %357, %363 : vector<16x128xf32>
    %365 = vector.extract_strided_slice %362 {offsets = [21, 0], sizes = [16, 128], strides = [1, 1]} : vector<40x128xf32> to vector<16x128xf32>
    %366 = arith.addf %359, %365 : vector<16x128xf32>
    %c39 = arith.constant 39 : index
    %c0_88 = arith.constant 0 : index
    %367 = vector.load %arg2[%c39, %c0_88] : memref<50x128xf32, #tpu.memory_space<vmem>>, vector<1x128xf32>
    %368 = vector.broadcast %367 : vector<1x128xf32> to vector<40x128xf32>
    %369 = arith.mulf %352, %368 : vector<40x128xf32>
    %370 = vector.extract_strided_slice %369 {offsets = [2, 0], sizes = [16, 128], strides = [1, 1]} : vector<40x128xf32> to vector<16x128xf32>
    %371 = arith.addf %364, %370 : vector<16x128xf32>
    %372 = vector.extract_strided_slice %369 {offsets = [22, 0], sizes = [16, 128], strides = [1, 1]} : vector<40x128xf32> to vector<16x128xf32>
    %373 = arith.addf %366, %372 : vector<16x128xf32>
    %c44 = arith.constant 44 : index
    %c0_89 = arith.constant 0 : index
    %374 = vector.load %arg2[%c44, %c0_89] : memref<50x128xf32, #tpu.memory_space<vmem>>, vector<1x128xf32>
    %375 = vector.broadcast %374 : vector<1x128xf32> to vector<40x128xf32>
    %376 = arith.mulf %352, %375 : vector<40x128xf32>
    %377 = vector.extract_strided_slice %376 {offsets = [3, 0], sizes = [16, 128], strides = [1, 1]} : vector<40x128xf32> to vector<16x128xf32>
    %378 = arith.addf %371, %377 : vector<16x128xf32>
    %379 = vector.extract_strided_slice %376 {offsets = [23, 0], sizes = [16, 128], strides = [1, 1]} : vector<40x128xf32> to vector<16x128xf32>
    %380 = arith.addf %373, %379 : vector<16x128xf32>
    %c49 = arith.constant 49 : index
    %c0_90 = arith.constant 0 : index
    %381 = vector.load %arg2[%c49, %c0_90] : memref<50x128xf32, #tpu.memory_space<vmem>>, vector<1x128xf32>
    %382 = vector.broadcast %381 : vector<1x128xf32> to vector<40x128xf32>
    %383 = arith.mulf %352, %382 : vector<40x128xf32>
    %384 = vector.extract_strided_slice %383 {offsets = [4, 0], sizes = [16, 128], strides = [1, 1]} : vector<40x128xf32> to vector<16x128xf32>
    %385 = arith.addf %378, %384 : vector<16x128xf32>
    %386 = vector.extract_strided_slice %383 {offsets = [24, 0], sizes = [16, 128], strides = [1, 1]} : vector<40x128xf32> to vector<16x128xf32>
    %387 = arith.addf %380, %386 : vector<16x128xf32>
    %cst_91 = arith.constant 0.000000e+00 : f32
    %388 = vector.broadcast %cst_91 : f32 to vector<16x128xf32>
    %389 = arith.maximumf %385, %388 : vector<16x128xf32>
    %cst_92 = arith.constant 0.000000e+00 : f32
    %390 = vector.broadcast %cst_92 : f32 to vector<16x128xf32>
    %391 = arith.maximumf %387, %390 : vector<16x128xf32>
    %392 = tpu.concatenate %389, %391 in 0 : vector<16x128xf32>, vector<16x128xf32> -> vector<32x128xf32>
    %c0_93 = arith.constant 0 : index
    %c128 = arith.constant 128 : index
    %393 = vector.load %arg3[%c0_93, %c128] : memref<128x512xf32, #tpu.memory_space<vmem>>, vector<128x128xf32>
    %cst_94 = arith.constant dense<0.000000e+00> : vector<32x128xf32>
    %394 = tpu.matmul %392, %393, %cst_94 {dimension_numbers = #tpu.dot_dimension_numbers<[1], [0], [0], [1], [0, 0, 1, 1], [], []>} : vector<32x128xf32>, vector<128x128xf32>, vector<32x128xf32> -> vector<32x128xf32>
    %395 = vector.broadcast %5 : vector<1x128xf32> to vector<32x128xf32>
    %396 = arith.addf %394, %395 : vector<32x128xf32>
    %c0_95 = arith.constant 0 : index
    %c256 = arith.constant 256 : index
    %397 = vector.load %arg3[%c0_95, %c256] : memref<128x512xf32, #tpu.memory_space<vmem>>, vector<128x256xf32>
    %cst_96 = arith.constant dense<0.000000e+00> : vector<32x256xf32>
    %398 = tpu.matmul %396, %397, %cst_96 {dimension_numbers = #tpu.dot_dimension_numbers<[1], [0], [0], [1], [0, 0, 1, 1], [], []>} : vector<32x128xf32>, vector<128x256xf32>, vector<32x256xf32> -> vector<32x256xf32>
    %399 = vector.broadcast %6 : vector<1x256xf32> to vector<32x256xf32>
    %400 = arith.addf %398, %399 : vector<32x256xf32>
    %c0_97 = arith.constant 0 : index
    %c0_98 = arith.constant 0 : index
    %401 = vector.load %arg9[%c0_97, %c0_98] : memref<32x256xf32, #tpu.memory_space<vmem>>, vector<32x256xf32>
    tpu.vector_store %arg9[%c0_97, %c0_98], %400 {strides = array<i32>} : memref<32x256xf32, #tpu.memory_space<vmem>>, vector<32x256xf32>,
    %cst_99 = arith.constant 0.000000e+00 : f32
    %402 = vector.broadcast %cst_99 : f32 to vector<24x96xf32>
    %c0_100 = arith.constant 0 : index
    %c0_101 = arith.constant 0 : index
    %403 = vector.load %arg12[%c0_100, %c0_101] : memref<24x96xf32, #tpu.memory_space<vmem>>, vector<24x96xf32>
    tpu.vector_store %arg12[%c0_100, %c0_101], %402 {strides = array<i32>} : memref<24x96xf32, #tpu.memory_space<vmem>>, vector<24x96xf32>,
    %c0_102 = arith.constant 0 : index
    %c0_103 = arith.constant 0 : index
    %404 = vector.load %arg8[%c0_102, %c0_103] : memref<5x128xf32, #tpu.memory_space<vmem>>, vector<1x64xf32>
    %c1_104 = arith.constant 1 : index
    %c0_105 = arith.constant 0 : index
    %405 = vector.load %arg8[%c1_104, %c0_105] : memref<5x128xf32, #tpu.memory_space<vmem>>, vector<1x64xf32>
    %c2_106 = arith.constant 2 : index
    %c0_107 = arith.constant 0 : index
    %406 = vector.load %arg8[%c2_106, %c0_107] : memref<5x128xf32, #tpu.memory_space<vmem>>, vector<1x64xf32>
    %c3_108 = arith.constant 3 : index
    %c0_109 = arith.constant 0 : index
    %407 = vector.load %arg8[%c3_108, %c0_109] : memref<5x128xf32, #tpu.memory_space<vmem>>, vector<1x64xf32>
    %c4_110 = arith.constant 4 : index
    %c0_111 = arith.constant 0 : index
    %408 = vector.load %arg8[%c4_110, %c0_111] : memref<5x128xf32, #tpu.memory_space<vmem>>, vector<1x128xf32>
    %409 = vector.shape_cast %404 : vector<1x64xf32> to vector<1x64xf32>
    %410 = vector.broadcast %409 : vector<1x64xf32> to vector<8x64xf32>
    %411 = vector.shape_cast %404 : vector<1x64xf32> to vector<1x64xf32>
    %412 = vector.broadcast %411 : vector<1x64xf32> to vector<8x64xf32>
    %c0_112 = arith.constant 0 : index
    %c0_113 = arith.constant 0 : index
    %413 = vector.load %arg5[%c0_112, %c0_113] : memref<24x96xf32, #tpu.memory_space<vmem>>, vector<24x64xf32>
    %c0_114 = arith.constant 0 : index
    %c0_115 = arith.constant 0 : index
    %414 = vector.load %arg6[%c0_114, %c0_115] : memref<50x64xf32, #tpu.memory_space<vmem>>, vector<1x64xf32>
    %415 = vector.broadcast %414 : vector<1x64xf32> to vector<24x64xf32>
    %416 = arith.mulf %413, %415 : vector<24x64xf32>
    %417 = vector.extract_strided_slice %416 {offsets = [0, 0], sizes = [8, 64], strides = [1, 1]} : vector<24x64xf32> to vector<8x64xf32>
    %418 = arith.addf %410, %417 : vector<8x64xf32>
    %419 = vector.extract_strided_slice %416 {offsets = [12, 0], sizes = [8, 64], strides = [1, 1]} : vector<24x64xf32> to vector<8x64xf32>
    %420 = arith.addf %412, %419 : vector<8x64xf32>
    %c5_116 = arith.constant 5 : index
    %c0_117 = arith.constant 0 : index
    %421 = vector.load %arg6[%c5_116, %c0_117] : memref<50x64xf32, #tpu.memory_space<vmem>>, vector<1x64xf32>
    %422 = vector.broadcast %421 : vector<1x64xf32> to vector<24x64xf32>
    %423 = arith.mulf %413, %422 : vector<24x64xf32>
    %424 = vector.extract_strided_slice %423 {offsets = [1, 0], sizes = [8, 64], strides = [1, 1]} : vector<24x64xf32> to vector<8x64xf32>
    %425 = arith.addf %418, %424 : vector<8x64xf32>
    %426 = vector.extract_strided_slice %423 {offsets = [13, 0], sizes = [8, 64], strides = [1, 1]} : vector<24x64xf32> to vector<8x64xf32>
    %427 = arith.addf %420, %426 : vector<8x64xf32>
    %c10_118 = arith.constant 10 : index
    %c0_119 = arith.constant 0 : index
    %428 = vector.load %arg6[%c10_118, %c0_119] : memref<50x64xf32, #tpu.memory_space<vmem>>, vector<1x64xf32>
    %429 = vector.broadcast %428 : vector<1x64xf32> to vector<24x64xf32>
    %430 = arith.mulf %413, %429 : vector<24x64xf32>
    %431 = vector.extract_strided_slice %430 {offsets = [2, 0], sizes = [8, 64], strides = [1, 1]} : vector<24x64xf32> to vector<8x64xf32>
    %432 = arith.addf %425, %431 : vector<8x64xf32>
    %433 = vector.extract_strided_slice %430 {offsets = [14, 0], sizes = [8, 64], strides = [1, 1]} : vector<24x64xf32> to vector<8x64xf32>
    %434 = arith.addf %427, %433 : vector<8x64xf32>
    %c15_120 = arith.constant 15 : index
    %c0_121 = arith.constant 0 : index
    %435 = vector.load %arg6[%c15_120, %c0_121] : memref<50x64xf32, #tpu.memory_space<vmem>>, vector<1x64xf32>
    %436 = vector.broadcast %435 : vector<1x64xf32> to vector<24x64xf32>
    %437 = arith.mulf %413, %436 : vector<24x64xf32>
    %438 = vector.extract_strided_slice %437 {offsets = [3, 0], sizes = [8, 64], strides = [1, 1]} : vector<24x64xf32> to vector<8x64xf32>
    %439 = arith.addf %432, %438 : vector<8x64xf32>
    %440 = vector.extract_strided_slice %437 {offsets = [15, 0], sizes = [8, 64], strides = [1, 1]} : vector<24x64xf32> to vector<8x64xf32>
    %441 = arith.addf %434, %440 : vector<8x64xf32>
    %c20_122 = arith.constant 20 : index
    %c0_123 = arith.constant 0 : index
    %442 = vector.load %arg6[%c20_122, %c0_123] : memref<50x64xf32, #tpu.memory_space<vmem>>, vector<1x64xf32>
    %443 = vector.broadcast %442 : vector<1x64xf32> to vector<24x64xf32>
    %444 = arith.mulf %413, %443 : vector<24x64xf32>
    %445 = vector.extract_strided_slice %444 {offsets = [4, 0], sizes = [8, 64], strides = [1, 1]} : vector<24x64xf32> to vector<8x64xf32>
    %446 = arith.addf %439, %445 : vector<8x64xf32>
    %447 = vector.extract_strided_slice %444 {offsets = [16, 0], sizes = [8, 64], strides = [1, 1]} : vector<24x64xf32> to vector<8x64xf32>
    %448 = arith.addf %441, %447 : vector<8x64xf32>
    %c0_124 = arith.constant 0 : index
    %c8_125 = arith.constant 8 : index
    %449 = vector.load %arg5[%c0_124, %c8_125] : memref<24x96xf32, #tpu.memory_space<vmem>>, vector<24x64xf32>
    %c1_126 = arith.constant 1 : index
    %c0_127 = arith.constant 0 : index
    %450 = vector.load %arg6[%c1_126, %c0_127] : memref<50x64xf32, #tpu.memory_space<vmem>>, vector<1x64xf32>
    %451 = vector.broadcast %450 : vector<1x64xf32> to vector<24x64xf32>
    %452 = arith.mulf %449, %451 : vector<24x64xf32>
    %453 = vector.extract_strided_slice %452 {offsets = [0, 0], sizes = [8, 64], strides = [1, 1]} : vector<24x64xf32> to vector<8x64xf32>
    %454 = arith.addf %446, %453 : vector<8x64xf32>
    %455 = vector.extract_strided_slice %452 {offsets = [12, 0], sizes = [8, 64], strides = [1, 1]} : vector<24x64xf32> to vector<8x64xf32>
    %456 = arith.addf %448, %455 : vector<8x64xf32>
    %c6_128 = arith.constant 6 : index
    %c0_129 = arith.constant 0 : index
    %457 = vector.load %arg6[%c6_128, %c0_129] : memref<50x64xf32, #tpu.memory_space<vmem>>, vector<1x64xf32>
    %458 = vector.broadcast %457 : vector<1x64xf32> to vector<24x64xf32>
    %459 = arith.mulf %449, %458 : vector<24x64xf32>
    %460 = vector.extract_strided_slice %459 {offsets = [1, 0], sizes = [8, 64], strides = [1, 1]} : vector<24x64xf32> to vector<8x64xf32>
    %461 = arith.addf %454, %460 : vector<8x64xf32>
    %462 = vector.extract_strided_slice %459 {offsets = [13, 0], sizes = [8, 64], strides = [1, 1]} : vector<24x64xf32> to vector<8x64xf32>
    %463 = arith.addf %456, %462 : vector<8x64xf32>
    %c11_130 = arith.constant 11 : index
    %c0_131 = arith.constant 0 : index
    %464 = vector.load %arg6[%c11_130, %c0_131] : memref<50x64xf32, #tpu.memory_space<vmem>>, vector<1x64xf32>
    %465 = vector.broadcast %464 : vector<1x64xf32> to vector<24x64xf32>
    %466 = arith.mulf %449, %465 : vector<24x64xf32>
    %467 = vector.extract_strided_slice %466 {offsets = [2, 0], sizes = [8, 64], strides = [1, 1]} : vector<24x64xf32> to vector<8x64xf32>
    %468 = arith.addf %461, %467 : vector<8x64xf32>
    %469 = vector.extract_strided_slice %466 {offsets = [14, 0], sizes = [8, 64], strides = [1, 1]} : vector<24x64xf32> to vector<8x64xf32>
    %470 = arith.addf %463, %469 : vector<8x64xf32>
    %c16_132 = arith.constant 16 : index
    %c0_133 = arith.constant 0 : index
    %471 = vector.load %arg6[%c16_132, %c0_133] : memref<50x64xf32, #tpu.memory_space<vmem>>, vector<1x64xf32>
    %472 = vector.broadcast %471 : vector<1x64xf32> to vector<24x64xf32>
    %473 = arith.mulf %449, %472 : vector<24x64xf32>
    %474 = vector.extract_strided_slice %473 {offsets = [3, 0], sizes = [8, 64], strides = [1, 1]} : vector<24x64xf32> to vector<8x64xf32>
    %475 = arith.addf %468, %474 : vector<8x64xf32>
    %476 = vector.extract_strided_slice %473 {offsets = [15, 0], sizes = [8, 64], strides = [1, 1]} : vector<24x64xf32> to vector<8x64xf32>
    %477 = arith.addf %470, %476 : vector<8x64xf32>
    %c21_134 = arith.constant 21 : index
    %c0_135 = arith.constant 0 : index
    %478 = vector.load %arg6[%c21_134, %c0_135] : memref<50x64xf32, #tpu.memory_space<vmem>>, vector<1x64xf32>
    %479 = vector.broadcast %478 : vector<1x64xf32> to vector<24x64xf32>
    %480 = arith.mulf %449, %479 : vector<24x64xf32>
    %481 = vector.extract_strided_slice %480 {offsets = [4, 0], sizes = [8, 64], strides = [1, 1]} : vector<24x64xf32> to vector<8x64xf32>
    %482 = arith.addf %475, %481 : vector<8x64xf32>
    %483 = vector.extract_strided_slice %480 {offsets = [16, 0], sizes = [8, 64], strides = [1, 1]} : vector<24x64xf32> to vector<8x64xf32>
    %484 = arith.addf %477, %483 : vector<8x64xf32>
    %c0_136 = arith.constant 0 : index
    %c16_137 = arith.constant 16 : index
    %485 = vector.load %arg5[%c0_136, %c16_137] : memref<24x96xf32, #tpu.memory_space<vmem>>, vector<24x64xf32>
    %c2_138 = arith.constant 2 : index
    %c0_139 = arith.constant 0 : index
    %486 = vector.load %arg6[%c2_138, %c0_139] : memref<50x64xf32, #tpu.memory_space<vmem>>, vector<1x64xf32>
    %487 = vector.broadcast %486 : vector<1x64xf32> to vector<24x64xf32>
    %488 = arith.mulf %485, %487 : vector<24x64xf32>
    %489 = vector.extract_strided_slice %488 {offsets = [0, 0], sizes = [8, 64], strides = [1, 1]} : vector<24x64xf32> to vector<8x64xf32>
    %490 = arith.addf %482, %489 : vector<8x64xf32>
    %491 = vector.extract_strided_slice %488 {offsets = [12, 0], sizes = [8, 64], strides = [1, 1]} : vector<24x64xf32> to vector<8x64xf32>
    %492 = arith.addf %484, %491 : vector<8x64xf32>
    %c7_140 = arith.constant 7 : index
    %c0_141 = arith.constant 0 : index
    %493 = vector.load %arg6[%c7_140, %c0_141] : memref<50x64xf32, #tpu.memory_space<vmem>>, vector<1x64xf32>
    %494 = vector.broadcast %493 : vector<1x64xf32> to vector<24x64xf32>
    %495 = arith.mulf %485, %494 : vector<24x64xf32>
    %496 = vector.extract_strided_slice %495 {offsets = [1, 0], sizes = [8, 64], strides = [1, 1]} : vector<24x64xf32> to vector<8x64xf32>
    %497 = arith.addf %490, %496 : vector<8x64xf32>
    %498 = vector.extract_strided_slice %495 {offsets = [13, 0], sizes = [8, 64], strides = [1, 1]} : vector<24x64xf32> to vector<8x64xf32>
    %499 = arith.addf %492, %498 : vector<8x64xf32>
    %c12_142 = arith.constant 12 : index
    %c0_143 = arith.constant 0 : index
    %500 = vector.load %arg6[%c12_142, %c0_143] : memref<50x64xf32, #tpu.memory_space<vmem>>, vector<1x64xf32>
    %501 = vector.broadcast %500 : vector<1x64xf32> to vector<24x64xf32>
    %502 = arith.mulf %485, %501 : vector<24x64xf32>
    %503 = vector.extract_strided_slice %502 {offsets = [2, 0], sizes = [8, 64], strides = [1, 1]} : vector<24x64xf32> to vector<8x64xf32>
    %504 = arith.addf %497, %503 : vector<8x64xf32>
    %505 = vector.extract_strided_slice %502 {offsets = [14, 0], sizes = [8, 64], strides = [1, 1]} : vector<24x64xf32> to vector<8x64xf32>
    %506 = arith.addf %499, %505 : vector<8x64xf32>
    %c17_144 = arith.constant 17 : index
    %c0_145 = arith.constant 0 : index
    %507 = vector.load %arg6[%c17_144, %c0_145] : memref<50x64xf32, #tpu.memory_space<vmem>>, vector<1x64xf32>
    %508 = vector.broadcast %507 : vector<1x64xf32> to vector<24x64xf32>
    %509 = arith.mulf %485, %508 : vector<24x64xf32>
    %510 = vector.extract_strided_slice %509 {offsets = [3, 0], sizes = [8, 64], strides = [1, 1]} : vector<24x64xf32> to vector<8x64xf32>
    %511 = arith.addf %504, %510 : vector<8x64xf32>
    %512 = vector.extract_strided_slice %509 {offsets = [15, 0], sizes = [8, 64], strides = [1, 1]} : vector<24x64xf32> to vector<8x64xf32>
    %513 = arith.addf %506, %512 : vector<8x64xf32>
    %c22_146 = arith.constant 22 : index
    %c0_147 = arith.constant 0 : index
    %514 = vector.load %arg6[%c22_146, %c0_147] : memref<50x64xf32, #tpu.memory_space<vmem>>, vector<1x64xf32>
    %515 = vector.broadcast %514 : vector<1x64xf32> to vector<24x64xf32>
    %516 = arith.mulf %485, %515 : vector<24x64xf32>
    %517 = vector.extract_strided_slice %516 {offsets = [4, 0], sizes = [8, 64], strides = [1, 1]} : vector<24x64xf32> to vector<8x64xf32>
    %518 = arith.addf %511, %517 : vector<8x64xf32>
    %519 = vector.extract_strided_slice %516 {offsets = [16, 0], sizes = [8, 64], strides = [1, 1]} : vector<24x64xf32> to vector<8x64xf32>
    %520 = arith.addf %513, %519 : vector<8x64xf32>
    %c0_148 = arith.constant 0 : index
    %c24_149 = arith.constant 24 : index
    %521 = vector.load %arg5[%c0_148, %c24_149] : memref<24x96xf32, #tpu.memory_space<vmem>>, vector<24x64xf32>
    %c3_150 = arith.constant 3 : index
    %c0_151 = arith.constant 0 : index
    %522 = vector.load %arg6[%c3_150, %c0_151] : memref<50x64xf32, #tpu.memory_space<vmem>>, vector<1x64xf32>
    %523 = vector.broadcast %522 : vector<1x64xf32> to vector<24x64xf32>
    %524 = arith.mulf %521, %523 : vector<24x64xf32>
    %525 = vector.extract_strided_slice %524 {offsets = [0, 0], sizes = [8, 64], strides = [1, 1]} : vector<24x64xf32> to vector<8x64xf32>
    %526 = arith.addf %518, %525 : vector<8x64xf32>
    %527 = vector.extract_strided_slice %524 {offsets = [12, 0], sizes = [8, 64], strides = [1, 1]} : vector<24x64xf32> to vector<8x64xf32>
    %528 = arith.addf %520, %527 : vector<8x64xf32>
    %c8_152 = arith.constant 8 : index
    %c0_153 = arith.constant 0 : index
    %529 = vector.load %arg6[%c8_152, %c0_153] : memref<50x64xf32, #tpu.memory_space<vmem>>, vector<1x64xf32>
    %530 = vector.broadcast %529 : vector<1x64xf32> to vector<24x64xf32>
    %531 = arith.mulf %521, %530 : vector<24x64xf32>
    %532 = vector.extract_strided_slice %531 {offsets = [1, 0], sizes = [8, 64], strides = [1, 1]} : vector<24x64xf32> to vector<8x64xf32>
    %533 = arith.addf %526, %532 : vector<8x64xf32>
    %534 = vector.extract_strided_slice %531 {offsets = [13, 0], sizes = [8, 64], strides = [1, 1]} : vector<24x64xf32> to vector<8x64xf32>
    %535 = arith.addf %528, %534 : vector<8x64xf32>
    %c13_154 = arith.constant 13 : index
    %c0_155 = arith.constant 0 : index
    %536 = vector.load %arg6[%c13_154, %c0_155] : memref<50x64xf32, #tpu.memory_space<vmem>>, vector<1x64xf32>
    %537 = vector.broadcast %536 : vector<1x64xf32> to vector<24x64xf32>
    %538 = arith.mulf %521, %537 : vector<24x64xf32>
    %539 = vector.extract_strided_slice %538 {offsets = [2, 0], sizes = [8, 64], strides = [1, 1]} : vector<24x64xf32> to vector<8x64xf32>
    %540 = arith.addf %533, %539 : vector<8x64xf32>
    %541 = vector.extract_strided_slice %538 {offsets = [14, 0], sizes = [8, 64], strides = [1, 1]} : vector<24x64xf32> to vector<8x64xf32>
    %542 = arith.addf %535, %541 : vector<8x64xf32>
    %c18_156 = arith.constant 18 : index
    %c0_157 = arith.constant 0 : index
    %543 = vector.load %arg6[%c18_156, %c0_157] : memref<50x64xf32, #tpu.memory_space<vmem>>, vector<1x64xf32>
    %544 = vector.broadcast %543 : vector<1x64xf32> to vector<24x64xf32>
    %545 = arith.mulf %521, %544 : vector<24x64xf32>
    %546 = vector.extract_strided_slice %545 {offsets = [3, 0], sizes = [8, 64], strides = [1, 1]} : vector<24x64xf32> to vector<8x64xf32>
    %547 = arith.addf %540, %546 : vector<8x64xf32>
    %548 = vector.extract_strided_slice %545 {offsets = [15, 0], sizes = [8, 64], strides = [1, 1]} : vector<24x64xf32> to vector<8x64xf32>
    %549 = arith.addf %542, %548 : vector<8x64xf32>
    %c23_158 = arith.constant 23 : index
    %c0_159 = arith.constant 0 : index
    %550 = vector.load %arg6[%c23_158, %c0_159] : memref<50x64xf32, #tpu.memory_space<vmem>>, vector<1x64xf32>
    %551 = vector.broadcast %550 : vector<1x64xf32> to vector<24x64xf32>
    %552 = arith.mulf %521, %551 : vector<24x64xf32>
    %553 = vector.extract_strided_slice %552 {offsets = [4, 0], sizes = [8, 64], strides = [1, 1]} : vector<24x64xf32> to vector<8x64xf32>
    %554 = arith.addf %547, %553 : vector<8x64xf32>
    %555 = vector.extract_strided_slice %552 {offsets = [16, 0], sizes = [8, 64], strides = [1, 1]} : vector<24x64xf32> to vector<8x64xf32>
    %556 = arith.addf %549, %555 : vector<8x64xf32>
    %c0_160 = arith.constant 0 : index
    %c32_161 = arith.constant 32 : index
    %557 = vector.load %arg5[%c0_160, %c32_161] : memref<24x96xf32, #tpu.memory_space<vmem>>, vector<24x64xf32>
    %c4_162 = arith.constant 4 : index
    %c0_163 = arith.constant 0 : index
    %558 = vector.load %arg6[%c4_162, %c0_163] : memref<50x64xf32, #tpu.memory_space<vmem>>, vector<1x64xf32>
    %559 = vector.broadcast %558 : vector<1x64xf32> to vector<24x64xf32>
    %560 = arith.mulf %557, %559 : vector<24x64xf32>
    %561 = vector.extract_strided_slice %560 {offsets = [0, 0], sizes = [8, 64], strides = [1, 1]} : vector<24x64xf32> to vector<8x64xf32>
    %562 = arith.addf %554, %561 : vector<8x64xf32>
    %563 = vector.extract_strided_slice %560 {offsets = [12, 0], sizes = [8, 64], strides = [1, 1]} : vector<24x64xf32> to vector<8x64xf32>
    %564 = arith.addf %556, %563 : vector<8x64xf32>
    %c9_164 = arith.constant 9 : index
    %c0_165 = arith.constant 0 : index
    %565 = vector.load %arg6[%c9_164, %c0_165] : memref<50x64xf32, #tpu.memory_space<vmem>>, vector<1x64xf32>
    %566 = vector.broadcast %565 : vector<1x64xf32> to vector<24x64xf32>
    %567 = arith.mulf %557, %566 : vector<24x64xf32>
    %568 = vector.extract_strided_slice %567 {offsets = [1, 0], sizes = [8, 64], strides = [1, 1]} : vector<24x64xf32> to vector<8x64xf32>
    %569 = arith.addf %562, %568 : vector<8x64xf32>
    %570 = vector.extract_strided_slice %567 {offsets = [13, 0], sizes = [8, 64], strides = [1, 1]} : vector<24x64xf32> to vector<8x64xf32>
    %571 = arith.addf %564, %570 : vector<8x64xf32>
    %c14_166 = arith.constant 14 : index
    %c0_167 = arith.constant 0 : index
    %572 = vector.load %arg6[%c14_166, %c0_167] : memref<50x64xf32, #tpu.memory_space<vmem>>, vector<1x64xf32>
    %573 = vector.broadcast %572 : vector<1x64xf32> to vector<24x64xf32>
    %574 = arith.mulf %557, %573 : vector<24x64xf32>
    %575 = vector.extract_strided_slice %574 {offsets = [2, 0], sizes = [8, 64], strides = [1, 1]} : vector<24x64xf32> to vector<8x64xf32>
    %576 = arith.addf %569, %575 : vector<8x64xf32>
    %577 = vector.extract_strided_slice %574 {offsets = [14, 0], sizes = [8, 64], strides = [1, 1]} : vector<24x64xf32> to vector<8x64xf32>
    %578 = arith.addf %571, %577 : vector<8x64xf32>
    %c19_168 = arith.constant 19 : index
    %c0_169 = arith.constant 0 : index
    %579 = vector.load %arg6[%c19_168, %c0_169] : memref<50x64xf32, #tpu.memory_space<vmem>>, vector<1x64xf32>
    %580 = vector.broadcast %579 : vector<1x64xf32> to vector<24x64xf32>
    %581 = arith.mulf %557, %580 : vector<24x64xf32>
    %582 = vector.extract_strided_slice %581 {offsets = [3, 0], sizes = [8, 64], strides = [1, 1]} : vector<24x64xf32> to vector<8x64xf32>
    %583 = arith.addf %576, %582 : vector<8x64xf32>
    %584 = vector.extract_strided_slice %581 {offsets = [15, 0], sizes = [8, 64], strides = [1, 1]} : vector<24x64xf32> to vector<8x64xf32>
    %585 = arith.addf %578, %584 : vector<8x64xf32>
    %c24_170 = arith.constant 24 : index
    %c0_171 = arith.constant 0 : index
    %586 = vector.load %arg6[%c24_170, %c0_171] : memref<50x64xf32, #tpu.memory_space<vmem>>, vector<1x64xf32>
    %587 = vector.broadcast %586 : vector<1x64xf32> to vector<24x64xf32>
    %588 = arith.mulf %557, %587 : vector<24x64xf32>
    %589 = vector.extract_strided_slice %588 {offsets = [4, 0], sizes = [8, 64], strides = [1, 1]} : vector<24x64xf32> to vector<8x64xf32>
    %590 = arith.addf %583, %589 : vector<8x64xf32>
    %591 = vector.extract_strided_slice %588 {offsets = [16, 0], sizes = [8, 64], strides = [1, 1]} : vector<24x64xf32> to vector<8x64xf32>
    %592 = arith.addf %585, %591 : vector<8x64xf32>
    %cst_172 = arith.constant 0.000000e+00 : f32
    %593 = vector.broadcast %cst_172 : f32 to vector<8x64xf32>
    %594 = arith.maximumf %590, %593 : vector<8x64xf32>
    %cst_173 = arith.constant 0.000000e+00 : f32
    %595 = vector.broadcast %cst_173 : f32 to vector<8x64xf32>
    %596 = arith.maximumf %592, %595 : vector<8x64xf32>
    %597 = tpu.concatenate %594, %596 in 0 : vector<8x64xf32>, vector<8x64xf32> -> vector<16x64xf32>
    %c0_174 = arith.constant 0 : index
    %c0_175 = arith.constant 0 : index
    %598 = vector.load %arg7[%c0_174, %c0_175] : memref<64x384xf32, #tpu.memory_space<vmem>>, vector<64x64xf32>
    %cst_176 = arith.constant dense<0.000000e+00> : vector<16x64xf32>
    %599 = tpu.matmul %597, %598, %cst_176 {dimension_numbers = #tpu.dot_dimension_numbers<[1], [0], [0], [1], [0, 0, 1, 1], [], []>} : vector<16x64xf32>, vector<64x64xf32>, vector<16x64xf32> -> vector<16x64xf32>
    %600 = vector.broadcast %405 : vector<1x64xf32> to vector<16x64xf32>
    %601 = arith.addf %599, %600 : vector<16x64xf32>
    %602 = vector.extract_strided_slice %601 {offsets = [0, 0], sizes = [8, 64], strides = [1, 1]} : vector<16x64xf32> to vector<8x64xf32>
    %c2_177 = arith.constant 2 : index
    %c16_178 = arith.constant 16 : index
    %603 = vector.load %arg12[%c2_177, %c16_178] : memref<24x96xf32, #tpu.memory_space<vmem>>, vector<8x64xf32>
    tpu.vector_store %arg12[%c2_177, %c16_178], %602 {strides = array<i32>} : memref<24x96xf32, #tpu.memory_space<vmem>>, vector<8x64xf32>,
    %604 = vector.extract_strided_slice %601 {offsets = [8, 0], sizes = [8, 64], strides = [1, 1]} : vector<16x64xf32> to vector<8x64xf32>
    %c14_179 = arith.constant 14 : index
    %c16_180 = arith.constant 16 : index
    %605 = vector.load %arg12[%c14_179, %c16_180] : memref<24x96xf32, #tpu.memory_space<vmem>>, vector<8x64xf32>
    tpu.vector_store %arg12[%c14_179, %c16_180], %604 {strides = array<i32>} : memref<24x96xf32, #tpu.memory_space<vmem>>, vector<8x64xf32>,
    %606 = vector.shape_cast %406 : vector<1x64xf32> to vector<1x64xf32>
    %607 = vector.broadcast %606 : vector<1x64xf32> to vector<8x64xf32>
    %608 = vector.shape_cast %406 : vector<1x64xf32> to vector<1x64xf32>
    %609 = vector.broadcast %608 : vector<1x64xf32> to vector<8x64xf32>
    %c0_181 = arith.constant 0 : index
    %c0_182 = arith.constant 0 : index
    %610 = vector.load %arg12[%c0_181, %c0_182] : memref<24x96xf32, #tpu.memory_space<vmem>>, vector<24x64xf32>
    %c25_183 = arith.constant 25 : index
    %c0_184 = arith.constant 0 : index
    %611 = vector.load %arg6[%c25_183, %c0_184] : memref<50x64xf32, #tpu.memory_space<vmem>>, vector<1x64xf32>
    %612 = vector.broadcast %611 : vector<1x64xf32> to vector<24x64xf32>
    %613 = arith.mulf %610, %612 : vector<24x64xf32>
    %614 = vector.extract_strided_slice %613 {offsets = [0, 0], sizes = [8, 64], strides = [1, 1]} : vector<24x64xf32> to vector<8x64xf32>
    %615 = arith.addf %607, %614 : vector<8x64xf32>
    %616 = vector.extract_strided_slice %613 {offsets = [12, 0], sizes = [8, 64], strides = [1, 1]} : vector<24x64xf32> to vector<8x64xf32>
    %617 = arith.addf %609, %616 : vector<8x64xf32>
    %c30_185 = arith.constant 30 : index
    %c0_186 = arith.constant 0 : index
    %618 = vector.load %arg6[%c30_185, %c0_186] : memref<50x64xf32, #tpu.memory_space<vmem>>, vector<1x64xf32>
    %619 = vector.broadcast %618 : vector<1x64xf32> to vector<24x64xf32>
    %620 = arith.mulf %610, %619 : vector<24x64xf32>
    %621 = vector.extract_strided_slice %620 {offsets = [1, 0], sizes = [8, 64], strides = [1, 1]} : vector<24x64xf32> to vector<8x64xf32>
    %622 = arith.addf %615, %621 : vector<8x64xf32>
    %623 = vector.extract_strided_slice %620 {offsets = [13, 0], sizes = [8, 64], strides = [1, 1]} : vector<24x64xf32> to vector<8x64xf32>
    %624 = arith.addf %617, %623 : vector<8x64xf32>
    %c35_187 = arith.constant 35 : index
    %c0_188 = arith.constant 0 : index
    %625 = vector.load %arg6[%c35_187, %c0_188] : memref<50x64xf32, #tpu.memory_space<vmem>>, vector<1x64xf32>
    %626 = vector.broadcast %625 : vector<1x64xf32> to vector<24x64xf32>
    %627 = arith.mulf %610, %626 : vector<24x64xf32>
    %628 = vector.extract_strided_slice %627 {offsets = [2, 0], sizes = [8, 64], strides = [1, 1]} : vector<24x64xf32> to vector<8x64xf32>
    %629 = arith.addf %622, %628 : vector<8x64xf32>
    %630 = vector.extract_strided_slice %627 {offsets = [14, 0], sizes = [8, 64], strides = [1, 1]} : vector<24x64xf32> to vector<8x64xf32>
    %631 = arith.addf %624, %630 : vector<8x64xf32>
    %c40_189 = arith.constant 40 : index
    %c0_190 = arith.constant 0 : index
    %632 = vector.load %arg6[%c40_189, %c0_190] : memref<50x64xf32, #tpu.memory_space<vmem>>, vector<1x64xf32>
    %633 = vector.broadcast %632 : vector<1x64xf32> to vector<24x64xf32>
    %634 = arith.mulf %610, %633 : vector<24x64xf32>
    %635 = vector.extract_strided_slice %634 {offsets = [3, 0], sizes = [8, 64], strides = [1, 1]} : vector<24x64xf32> to vector<8x64xf32>
    %636 = arith.addf %629, %635 : vector<8x64xf32>
    %637 = vector.extract_strided_slice %634 {offsets = [15, 0], sizes = [8, 64], strides = [1, 1]} : vector<24x64xf32> to vector<8x64xf32>
    %638 = arith.addf %631, %637 : vector<8x64xf32>
    %c45_191 = arith.constant 45 : index
    %c0_192 = arith.constant 0 : index
    %639 = vector.load %arg6[%c45_191, %c0_192] : memref<50x64xf32, #tpu.memory_space<vmem>>, vector<1x64xf32>
    %640 = vector.broadcast %639 : vector<1x64xf32> to vector<24x64xf32>
    %641 = arith.mulf %610, %640 : vector<24x64xf32>
    %642 = vector.extract_strided_slice %641 {offsets = [4, 0], sizes = [8, 64], strides = [1, 1]} : vector<24x64xf32> to vector<8x64xf32>
    %643 = arith.addf %636, %642 : vector<8x64xf32>
    %644 = vector.extract_strided_slice %641 {offsets = [16, 0], sizes = [8, 64], strides = [1, 1]} : vector<24x64xf32> to vector<8x64xf32>
    %645 = arith.addf %638, %644 : vector<8x64xf32>
    %c0_193 = arith.constant 0 : index
    %c8_194 = arith.constant 8 : index
    %646 = vector.load %arg12[%c0_193, %c8_194] : memref<24x96xf32, #tpu.memory_space<vmem>>, vector<24x64xf32>
    %c26_195 = arith.constant 26 : index
    %c0_196 = arith.constant 0 : index
    %647 = vector.load %arg6[%c26_195, %c0_196] : memref<50x64xf32, #tpu.memory_space<vmem>>, vector<1x64xf32>
    %648 = vector.broadcast %647 : vector<1x64xf32> to vector<24x64xf32>
    %649 = arith.mulf %646, %648 : vector<24x64xf32>
    %650 = vector.extract_strided_slice %649 {offsets = [0, 0], sizes = [8, 64], strides = [1, 1]} : vector<24x64xf32> to vector<8x64xf32>
    %651 = arith.addf %643, %650 : vector<8x64xf32>
    %652 = vector.extract_strided_slice %649 {offsets = [12, 0], sizes = [8, 64], strides = [1, 1]} : vector<24x64xf32> to vector<8x64xf32>
    %653 = arith.addf %645, %652 : vector<8x64xf32>
    %c31_197 = arith.constant 31 : index
    %c0_198 = arith.constant 0 : index
    %654 = vector.load %arg6[%c31_197, %c0_198] : memref<50x64xf32, #tpu.memory_space<vmem>>, vector<1x64xf32>
    %655 = vector.broadcast %654 : vector<1x64xf32> to vector<24x64xf32>
    %656 = arith.mulf %646, %655 : vector<24x64xf32>
    %657 = vector.extract_strided_slice %656 {offsets = [1, 0], sizes = [8, 64], strides = [1, 1]} : vector<24x64xf32> to vector<8x64xf32>
    %658 = arith.addf %651, %657 : vector<8x64xf32>
    %659 = vector.extract_strided_slice %656 {offsets = [13, 0], sizes = [8, 64], strides = [1, 1]} : vector<24x64xf32> to vector<8x64xf32>
    %660 = arith.addf %653, %659 : vector<8x64xf32>
    %c36_199 = arith.constant 36 : index
    %c0_200 = arith.constant 0 : index
    %661 = vector.load %arg6[%c36_199, %c0_200] : memref<50x64xf32, #tpu.memory_space<vmem>>, vector<1x64xf32>
    %662 = vector.broadcast %661 : vector<1x64xf32> to vector<24x64xf32>
    %663 = arith.mulf %646, %662 : vector<24x64xf32>
    %664 = vector.extract_strided_slice %663 {offsets = [2, 0], sizes = [8, 64], strides = [1, 1]} : vector<24x64xf32> to vector<8x64xf32>
    %665 = arith.addf %658, %664 : vector<8x64xf32>
    %666 = vector.extract_strided_slice %663 {offsets = [14, 0], sizes = [8, 64], strides = [1, 1]} : vector<24x64xf32> to vector<8x64xf32>
    %667 = arith.addf %660, %666 : vector<8x64xf32>
    %c41_201 = arith.constant 41 : index
    %c0_202 = arith.constant 0 : index
    %668 = vector.load %arg6[%c41_201, %c0_202] : memref<50x64xf32, #tpu.memory_space<vmem>>, vector<1x64xf32>
    %669 = vector.broadcast %668 : vector<1x64xf32> to vector<24x64xf32>
    %670 = arith.mulf %646, %669 : vector<24x64xf32>
    %671 = vector.extract_strided_slice %670 {offsets = [3, 0], sizes = [8, 64], strides = [1, 1]} : vector<24x64xf32> to vector<8x64xf32>
    %672 = arith.addf %665, %671 : vector<8x64xf32>
    %673 = vector.extract_strided_slice %670 {offsets = [15, 0], sizes = [8, 64], strides = [1, 1]} : vector<24x64xf32> to vector<8x64xf32>
    %674 = arith.addf %667, %673 : vector<8x64xf32>
    %c46_203 = arith.constant 46 : index
    %c0_204 = arith.constant 0 : index
    %675 = vector.load %arg6[%c46_203, %c0_204] : memref<50x64xf32, #tpu.memory_space<vmem>>, vector<1x64xf32>
    %676 = vector.broadcast %675 : vector<1x64xf32> to vector<24x64xf32>
    %677 = arith.mulf %646, %676 : vector<24x64xf32>
    %678 = vector.extract_strided_slice %677 {offsets = [4, 0], sizes = [8, 64], strides = [1, 1]} : vector<24x64xf32> to vector<8x64xf32>
    %679 = arith.addf %672, %678 : vector<8x64xf32>
    %680 = vector.extract_strided_slice %677 {offsets = [16, 0], sizes = [8, 64], strides = [1, 1]} : vector<24x64xf32> to vector<8x64xf32>
    %681 = arith.addf %674, %680 : vector<8x64xf32>
    %c0_205 = arith.constant 0 : index
    %c16_206 = arith.constant 16 : index
    %682 = vector.load %arg12[%c0_205, %c16_206] : memref<24x96xf32, #tpu.memory_space<vmem>>, vector<24x64xf32>
    %c27_207 = arith.constant 27 : index
    %c0_208 = arith.constant 0 : index
    %683 = vector.load %arg6[%c27_207, %c0_208] : memref<50x64xf32, #tpu.memory_space<vmem>>, vector<1x64xf32>
    %684 = vector.broadcast %683 : vector<1x64xf32> to vector<24x64xf32>
    %685 = arith.mulf %682, %684 : vector<24x64xf32>
    %686 = vector.extract_strided_slice %685 {offsets = [0, 0], sizes = [8, 64], strides = [1, 1]} : vector<24x64xf32> to vector<8x64xf32>
    %687 = arith.addf %679, %686 : vector<8x64xf32>
    %688 = vector.extract_strided_slice %685 {offsets = [12, 0], sizes = [8, 64], strides = [1, 1]} : vector<24x64xf32> to vector<8x64xf32>
    %689 = arith.addf %681, %688 : vector<8x64xf32>
    %c32_209 = arith.constant 32 : index
    %c0_210 = arith.constant 0 : index
    %690 = vector.load %arg6[%c32_209, %c0_210] : memref<50x64xf32, #tpu.memory_space<vmem>>, vector<1x64xf32>
    %691 = vector.broadcast %690 : vector<1x64xf32> to vector<24x64xf32>
    %692 = arith.mulf %682, %691 : vector<24x64xf32>
    %693 = vector.extract_strided_slice %692 {offsets = [1, 0], sizes = [8, 64], strides = [1, 1]} : vector<24x64xf32> to vector<8x64xf32>
    %694 = arith.addf %687, %693 : vector<8x64xf32>
    %695 = vector.extract_strided_slice %692 {offsets = [13, 0], sizes = [8, 64], strides = [1, 1]} : vector<24x64xf32> to vector<8x64xf32>
    %696 = arith.addf %689, %695 : vector<8x64xf32>
    %c37_211 = arith.constant 37 : index
    %c0_212 = arith.constant 0 : index
    %697 = vector.load %arg6[%c37_211, %c0_212] : memref<50x64xf32, #tpu.memory_space<vmem>>, vector<1x64xf32>
    %698 = vector.broadcast %697 : vector<1x64xf32> to vector<24x64xf32>
    %699 = arith.mulf %682, %698 : vector<24x64xf32>
    %700 = vector.extract_strided_slice %699 {offsets = [2, 0], sizes = [8, 64], strides = [1, 1]} : vector<24x64xf32> to vector<8x64xf32>
    %701 = arith.addf %694, %700 : vector<8x64xf32>
    %702 = vector.extract_strided_slice %699 {offsets = [14, 0], sizes = [8, 64], strides = [1, 1]} : vector<24x64xf32> to vector<8x64xf32>
    %703 = arith.addf %696, %702 : vector<8x64xf32>
    %c42_213 = arith.constant 42 : index
    %c0_214 = arith.constant 0 : index
    %704 = vector.load %arg6[%c42_213, %c0_214] : memref<50x64xf32, #tpu.memory_space<vmem>>, vector<1x64xf32>
    %705 = vector.broadcast %704 : vector<1x64xf32> to vector<24x64xf32>
    %706 = arith.mulf %682, %705 : vector<24x64xf32>
    %707 = vector.extract_strided_slice %706 {offsets = [3, 0], sizes = [8, 64], strides = [1, 1]} : vector<24x64xf32> to vector<8x64xf32>
    %708 = arith.addf %701, %707 : vector<8x64xf32>
    %709 = vector.extract_strided_slice %706 {offsets = [15, 0], sizes = [8, 64], strides = [1, 1]} : vector<24x64xf32> to vector<8x64xf32>
    %710 = arith.addf %703, %709 : vector<8x64xf32>
    %c47_215 = arith.constant 47 : index
    %c0_216 = arith.constant 0 : index
    %711 = vector.load %arg6[%c47_215, %c0_216] : memref<50x64xf32, #tpu.memory_space<vmem>>, vector<1x64xf32>
    %712 = vector.broadcast %711 : vector<1x64xf32> to vector<24x64xf32>
    %713 = arith.mulf %682, %712 : vector<24x64xf32>
    %714 = vector.extract_strided_slice %713 {offsets = [4, 0], sizes = [8, 64], strides = [1, 1]} : vector<24x64xf32> to vector<8x64xf32>
    %715 = arith.addf %708, %714 : vector<8x64xf32>
    %716 = vector.extract_strided_slice %713 {offsets = [16, 0], sizes = [8, 64], strides = [1, 1]} : vector<24x64xf32> to vector<8x64xf32>
    %717 = arith.addf %710, %716 : vector<8x64xf32>
    %c0_217 = arith.constant 0 : index
    %c24_218 = arith.constant 24 : index
    %718 = vector.load %arg12[%c0_217, %c24_218] : memref<24x96xf32, #tpu.memory_space<vmem>>, vector<24x64xf32>
    %c28_219 = arith.constant 28 : index
    %c0_220 = arith.constant 0 : index
    %719 = vector.load %arg6[%c28_219, %c0_220] : memref<50x64xf32, #tpu.memory_space<vmem>>, vector<1x64xf32>
    %720 = vector.broadcast %719 : vector<1x64xf32> to vector<24x64xf32>
    %721 = arith.mulf %718, %720 : vector<24x64xf32>
    %722 = vector.extract_strided_slice %721 {offsets = [0, 0], sizes = [8, 64], strides = [1, 1]} : vector<24x64xf32> to vector<8x64xf32>
    %723 = arith.addf %715, %722 : vector<8x64xf32>
    %724 = vector.extract_strided_slice %721 {offsets = [12, 0], sizes = [8, 64], strides = [1, 1]} : vector<24x64xf32> to vector<8x64xf32>
    %725 = arith.addf %717, %724 : vector<8x64xf32>
    %c33_221 = arith.constant 33 : index
    %c0_222 = arith.constant 0 : index
    %726 = vector.load %arg6[%c33_221, %c0_222] : memref<50x64xf32, #tpu.memory_space<vmem>>, vector<1x64xf32>
    %727 = vector.broadcast %726 : vector<1x64xf32> to vector<24x64xf32>
    %728 = arith.mulf %718, %727 : vector<24x64xf32>
    %729 = vector.extract_strided_slice %728 {offsets = [1, 0], sizes = [8, 64], strides = [1, 1]} : vector<24x64xf32> to vector<8x64xf32>
    %730 = arith.addf %723, %729 : vector<8x64xf32>
    %731 = vector.extract_strided_slice %728 {offsets = [13, 0], sizes = [8, 64], strides = [1, 1]} : vector<24x64xf32> to vector<8x64xf32>
    %732 = arith.addf %725, %731 : vector<8x64xf32>
    %c38_223 = arith.constant 38 : index
    %c0_224 = arith.constant 0 : index
    %733 = vector.load %arg6[%c38_223, %c0_224] : memref<50x64xf32, #tpu.memory_space<vmem>>, vector<1x64xf32>
    %734 = vector.broadcast %733 : vector<1x64xf32> to vector<24x64xf32>
    %735 = arith.mulf %718, %734 : vector<24x64xf32>
    %736 = vector.extract_strided_slice %735 {offsets = [2, 0], sizes = [8, 64], strides = [1, 1]} : vector<24x64xf32> to vector<8x64xf32>
    %737 = arith.addf %730, %736 : vector<8x64xf32>
    %738 = vector.extract_strided_slice %735 {offsets = [14, 0], sizes = [8, 64], strides = [1, 1]} : vector<24x64xf32> to vector<8x64xf32>
    %739 = arith.addf %732, %738 : vector<8x64xf32>
    %c43_225 = arith.constant 43 : index
    %c0_226 = arith.constant 0 : index
    %740 = vector.load %arg6[%c43_225, %c0_226] : memref<50x64xf32, #tpu.memory_space<vmem>>, vector<1x64xf32>
    %741 = vector.broadcast %740 : vector<1x64xf32> to vector<24x64xf32>
    %742 = arith.mulf %718, %741 : vector<24x64xf32>
    %743 = vector.extract_strided_slice %742 {offsets = [3, 0], sizes = [8, 64], strides = [1, 1]} : vector<24x64xf32> to vector<8x64xf32>
    %744 = arith.addf %737, %743 : vector<8x64xf32>
    %745 = vector.extract_strided_slice %742 {offsets = [15, 0], sizes = [8, 64], strides = [1, 1]} : vector<24x64xf32> to vector<8x64xf32>
    %746 = arith.addf %739, %745 : vector<8x64xf32>
    %c48_227 = arith.constant 48 : index
    %c0_228 = arith.constant 0 : index
    %747 = vector.load %arg6[%c48_227, %c0_228] : memref<50x64xf32, #tpu.memory_space<vmem>>, vector<1x64xf32>
    %748 = vector.broadcast %747 : vector<1x64xf32> to vector<24x64xf32>
    %749 = arith.mulf %718, %748 : vector<24x64xf32>
    %750 = vector.extract_strided_slice %749 {offsets = [4, 0], sizes = [8, 64], strides = [1, 1]} : vector<24x64xf32> to vector<8x64xf32>
    %751 = arith.addf %744, %750 : vector<8x64xf32>
    %752 = vector.extract_strided_slice %749 {offsets = [16, 0], sizes = [8, 64], strides = [1, 1]} : vector<24x64xf32> to vector<8x64xf32>
    %753 = arith.addf %746, %752 : vector<8x64xf32>
    %c0_229 = arith.constant 0 : index
    %c32_230 = arith.constant 32 : index
    %754 = vector.load %arg12[%c0_229, %c32_230] : memref<24x96xf32, #tpu.memory_space<vmem>>, vector<24x64xf32>
    %c29_231 = arith.constant 29 : index
    %c0_232 = arith.constant 0 : index
    %755 = vector.load %arg6[%c29_231, %c0_232] : memref<50x64xf32, #tpu.memory_space<vmem>>, vector<1x64xf32>
    %756 = vector.broadcast %755 : vector<1x64xf32> to vector<24x64xf32>
    %757 = arith.mulf %754, %756 : vector<24x64xf32>
    %758 = vector.extract_strided_slice %757 {offsets = [0, 0], sizes = [8, 64], strides = [1, 1]} : vector<24x64xf32> to vector<8x64xf32>
    %759 = arith.addf %751, %758 : vector<8x64xf32>
    %760 = vector.extract_strided_slice %757 {offsets = [12, 0], sizes = [8, 64], strides = [1, 1]} : vector<24x64xf32> to vector<8x64xf32>
    %761 = arith.addf %753, %760 : vector<8x64xf32>
    %c34_233 = arith.constant 34 : index
    %c0_234 = arith.constant 0 : index
    %762 = vector.load %arg6[%c34_233, %c0_234] : memref<50x64xf32, #tpu.memory_space<vmem>>, vector<1x64xf32>
    %763 = vector.broadcast %762 : vector<1x64xf32> to vector<24x64xf32>
    %764 = arith.mulf %754, %763 : vector<24x64xf32>
    %765 = vector.extract_strided_slice %764 {offsets = [1, 0], sizes = [8, 64], strides = [1, 1]} : vector<24x64xf32> to vector<8x64xf32>
    %766 = arith.addf %759, %765 : vector<8x64xf32>
    %767 = vector.extract_strided_slice %764 {offsets = [13, 0], sizes = [8, 64], strides = [1, 1]} : vector<24x64xf32> to vector<8x64xf32>
    %768 = arith.addf %761, %767 : vector<8x64xf32>
    %c39_235 = arith.constant 39 : index
    %c0_236 = arith.constant 0 : index
    %769 = vector.load %arg6[%c39_235, %c0_236] : memref<50x64xf32, #tpu.memory_space<vmem>>, vector<1x64xf32>
    %770 = vector.broadcast %769 : vector<1x64xf32> to vector<24x64xf32>
    %771 = arith.mulf %754, %770 : vector<24x64xf32>
    %772 = vector.extract_strided_slice %771 {offsets = [2, 0], sizes = [8, 64], strides = [1, 1]} : vector<24x64xf32> to vector<8x64xf32>
    %773 = arith.addf %766, %772 : vector<8x64xf32>
    %774 = vector.extract_strided_slice %771 {offsets = [14, 0], sizes = [8, 64], strides = [1, 1]} : vector<24x64xf32> to vector<8x64xf32>
    %775 = arith.addf %768, %774 : vector<8x64xf32>
    %c44_237 = arith.constant 44 : index
    %c0_238 = arith.constant 0 : index
    %776 = vector.load %arg6[%c44_237, %c0_238] : memref<50x64xf32, #tpu.memory_space<vmem>>, vector<1x64xf32>
    %777 = vector.broadcast %776 : vector<1x64xf32> to vector<24x64xf32>
    %778 = arith.mulf %754, %777 : vector<24x64xf32>
    %779 = vector.extract_strided_slice %778 {offsets = [3, 0], sizes = [8, 64], strides = [1, 1]} : vector<24x64xf32> to vector<8x64xf32>
    %780 = arith.addf %773, %779 : vector<8x64xf32>
    %781 = vector.extract_strided_slice %778 {offsets = [15, 0], sizes = [8, 64], strides = [1, 1]} : vector<24x64xf32> to vector<8x64xf32>
    %782 = arith.addf %775, %781 : vector<8x64xf32>
    %c49_239 = arith.constant 49 : index
    %c0_240 = arith.constant 0 : index
    %783 = vector.load %arg6[%c49_239, %c0_240] : memref<50x64xf32, #tpu.memory_space<vmem>>, vector<1x64xf32>
    %784 = vector.broadcast %783 : vector<1x64xf32> to vector<24x64xf32>
    %785 = arith.mulf %754, %784 : vector<24x64xf32>
    %786 = vector.extract_strided_slice %785 {offsets = [4, 0], sizes = [8, 64], strides = [1, 1]} : vector<24x64xf32> to vector<8x64xf32>
    %787 = arith.addf %780, %786 : vector<8x64xf32>
    %788 = vector.extract_strided_slice %785 {offsets = [16, 0], sizes = [8, 64], strides = [1, 1]} : vector<24x64xf32> to vector<8x64xf32>
    %789 = arith.addf %782, %788 : vector<8x64xf32>
    %cst_241 = arith.constant 0.000000e+00 : f32
    %790 = vector.broadcast %cst_241 : f32 to vector<8x64xf32>
    %791 = arith.maximumf %787, %790 : vector<8x64xf32>
    %cst_242 = arith.constant 0.000000e+00 : f32
    %792 = vector.broadcast %cst_242 : f32 to vector<8x64xf32>
    %793 = arith.maximumf %789, %792 : vector<8x64xf32>
    %794 = tpu.concatenate %791, %793 in 0 : vector<8x64xf32>, vector<8x64xf32> -> vector<16x64xf32>
    %c0_243 = arith.constant 0 : index
    %c128_244 = arith.constant 128 : index
    %795 = vector.load %arg7[%c0_243, %c128_244] : memref<64x384xf32, #tpu.memory_space<vmem>>, vector<64x64xf32>
    %cst_245 = arith.constant dense<0.000000e+00> : vector<16x64xf32>
    %796 = tpu.matmul %794, %795, %cst_245 {dimension_numbers = #tpu.dot_dimension_numbers<[1], [0], [0], [1], [0, 0, 1, 1], [], []>} : vector<16x64xf32>, vector<64x64xf32>, vector<16x64xf32> -> vector<16x64xf32>
    %797 = vector.broadcast %407 : vector<1x64xf32> to vector<16x64xf32>
    %798 = arith.addf %796, %797 : vector<16x64xf32>
    %c0_246 = arith.constant 0 : index
    %c256_247 = arith.constant 256 : index
    %799 = vector.load %arg7[%c0_246, %c256_247] : memref<64x384xf32, #tpu.memory_space<vmem>>, vector<64x128xf32>
    %cst_248 = arith.constant dense<0.000000e+00> : vector<16x128xf32>
    %800 = tpu.matmul %798, %799, %cst_248 {dimension_numbers = #tpu.dot_dimension_numbers<[1], [0], [0], [1], [0, 0, 1, 1], [], []>} : vector<16x64xf32>, vector<64x128xf32>, vector<16x128xf32> -> vector<16x128xf32>
    %801 = vector.broadcast %408 : vector<1x128xf32> to vector<16x128xf32>
    %802 = arith.addf %800, %801 : vector<16x128xf32>
    %c0_249 = arith.constant 0 : index
    %c0_250 = arith.constant 0 : index
    %803 = vector.load %arg10[%c0_249, %c0_250] : memref<16x128xf32, #tpu.memory_space<vmem>>, vector<16x128xf32>
    tpu.vector_store %arg10[%c0_249, %c0_250], %802 {strides = array<i32>} : memref<16x128xf32, #tpu.memory_space<vmem>>, vector<16x128xf32>,
    return
  }
  func.func @transform_0(%arg0: i32) -> (i32, i32) {
    %c0_i32 = arith.constant 0 : i32
    %c0_i32_0 = arith.constant 0 : i32
    %c0_i32_1 = arith.constant 0 : i32
    return %c0_i32, %c0_i32_0 : i32, i32
  }
  func.func @transform_1(%arg0: i32) -> (i32, i32) {
    %c0_i32 = arith.constant 0 : i32
    %c0_i32_0 = arith.constant 0 : i32
    %c0_i32_1 = arith.constant 0 : i32
    return %c0_i32, %c0_i32_0 : i32, i32
  }
  func.func @transform_2(%arg0: i32) -> (i32, i32) {
    %c0_i32 = arith.constant 0 : i32
    %c0_i32_0 = arith.constant 0 : i32
    %c0_i32_1 = arith.constant 0 : i32
    return %c0_i32, %c0_i32_0 : i32, i32
  }
  func.func @transform_3(%arg0: i32) -> (i32, i32) {
    %c0_i32 = arith.constant 0 : i32
    %c0_i32_0 = arith.constant 0 : i32
    %c0_i32_1 = arith.constant 0 : i32
    return %c0_i32, %c0_i32_0 : i32, i32
  }
  func.func @transform_4(%arg0: i32) -> (i32, i32) {
    %c0_i32 = arith.constant 0 : i32
    %c0_i32_0 = arith.constant 0 : i32
    %c0_i32_1 = arith.constant 0 : i32
    return %c0_i32, %c0_i32_0 : i32, i32
  }
  func.func @transform_5(%arg0: i32) -> (i32, i32) {
    %c0_i32 = arith.constant 0 : i32
    %c0_i32_0 = arith.constant 0 : i32
    %c0_i32_1 = arith.constant 0 : i32
    return %c0_i32, %c0_i32_0 : i32, i32
  }
  func.func @transform_6(%arg0: i32) -> (i32, i32) {
    %c0_i32 = arith.constant 0 : i32
    %c0_i32_0 = arith.constant 0 : i32
    %c0_i32_1 = arith.constant 0 : i32
    return %c0_i32, %c0_i32_0 : i32, i32
  }
  func.func @transform_7(%arg0: i32) -> (i32, i32) {
    %c0_i32 = arith.constant 0 : i32
    %c0_i32_0 = arith.constant 0 : i32
    %c0_i32_1 = arith.constant 0 : i32
    return %c0_i32, %c0_i32_0 : i32, i32
  }
  func.func @transform_8(%arg0: i32) -> (i32, i32) {
    %c0_i32 = arith.constant 0 : i32
    %c0_i32_0 = arith.constant 0 : i32
    %c0_i32_1 = arith.constant 0 : i32
    return %c0_i32, %c0_i32_0 : i32, i32
  }
  func.func @transform_9(%arg0: i32) -> (i32, i32) {
    %c0_i32 = arith.constant 0 : i32
    %c0_i32_0 = arith.constant 0 : i32
    %c0_i32_1 = arith.constant 0 : i32
    return %c0_i32, %c0_i32_0 : i32, i32
  }
}

</mosaic_0001>

<llo_original>
// kernel: _fused_forward.1
$region0: #{_fused_forward.1}
  #allocation0 [shape = 'u32[]', space=smem, size = 0x4, offset = 0x4, fixed_abs, tag = 'smem constant byte address 0x4 - core index']
  #allocation1 [shape = 'u32[144,128]{1,0:T(1,128)}', space=vmem, size = 0x12000, scoped, tag = 'internal scratch']
  #allocation2 [shape = 'f32[40,160]{1,0:T(8,128)}', space=vmem, size = 0xa000, scoped, tag = 'scratch operand']
  #allocation3 [shape = 'f32[24,96]{1,0:T(8,128)}', space=vmem, size = 0x3000, scoped, tag = 'scratch operand']
  %s0 = inlined_call_operand.vmem [shape: f32[40,160], index: 0, kind: input, shape index: {}]
  %s1 = inlined_call_operand.vmem [shape: f32[50,128], index: 1, kind: input, shape index: {}]
  %s2 = inlined_call_operand.vmem [shape: f32[128,512], index: 2, kind: input, shape index: {}]
  %s3 = inlined_call_operand.vmem [shape: f32[5,256], index: 3, kind: input, shape index: {}]
  %s4 = inlined_call_operand.vmem [shape: f32[24,96], index: 4, kind: input, shape index: {}]
  %s5 = inlined_call_operand.vmem [shape: f32[50,64], index: 5, kind: input, shape index: {}]
  %s6 = inlined_call_operand.vmem [shape: f32[64,384], index: 6, kind: input, shape index: {}]
  %s7 = inlined_call_operand.vmem [shape: f32[5,128], index: 7, kind: input, shape index: {}]
  %s8 = inlined_call_operand.vmem [shape: f32[32,256], index: 8, kind: output, shape index: {0}]
  %s9 = inlined_call_operand.vmem [shape: f32[16,128], index: 9, kind: output, shape index: {1}]
  %10 = xla_tuple %s8, %s9
  %s11 = sld [smem:[#allocation0]]
  $region50: #{_fused_forward.1} parent=0
    _
  %s13 = ssub.s32 1, %s11
  %s14 = scalar_select 0, %s13, %s11
  // Predicated region
  $region2: #{_fused_forward.1} parent=0 // pred_check
    _
  $region3: #{_fused_forward.1} parent=0 // pred_check_branch
    %16 = sbr.rel (0) target = $region5
  $region4: #{_fused_forward.1} parent=0 // pred_region
    _
  $region5: #{_fused_forward.1} parent=0 // pred_fallthru
    _
  // Predicated region
  $region6: #{_fused_forward.1} parent=0 // pred_check
    _
  $region7: #{_fused_forward.1} parent=0 // pred_check_branch
    %18 = sbr.rel (0) target = $region9
  $region8: #{_fused_forward.1} parent=0 // pred_region
    _
  $region9: #{_fused_forward.1} parent=0 // pred_fallthru
    _
  // Predicated region
  $region10: #{_fused_forward.1} parent=0 // pred_check
    _
  $region11: #{_fused_forward.1} parent=0 // pred_check_branch
    %20 = sbr.rel (0) target = $region13
  $region12: #{_fused_forward.1} parent=0 // pred_region
    _
  $region13: #{_fused_forward.1} parent=0 // pred_fallthru
    _
  // Predicated region
  $region14: #{_fused_forward.1} parent=0 // pred_check
    _
  $region15: #{_fused_forward.1} parent=0 // pred_check_branch
    %22 = sbr.rel (0) target = $region17
  $region16: #{_fused_forward.1} parent=0 // pred_region
    _
  $region17: #{_fused_forward.1} parent=0 // pred_fallthru
    _
  // Predicated region
  $region18: #{_fused_forward.1} parent=0 // pred_check
    _
  $region19: #{_fused_forward.1} parent=0 // pred_check_branch
    %24 = sbr.rel (0) target = $region21
  $region20: #{_fused_forward.1} parent=0 // pred_region
    _
  $region21: #{_fused_forward.1} parent=0 // pred_fallthru
    _
  // Predicated region
  $region22: #{_fused_forward.1} parent=0 // pred_check
    _
  $region23: #{_fused_forward.1} parent=0 // pred_check_branch
    %26 = sbr.rel (0) target = $region25
  $region24: #{_fused_forward.1} parent=0 // pred_region
    _
  $region25: #{_fused_forward.1} parent=0 // pred_fallthru
    _
  // Predicated region
  $region26: #{_fused_forward.1} parent=0 // pred_check
    _
  $region27: #{_fused_forward.1} parent=0 // pred_check_branch
    %28 = sbr.rel (0) target = $region29
  $region28: #{_fused_forward.1} parent=0 // pred_region
    _
  $region29: #{_fused_forward.1} parent=0 // pred_fallthru
    _
  // Predicated region
  $region30: #{_fused_forward.1} parent=0 // pred_check
    _
  $region31: #{_fused_forward.1} parent=0 // pred_check_branch
    %30 = sbr.rel (0) target = $region33
  $region32: #{_fused_forward.1} parent=0 // pred_region
    _
  $region33: #{_fused_forward.1} parent=0 // pred_fallthru
    _
  %31 = vst [vmem:[#allocation2] sm:$0xff] 0.0
  %vm32 = vcmask 261120
  %33 = vst.msk [vmem:[#allocation2 + $0x8] sm:$0xff] %vm32, 0.0
  %34 = vst [vmem:[#allocation2 + $0x10] sm:$0xff] 0.0
  %35 = vst.msk [vmem:[#allocation2 + $0x18] sm:$0xff] %vm32, 0.0
  %36 = vst [vmem:[#allocation2 + $0x20] sm:$0xff] 0.0
  %37 = vst.msk [vmem:[#allocation2 + $0x28] sm:$0xff] %vm32, 0.0
  %38 = vst [vmem:[#allocation2 + $0x30] sm:$0xff] 0.0
  %39 = vst.msk [vmem:[#allocation2 + $0x38] sm:$0xff] %vm32, 0.0
  %40 = vst [vmem:[#allocation2 + $0x40] sm:$0xff] 0.0
  %41 = vst.msk [vmem:[#allocation2 + $0x48] sm:$0xff] %vm32, 0.0
  %v42 = vld [vmem:[%s3] ss:$0 sm:$0xff]
  %v43 = vld [vmem:[%s3 + $0x1] ss:$0 sm:$0xff]
  %v44 = vld [vmem:[%s3 + $0x2] ss:$0 sm:$0xff]
  %v45 = vld [vmem:[%s3 + $0x3] ss:$0 sm:$0xff]
  %s46 = scalar_lea.vmem %s3, 4
  %v47 = vld [vmem:[%s46] ss:$8 sm:$0x3]
  %v48 = vld [vmem:[%s0] sm:$0xff]
  %v49 = vld [vmem:[%s0 + $0x10] sm:$0xff]
  %v50 = vld [vmem:[%s0 + $0x20] sm:$0xff]
  %v51 = vld [vmem:[%s0 + $0x30] sm:$0xff]
  %v52 = vld [vmem:[%s0 + $0x40] sm:$0xff]
  %v53 = vld [vmem:[%s1] sm:$0x1]
  %v54 = vlaneseq
  %v55 = vshrl.u32 %v54, 7
  %v56 = vsub.s32 0, %v55
  %v57 = vrot.slane %v53, %v56
  %v58 = vmul.f32 %v48, %v57
  %v59 = vmul.f32 %v49, %v57
  %v60 = vmul.f32 %v50, %v57
  %v61 = vmul.f32 %v51, %v57
  %v62 = vmul.f32 %v52, %v57
  %v63 = vadd.f32 %v42, %v58
  %v64 = vadd.f32 %v42, %v59
  %v65 = vadd.f32 %v42, %v60
  %v66 = vadd.f32 %v42, %v61
  %v67 = vadd.f32 %v42, %v62
  %v68 = vld [vmem:[%s1 + $0x5] sm:$0x1]
  %v69 = vlaneseq
  %v70 = vshrl.u32 %v69, 7
  %v71 = vsub.s32 0, %v70
  %v72 = vrot.slane %v68, %v71
  %v73 = vmul.f32 %v48, %v72
  %v74 = vmul.f32 %v49, %v72
  %v75 = vmul.f32 %v50, %v72
  %v76 = vmul.f32 %v51, %v72
  %v77 = vmul.f32 %v52, %v72
  %vm81 = vcmask 1046528
  %v82 = vrot.slane %v73, 1
  %v83 = vrot.slane %v74, 1
  %v84 = vsel %vm81, %v82, %v83
  %v85 = vrot.slane %v75, 1
  %v86 = vsel %vm81, %v83, %v85
  %v89 = vadd.f32 %v63, %v84
  %v90 = vadd.f32 %v64, %v86
  %v93 = vrot.slane %v76, 1
  %v94 = vsel %vm81, %v85, %v93
  %v95 = vrot.slane %v77, 1
  %v96 = vsel %vm81, %v93, %v95
  %v100 = vadd.f32 %v65, %v94
  %v101 = vadd.f32 %v66, %v96
  %v102 = vadd.f32 %v67, %v95
  %v103 = vld [vmem:[%s1 + $0xa] sm:$0x1]
  %v104 = vlaneseq
  %v105 = vshrl.u32 %v104, 7
  %v106 = vsub.s32 0, %v105
  %v107 = vrot.slane %v103, %v106
  %v108 = vmul.f32 %v48, %v107
  %v109 = vmul.f32 %v49, %v107
  %v110 = vmul.f32 %v50, %v107
  %v111 = vmul.f32 %v51, %v107
  %v112 = vmul.f32 %v52, %v107
  %vm116 = vcmask 1045504
  %v117 = vrot.slane %v108, 2
  %v118 = vrot.slane %v109, 2
  %v119 = vsel %vm116, %v117, %v118
  %v120 = vrot.slane %v110, 2
  %v121 = vsel %vm116, %v118, %v120
  %v124 = vadd.f32 %v89, %v119
  %v125 = vadd.f32 %v90, %v121
  %v128 = vrot.slane %v111, 2
  %v129 = vsel %vm116, %v120, %v128
  %v130 = vrot.slane %v112, 2
  %v131 = vsel %vm116, %v128, %v130
  %v135 = vadd.f32 %v100, %v129
  %v136 = vadd.f32 %v101, %v131
  %v137 = vadd.f32 %v102, %v130
  %v138 = vld [vmem:[%s1 + $0xf] sm:$0x1]
  %v139 = vlaneseq
  %v140 = vshrl.u32 %v139, 7
  %v141 = vsub.s32 0, %v140
  %v142 = vrot.slane %v138, %v141
  %v143 = vmul.f32 %v48, %v142
  %v144 = vmul.f32 %v49, %v142
  %v145 = vmul.f32 %v50, %v142
  %v146 = vmul.f32 %v51, %v142
  %v147 = vmul.f32 %v52, %v142
  %vm151 = vcmask 1044480
  %v152 = vrot.slane %v143, 3
  %v153 = vrot.slane %v144, 3
  %v154 = vsel %vm151, %v152, %v153
  %v155 = vrot.slane %v145, 3
  %v156 = vsel %vm151, %v153, %v155
  %v159 = vadd.f32 %v124, %v154
  %v160 = vadd.f32 %v125, %v156
  %v163 = vrot.slane %v146, 3
  %v164 = vsel %vm151, %v155, %v163
  %v165 = vrot.slane %v147, 3
  %v166 = vsel %vm151, %v163, %v165
  %v170 = vadd.f32 %v135, %v164
  %v171 = vadd.f32 %v136, %v166
  %v172 = vadd.f32 %v137, %v165
  %v173 = vld [vmem:[%s1 + $0x14] sm:$0x1]
  %v174 = vlaneseq
  %v175 = vshrl.u32 %v174, 7
  %v176 = vsub.s32 0, %v175
  %v177 = vrot.slane %v173, %v176
  %v178 = vmul.f32 %v48, %v177
  %v179 = vmul.f32 %v49, %v177
  %v180 = vmul.f32 %v50, %v177
  %v181 = vmul.f32 %v51, %v177
  %v182 = vmul.f32 %v52, %v177
  %vm186 = vcmask 1043456
  %v187 = vrot.slane %v178, 4
  %v188 = vrot.slane %v179, 4
  %v189 = vsel %vm186, %v187, %v188
  %v190 = vrot.slane %v180, 4
  %v191 = vsel %vm186, %v188, %v190
  %v194 = vadd.f32 %v159, %v189
  %v195 = vadd.f32 %v160, %v191
  %v198 = vrot.slane %v181, 4
  %v199 = vrot.slane %v182, 4
  %v200 = vsel %vm186, %v198, %v199
  %v204 = vadd.f32 %v170, %v198
  %v205 = vadd.f32 %v171, %v200
  %v206 = vadd.f32 %v172, %v199
  %v207 = vld [vmem:[%s0 + $0x8] sm:$0xff]
  %v208 = vld [vmem:[%s0 + $0x18] sm:$0xff]
  %v209 = vld [vmem:[%s0 + $0x28] sm:$0xff]
  %v210 = vld [vmem:[%s0 + $0x38] sm:$0xff]
  %v211 = vld [vmem:[%s0 + $0x48] sm:$0xff]
  %v212 = vld [vmem:[%s1 + $0x1] sm:$0x1]
  %v213 = vlaneseq
  %v214 = vshrl.u32 %v213, 7
  %v215 = vsub.s32 0, %v214
  %v216 = vrot.slane %v212, %v215
  %218 = vrot.lane.b32.xlu0 %v216, 8
  %v219 = vpop.permute.xlu0 %218
  %v221 = vmul.f32 %v48, %v219
  %v222 = vmul.f32 %v207, %v219
  %v223 = vmul.f32 %v49, %v219
  %v224 = vmul.f32 %v208, %v219
  %v225 = vmul.f32 %v50, %v219
  %v226 = vmul.f32 %v209, %v219
  %v227 = vmul.f32 %v51, %v219
  %v228 = vmul.f32 %v210, %v219
  %v229 = vmul.f32 %v52, %v219
  %v230 = vmul.f32 %v211, %v219
  %235 = vrot.lane.b32.xlu0 %v221, 120
  %v236 = vpop.permute.xlu0 %235
  %237 = vrot.lane.b32.xlu0 %v222, 120
  %v238 = vpop.permute.xlu0 %237
  %239 = vrot.lane.b32.xlu0 %v223, 120
  %v240 = vpop.permute.xlu0 %239
  %241 = vrot.lane.b32.xlu0 %v224, 120
  %v242 = vpop.permute.xlu0 %241
  %vm243 = vcmask 982016
  %v244 = vsel %vm243, %v236, %v238
  %v245 = vsel %vm243, %v240, %v242
  %v248 = vadd.f32 %v194, %v244
  %v249 = vadd.f32 %v195, %v245
  %256 = vrot.lane.b32.xlu0 %v225, 120
  %v257 = vpop.permute.xlu0 %256
  %258 = vrot.lane.b32.xlu0 %v226, 120
  %v259 = vpop.permute.xlu0 %258
  %260 = vrot.lane.b32.xlu0 %v227, 120
  %v261 = vpop.permute.xlu0 %260
  %262 = vrot.lane.b32.xlu0 %v228, 120
  %v263 = vpop.permute.xlu0 %262
  %264 = vrot.lane.b32.xlu0 %v229, 120
  %v265 = vpop.permute.xlu0 %264
  %266 = vrot.lane.b32.xlu0 %v230, 120
  %v267 = vpop.permute.xlu0 %266
  %v268 = vsel %vm243, %v257, %v259
  %v269 = vsel %vm243, %v261, %v263
  %v270 = vsel %vm243, %v265, %v267
  %v274 = vadd.f32 %v204, %v268
  %v275 = vadd.f32 %v205, %v269
  %v276 = vadd.f32 %v206, %v270
  %v277 = vld [vmem:[%s1 + $0x6] sm:$0x1]
  %v278 = vlaneseq
  %v279 = vshrl.u32 %v278, 7
  %v280 = vsub.s32 0, %v279
  %v281 = vrot.slane %v277, %v280
  %283 = vrot.lane.b32.xlu0 %v281, 8
  %v284 = vpop.permute.xlu0 %283
  %v286 = vmul.f32 %v48, %v284
  %v287 = vmul.f32 %v207, %v284
  %v288 = vmul.f32 %v49, %v284
  %v289 = vmul.f32 %v208, %v284
  %v290 = vmul.f32 %v50, %v284
  %v291 = vmul.f32 %v209, %v284
  %v292 = vmul.f32 %v51, %v284
  %v293 = vmul.f32 %v210, %v284
  %v294 = vmul.f32 %v52, %v284
  %v295 = vmul.f32 %v211, %v284
  %v302 = vrot.slane %v286, 1
  %v303 = vrot.slane %v288, 1
  %v304 = vsel %vm81, %v302, %v303
  %v305 = vrot.slane %v287, 1
  %v306 = vrot.slane %v289, 1
  %v307 = vsel %vm81, %v305, %v306
  %v308 = vrot.slane %v290, 1
  %v309 = vsel %vm81, %v303, %v308
  %v310 = vrot.slane %v291, 1
  %v311 = vsel %vm81, %v306, %v310
  %312 = vrot.lane.b32.xlu0 %v304, 120
  %v313 = vpop.permute.xlu0 %312
  %314 = vrot.lane.b32.xlu0 %v307, 120
  %v315 = vpop.permute.xlu0 %314
  %316 = vrot.lane.b32.xlu0 %v309, 120
  %v317 = vpop.permute.xlu0 %316
  %318 = vrot.lane.b32.xlu0 %v311, 120
  %v319 = vpop.permute.xlu0 %318
  %v320 = vsel %vm243, %v313, %v315
  %v321 = vsel %vm243, %v317, %v319
  %v324 = vadd.f32 %v248, %v320
  %v325 = vadd.f32 %v249, %v321
  %v330 = vrot.slane %v292, 1
  %v331 = vsel %vm81, %v308, %v330
  %v332 = vrot.slane %v293, 1
  %v333 = vsel %vm81, %v310, %v332
  %v334 = vrot.slane %v294, 1
  %v335 = vsel %vm81, %v330, %v334
  %v336 = vrot.slane %v295, 1
  %v337 = vsel %vm81, %v332, %v336
  %338 = vrot.lane.b32.xlu0 %v331, 120
  %v339 = vpop.permute.xlu0 %338
  %340 = vrot.lane.b32.xlu0 %v333, 120
  %v341 = vpop.permute.xlu0 %340
  %342 = vrot.lane.b32.xlu0 %v335, 120
  %v343 = vpop.permute.xlu0 %342
  %344 = vrot.lane.b32.xlu0 %v337, 120
  %v345 = vpop.permute.xlu0 %344
  %346 = vrot.lane.b32.xlu0 %v334, 120
  %v347 = vpop.permute.xlu0 %346
  %348 = vrot.lane.b32.xlu0 %v336, 120
  %v349 = vpop.permute.xlu0 %348
  %v350 = vsel %vm243, %v339, %v341
  %v351 = vsel %vm243, %v343, %v345
  %v352 = vsel %vm243, %v347, %v349
  %v356 = vadd.f32 %v274, %v350
  %v357 = vadd.f32 %v275, %v351
  %v358 = vadd.f32 %v276, %v352
  %v359 = vld [vmem:[%s1 + $0xb] sm:$0x1]
  %v360 = vlaneseq
  %v361 = vshrl.u32 %v360, 7
  %v362 = vsub.s32 0, %v361
  %v363 = vrot.slane %v359, %v362
  %365 = vrot.lane.b32.xlu0 %v363, 8
  %v366 = vpop.permute.xlu0 %365
  %v368 = vmul.f32 %v48, %v366
  %v369 = vmul.f32 %v207, %v366
  %v370 = vmul.f32 %v49, %v366
  %v371 = vmul.f32 %v208, %v366
  %v372 = vmul.f32 %v50, %v366
  %v373 = vmul.f32 %v209, %v366
  %v374 = vmul.f32 %v51, %v366
  %v375 = vmul.f32 %v210, %v366
  %v376 = vmul.f32 %v52, %v366
  %v377 = vmul.f32 %v211, %v366
  %v384 = vrot.slane %v368, 2
  %v385 = vrot.slane %v370, 2
  %v386 = vsel %vm116, %v384, %v385
  %v387 = vrot.slane %v369, 2
  %v388 = vrot.slane %v371, 2
  %v389 = vsel %vm116, %v387, %v388
  %v390 = vrot.slane %v372, 2
  %v391 = vsel %vm116, %v385, %v390
  %v392 = vrot.slane %v373, 2
  %v393 = vsel %vm116, %v388, %v392
  %394 = vrot.lane.b32.xlu0 %v386, 120
  %v395 = vpop.permute.xlu0 %394
  %396 = vrot.lane.b32.xlu0 %v389, 120
  %v397 = vpop.permute.xlu0 %396
  %398 = vrot.lane.b32.xlu0 %v391, 120
  %v399 = vpop.permute.xlu0 %398
  %400 = vrot.lane.b32.xlu0 %v393, 120
  %v401 = vpop.permute.xlu0 %400
  %v402 = vsel %vm243, %v395, %v397
  %v403 = vsel %vm243, %v399, %v401
  %v406 = vadd.f32 %v324, %v402
  %v407 = vadd.f32 %v325, %v403
  %v412 = vrot.slane %v374, 2
  %v413 = vsel %vm116, %v390, %v412
  %v414 = vrot.slane %v375, 2
  %v415 = vsel %vm116, %v392, %v414
  %v416 = vrot.slane %v376, 2
  %v417 = vsel %vm116, %v412, %v416
  %v418 = vrot.slane %v377, 2
  %v419 = vsel %vm116, %v414, %v418
  %420 = vrot.lane.b32.xlu0 %v413, 120
  %v421 = vpop.permute.xlu0 %420
  %422 = vrot.lane.b32.xlu0 %v415, 120
  %v423 = vpop.permute.xlu0 %422
  %424 = vrot.lane.b32.xlu0 %v417, 120
  %v425 = vpop.permute.xlu0 %424
  %426 = vrot.lane.b32.xlu0 %v419, 120
  %v427 = vpop.permute.xlu0 %426
  %428 = vrot.lane.b32.xlu0 %v416, 120
  %v429 = vpop.permute.xlu0 %428
  %430 = vrot.lane.b32.xlu0 %v418, 120
  %v431 = vpop.permute.xlu0 %430
  %v432 = vsel %vm243, %v421, %v423
  %v433 = vsel %vm243, %v425, %v427
  %v434 = vsel %vm243, %v429, %v431
  %v438 = vadd.f32 %v356, %v432
  %v439 = vadd.f32 %v357, %v433
  %v440 = vadd.f32 %v358, %v434
  %v441 = vld [vmem:[%s1 + $0x10] sm:$0x1]
  %v442 = vlaneseq
  %v443 = vshrl.u32 %v442, 7
  %v444 = vsub.s32 0, %v443
  %v445 = vrot.slane %v441, %v444
  %447 = vrot.lane.b32.xlu0 %v445, 8
  %v448 = vpop.permute.xlu0 %447
  %v450 = vmul.f32 %v48, %v448
  %v451 = vmul.f32 %v207, %v448
  %v452 = vmul.f32 %v49, %v448
  %v453 = vmul.f32 %v208, %v448
  %v454 = vmul.f32 %v50, %v448
  %v455 = vmul.f32 %v209, %v448
  %v456 = vmul.f32 %v51, %v448
  %v457 = vmul.f32 %v210, %v448
  %v458 = vmul.f32 %v52, %v448
  %v459 = vmul.f32 %v211, %v448
  %v466 = vrot.slane %v450, 3
  %v467 = vrot.slane %v452, 3
  %v468 = vsel %vm151, %v466, %v467
  %v469 = vrot.slane %v451, 3
  %v470 = vrot.slane %v453, 3
  %v471 = vsel %vm151, %v469, %v470
  %v472 = vrot.slane %v454, 3
  %v473 = vsel %vm151, %v467, %v472
  %v474 = vrot.slane %v455, 3
  %v475 = vsel %vm151, %v470, %v474
  %476 = vrot.lane.b32.xlu0 %v468, 120
  %v477 = vpop.permute.xlu0 %476
  %478 = vrot.lane.b32.xlu0 %v471, 120
  %v479 = vpop.permute.xlu0 %478
  %480 = vrot.lane.b32.xlu0 %v473, 120
  %v481 = vpop.permute.xlu0 %480
  %482 = vrot.lane.b32.xlu0 %v475, 120
  %v483 = vpop.permute.xlu0 %482
  %v484 = vsel %vm243, %v477, %v479
  %v485 = vsel %vm243, %v481, %v483
  %v488 = vadd.f32 %v406, %v484
  %v489 = vadd.f32 %v407, %v485
  %v494 = vrot.slane %v456, 3
  %v495 = vsel %vm151, %v472, %v494
  %v496 = vrot.slane %v457, 3
  %v497 = vsel %vm151, %v474, %v496
  %v498 = vrot.slane %v458, 3
  %v499 = vsel %vm151, %v494, %v498
  %v500 = vrot.slane %v459, 3
  %v501 = vsel %vm151, %v496, %v500
  %502 = vrot.lane.b32.xlu0 %v495, 120
  %v503 = vpop.permute.xlu0 %502
  %504 = vrot.lane.b32.xlu0 %v497, 120
  %v505 = vpop.permute.xlu0 %504
  %506 = vrot.lane.b32.xlu0 %v499, 120
  %v507 = vpop.permute.xlu0 %506
  %508 = vrot.lane.b32.xlu0 %v501, 120
  %v509 = vpop.permute.xlu0 %508
  %510 = vrot.lane.b32.xlu0 %v498, 120
  %v511 = vpop.permute.xlu0 %510
  %512 = vrot.lane.b32.xlu0 %v500, 120
  %v513 = vpop.permute.xlu0 %512
  %v514 = vsel %vm243, %v503, %v505
  %v515 = vsel %vm243, %v507, %v509
  %v516 = vsel %vm243, %v511, %v513
  %v520 = vadd.f32 %v438, %v514
  %v521 = vadd.f32 %v439, %v515
  %v522 = vadd.f32 %v440, %v516
  %v523 = vld [vmem:[%s1 + $0x15] sm:$0x1]
  %v524 = vlaneseq
  %v525 = vshrl.u32 %v524, 7
  %v526 = vsub.s32 0, %v525
  %v527 = vrot.slane %v523, %v526
  %529 = vrot.lane.b32.xlu0 %v527, 8
  %v530 = vpop.permute.xlu0 %529
  %v532 = vmul.f32 %v48, %v530
  %v533 = vmul.f32 %v207, %v530
  %v534 = vmul.f32 %v49, %v530
  %v535 = vmul.f32 %v208, %v530
  %v536 = vmul.f32 %v50, %v530
  %v537 = vmul.f32 %v209, %v530
  %v538 = vmul.f32 %v51, %v530
  %v539 = vmul.f32 %v210, %v530
  %v540 = vmul.f32 %v52, %v530
  %v541 = vmul.f32 %v211, %v530
  %v548 = vrot.slane %v532, 4
  %v549 = vrot.slane %v534, 4
  %v550 = vsel %vm186, %v548, %v549
  %v551 = vrot.slane %v533, 4
  %v552 = vrot.slane %v535, 4
  %v553 = vsel %vm186, %v551, %v552
  %v554 = vrot.slane %v536, 4
  %v555 = vsel %vm186, %v549, %v554
  %v556 = vrot.slane %v537, 4
  %v557 = vsel %vm186, %v552, %v556
  %558 = vrot.lane.b32.xlu0 %v550, 120
  %v559 = vpop.permute.xlu0 %558
  %560 = vrot.lane.b32.xlu0 %v553, 120
  %v561 = vpop.permute.xlu0 %560
  %562 = vrot.lane.b32.xlu0 %v555, 120
  %v563 = vpop.permute.xlu0 %562
  %564 = vrot.lane.b32.xlu0 %v557, 120
  %v565 = vpop.permute.xlu0 %564
  %v566 = vsel %vm243, %v559, %v561
  %v567 = vsel %vm243, %v563, %v565
  %v570 = vadd.f32 %v488, %v566
  %v571 = vadd.f32 %v489, %v567
  %v576 = vrot.slane %v538, 4
  %v577 = vrot.slane %v539, 4
  %v578 = vrot.slane %v540, 4
  %v579 = vsel %vm186, %v576, %v578
  %v580 = vrot.slane %v541, 4
  %v581 = vsel %vm186, %v577, %v580
  %582 = vrot.lane.b32.xlu0 %v576, 120
  %v583 = vpop.permute.xlu0 %582
  %584 = vrot.lane.b32.xlu0 %v577, 120
  %v585 = vpop.permute.xlu0 %584
  %586 = vrot.lane.b32.xlu0 %v579, 120
  %v587 = vpop.permute.xlu0 %586
  %588 = vrot.lane.b32.xlu0 %v581, 120
  %v589 = vpop.permute.xlu0 %588
  %590 = vrot.lane.b32.xlu0 %v578, 120
  %v591 = vpop.permute.xlu0 %590
  %592 = vrot.lane.b32.xlu0 %v580, 120
  %v593 = vpop.permute.xlu0 %592
  %v594 = vsel %vm243, %v583, %v585
  %v595 = vsel %vm243, %v587, %v589
  %v596 = vsel %vm243, %v591, %v593
  %v600 = vadd.f32 %v520, %v594
  %v601 = vadd.f32 %v521, %v595
  %v602 = vadd.f32 %v522, %v596
  %v603 = vld [vmem:[%s1 + $0x2] sm:$0x1]
  %v604 = vlaneseq
  %v605 = vshrl.u32 %v604, 7
  %v606 = vsub.s32 0, %v605
  %v607 = vrot.slane %v603, %v606
  %609 = vrot.lane.b32.xlu0 %v607, 16
  %v610 = vpop.permute.xlu0 %609
  %v612 = vmul.f32 %v48, %v610
  %v613 = vmul.f32 %v207, %v610
  %v614 = vmul.f32 %v49, %v610
  %v615 = vmul.f32 %v208, %v610
  %v616 = vmul.f32 %v50, %v610
  %v617 = vmul.f32 %v209, %v610
  %v618 = vmul.f32 %v51, %v610
  %v619 = vmul.f32 %v210, %v610
  %v620 = vmul.f32 %v52, %v610
  %v621 = vmul.f32 %v211, %v610
  %626 = vrot.lane.b32.xlu0 %v612, 112
  %v627 = vpop.permute.xlu0 %626
  %628 = vrot.lane.b32.xlu0 %v613, 112
  %v629 = vpop.permute.xlu0 %628
  %630 = vrot.lane.b32.xlu0 %v614, 112
  %v631 = vpop.permute.xlu0 %630
  %632 = vrot.lane.b32.xlu0 %v615, 112
  %v633 = vpop.permute.xlu0 %632
  %vm634 = vcmask 916480
  %v635 = vsel %vm634, %v627, %v629
  %v636 = vsel %vm634, %v631, %v633
  %v639 = vadd.f32 %v570, %v635
  %v640 = vadd.f32 %v571, %v636
  %647 = vrot.lane.b32.xlu0 %v616, 112
  %v648 = vpop.permute.xlu0 %647
  %649 = vrot.lane.b32.xlu0 %v617, 112
  %v650 = vpop.permute.xlu0 %649
  %651 = vrot.lane.b32.xlu0 %v618, 112
  %v652 = vpop.permute.xlu0 %651
  %653 = vrot.lane.b32.xlu0 %v619, 112
  %v654 = vpop.permute.xlu0 %653
  %655 = vrot.lane.b32.xlu0 %v620, 112
  %v656 = vpop.permute.xlu0 %655
  %657 = vrot.lane.b32.xlu0 %v621, 112
  %v658 = vpop.permute.xlu0 %657
  %v659 = vsel %vm634, %v648, %v650
  %v660 = vsel %vm634, %v652, %v654
  %v661 = vsel %vm634, %v656, %v658
  %v665 = vadd.f32 %v600, %v659
  %v666 = vadd.f32 %v601, %v660
  %v667 = vadd.f32 %v602, %v661
  %v668 = vld [vmem:[%s1 + $0x7] sm:$0x1]
  %v669 = vlaneseq
  %v670 = vshrl.u32 %v669, 7
  %v671 = vsub.s32 0, %v670
  %v672 = vrot.slane %v668, %v671
  %674 = vrot.lane.b32.xlu0 %v672, 16
  %v675 = vpop.permute.xlu0 %674
  %v677 = vmul.f32 %v48, %v675
  %v678 = vmul.f32 %v207, %v675
  %v679 = vmul.f32 %v49, %v675
  %v680 = vmul.f32 %v208, %v675
  %v681 = vmul.f32 %v50, %v675
  %v682 = vmul.f32 %v209, %v675
  %v683 = vmul.f32 %v51, %v675
  %v684 = vmul.f32 %v210, %v675
  %v685 = vmul.f32 %v52, %v675
  %v686 = vmul.f32 %v211, %v675
  %v693 = vrot.slane %v677, 1
  %v694 = vrot.slane %v679, 1
  %v695 = vsel %vm81, %v693, %v694
  %v696 = vrot.slane %v678, 1
  %v697 = vrot.slane %v680, 1
  %v698 = vsel %vm81, %v696, %v697
  %v699 = vrot.slane %v681, 1
  %v700 = vsel %vm81, %v694, %v699
  %v701 = vrot.slane %v682, 1
  %v702 = vsel %vm81, %v697, %v701
  %703 = vrot.lane.b32.xlu0 %v695, 112
  %v704 = vpop.permute.xlu0 %703
  %705 = vrot.lane.b32.xlu0 %v698, 112
  %v706 = vpop.permute.xlu0 %705
  %707 = vrot.lane.b32.xlu0 %v700, 112
  %v708 = vpop.permute.xlu0 %707
  %709 = vrot.lane.b32.xlu0 %v702, 112
  %v710 = vpop.permute.xlu0 %709
  %v711 = vsel %vm634, %v704, %v706
  %v712 = vsel %vm634, %v708, %v710
  %v715 = vadd.f32 %v639, %v711
  %v716 = vadd.f32 %v640, %v712
  %v721 = vrot.slane %v683, 1
  %v722 = vsel %vm81, %v699, %v721
  %v723 = vrot.slane %v684, 1
  %v724 = vsel %vm81, %v701, %v723
  %v725 = vrot.slane %v685, 1
  %v726 = vsel %vm81, %v721, %v725
  %v727 = vrot.slane %v686, 1
  %v728 = vsel %vm81, %v723, %v727
  %729 = vrot.lane.b32.xlu0 %v722, 112
  %v730 = vpop.permute.xlu0 %729
  %731 = vrot.lane.b32.xlu0 %v724, 112
  %v732 = vpop.permute.xlu0 %731
  %733 = vrot.lane.b32.xlu0 %v726, 112
  %v734 = vpop.permute.xlu0 %733
  %735 = vrot.lane.b32.xlu0 %v728, 112
  %v736 = vpop.permute.xlu0 %735
  %737 = vrot.lane.b32.xlu0 %v725, 112
  %v738 = vpop.permute.xlu0 %737
  %739 = vrot.lane.b32.xlu0 %v727, 112
  %v740 = vpop.permute.xlu0 %739
  %v741 = vsel %vm634, %v730, %v732
  %v742 = vsel %vm634, %v734, %v736
  %v743 = vsel %vm634, %v738, %v740
  %v747 = vadd.f32 %v665, %v741
  %v748 = vadd.f32 %v666, %v742
  %v749 = vadd.f32 %v667, %v743
  %v750 = vld [vmem:[%s1 + $0xc] sm:$0x1]
  %v751 = vlaneseq
  %v752 = vshrl.u32 %v751, 7
  %v753 = vsub.s32 0, %v752
  %v754 = vrot.slane %v750, %v753
  %756 = vrot.lane.b32.xlu0 %v754, 16
  %v757 = vpop.permute.xlu0 %756
  %v759 = vmul.f32 %v48, %v757
  %v760 = vmul.f32 %v207, %v757
  %v761 = vmul.f32 %v49, %v757
  %v762 = vmul.f32 %v208, %v757
  %v763 = vmul.f32 %v50, %v757
  %v764 = vmul.f32 %v209, %v757
  %v765 = vmul.f32 %v51, %v757
  %v766 = vmul.f32 %v210, %v757
  %v767 = vmul.f32 %v52, %v757
  %v768 = vmul.f32 %v211, %v757
  %v775 = vrot.slane %v759, 2
  %v776 = vrot.slane %v761, 2
  %v777 = vsel %vm116, %v775, %v776
  %v778 = vrot.slane %v760, 2
  %v779 = vrot.slane %v762, 2
  %v780 = vsel %vm116, %v778, %v779
  %v781 = vrot.slane %v763, 2
  %v782 = vsel %vm116, %v776, %v781
  %v783 = vrot.slane %v764, 2
  %v784 = vsel %vm116, %v779, %v783
  %785 = vrot.lane.b32.xlu0 %v777, 112
  %v786 = vpop.permute.xlu0 %785
  %787 = vrot.lane.b32.xlu0 %v780, 112
  %v788 = vpop.permute.xlu0 %787
  %789 = vrot.lane.b32.xlu0 %v782, 112
  %v790 = vpop.permute.xlu0 %789
  %791 = vrot.lane.b32.xlu0 %v784, 112
  %v792 = vpop.permute.xlu0 %791
  %v793 = vsel %vm634, %v786, %v788
  %v794 = vsel %vm634, %v790, %v792
  %v797 = vadd.f32 %v715, %v793
  %v798 = vadd.f32 %v716, %v794
  %v803 = vrot.slane %v765, 2
  %v804 = vsel %vm116, %v781, %v803
  %v805 = vrot.slane %v766, 2
  %v806 = vsel %vm116, %v783, %v805
  %v807 = vrot.slane %v767, 2
  %v808 = vsel %vm116, %v803, %v807
  %v809 = vrot.slane %v768, 2
  %v810 = vsel %vm116, %v805, %v809
  %811 = vrot.lane.b32.xlu0 %v804, 112
  %v812 = vpop.permute.xlu0 %811
  %813 = vrot.lane.b32.xlu0 %v806, 112
  %v814 = vpop.permute.xlu0 %813
  %815 = vrot.lane.b32.xlu0 %v808, 112
  %v816 = vpop.permute.xlu0 %815
  %817 = vrot.lane.b32.xlu0 %v810, 112
  %v818 = vpop.permute.xlu0 %817
  %819 = vrot.lane.b32.xlu0 %v807, 112
  %v820 = vpop.permute.xlu0 %819
  %821 = vrot.lane.b32.xlu0 %v809, 112
  %v822 = vpop.permute.xlu0 %821
  %v823 = vsel %vm634, %v812, %v814
  %v824 = vsel %vm634, %v816, %v818
  %v825 = vsel %vm634, %v820, %v822
  %v829 = vadd.f32 %v747, %v823
  %v830 = vadd.f32 %v748, %v824
  %v831 = vadd.f32 %v749, %v825
  %v832 = vld [vmem:[%s1 + $0x11] sm:$0x1]
  %v833 = vlaneseq
  %v834 = vshrl.u32 %v833, 7
  %v835 = vsub.s32 0, %v834
  %v836 = vrot.slane %v832, %v835
  %838 = vrot.lane.b32.xlu0 %v836, 16
  %v839 = vpop.permute.xlu0 %838
  %v841 = vmul.f32 %v48, %v839
  %v842 = vmul.f32 %v207, %v839
  %v843 = vmul.f32 %v49, %v839
  %v844 = vmul.f32 %v208, %v839
  %v845 = vmul.f32 %v50, %v839
  %v846 = vmul.f32 %v209, %v839
  %v847 = vmul.f32 %v51, %v839
  %v848 = vmul.f32 %v210, %v839
  %v849 = vmul.f32 %v52, %v839
  %v850 = vmul.f32 %v211, %v839
  %v857 = vrot.slane %v841, 3
  %v858 = vrot.slane %v843, 3
  %v859 = vsel %vm151, %v857, %v858
  %v860 = vrot.slane %v842, 3
  %v861 = vrot.slane %v844, 3
  %v862 = vsel %vm151, %v860, %v861
  %v863 = vrot.slane %v845, 3
  %v864 = vsel %vm151, %v858, %v863
  %v865 = vrot.slane %v846, 3
  %v866 = vsel %vm151, %v861, %v865
  %867 = vrot.lane.b32.xlu0 %v859, 112
  %v868 = vpop.permute.xlu0 %867
  %869 = vrot.lane.b32.xlu0 %v862, 112
  %v870 = vpop.permute.xlu0 %869
  %871 = vrot.lane.b32.xlu0 %v864, 112
  %v872 = vpop.permute.xlu0 %871
  %873 = vrot.lane.b32.xlu0 %v866, 112
  %v874 = vpop.permute.xlu0 %873
  %v875 = vsel %vm634, %v868, %v870
  %v876 = vsel %vm634, %v872, %v874
  %v879 = vadd.f32 %v797, %v875
  %v880 = vadd.f32 %v798, %v876
  %v885 = vrot.slane %v847, 3
  %v886 = vsel %vm151, %v863, %v885
  %v887 = vrot.slane %v848, 3
  %v888 = vsel %vm151, %v865, %v887
  %v889 = vrot.slane %v849, 3
  %v890 = vsel %vm151, %v885, %v889
  %v891 = vrot.slane %v850, 3
  %v892 = vsel %vm151, %v887, %v891
  %893 = vrot.lane.b32.xlu0 %v886, 112
  %v894 = vpop.permute.xlu0 %893
  %895 = vrot.lane.b32.xlu0 %v888, 112
  %v896 = vpop.permute.xlu0 %895
  %897 = vrot.lane.b32.xlu0 %v890, 112
  %v898 = vpop.permute.xlu0 %897
  %899 = vrot.lane.b32.xlu0 %v892, 112
  %v900 = vpop.permute.xlu0 %899
  %901 = vrot.lane.b32.xlu0 %v889, 112
  %v902 = vpop.permute.xlu0 %901
  %903 = vrot.lane.b32.xlu0 %v891, 112
  %v904 = vpop.permute.xlu0 %903
  %v905 = vsel %vm634, %v894, %v896
  %v906 = vsel %vm634, %v898, %v900
  %v907 = vsel %vm634, %v902, %v904
  %v911 = vadd.f32 %v829, %v905
  %v912 = vadd.f32 %v830, %v906
  %v913 = vadd.f32 %v831, %v907
  %v914 = vld [vmem:[%s1 + $0x16] sm:$0x1]
  %v915 = vlaneseq
  %v916 = vshrl.u32 %v915, 7
  %v917 = vsub.s32 0, %v916
  %v918 = vrot.slane %v914, %v917
  %920 = vrot.lane.b32.xlu0 %v918, 16
  %v921 = vpop.permute.xlu0 %920
  %v923 = vmul.f32 %v48, %v921
  %v924 = vmul.f32 %v207, %v921
  %v925 = vmul.f32 %v49, %v921
  %v926 = vmul.f32 %v208, %v921
  %v927 = vmul.f32 %v50, %v921
  %v928 = vmul.f32 %v209, %v921
  %v929 = vmul.f32 %v51, %v921
  %v930 = vmul.f32 %v210, %v921
  %v931 = vmul.f32 %v52, %v921
  %v932 = vmul.f32 %v211, %v921
  %v939 = vrot.slane %v923, 4
  %v940 = vrot.slane %v925, 4
  %v941 = vsel %vm186, %v939, %v940
  %v942 = vrot.slane %v924, 4
  %v943 = vrot.slane %v926, 4
  %v944 = vsel %vm186, %v942, %v943
  %v945 = vrot.slane %v927, 4
  %v946 = vsel %vm186, %v940, %v945
  %v947 = vrot.slane %v928, 4
  %v948 = vsel %vm186, %v943, %v947
  %949 = vrot.lane.b32.xlu0 %v941, 112
  %v950 = vpop.permute.xlu0 %949
  %951 = vrot.lane.b32.xlu0 %v944, 112
  %v952 = vpop.permute.xlu0 %951
  %953 = vrot.lane.b32.xlu0 %v946, 112
  %v954 = vpop.permute.xlu0 %953
  %955 = vrot.lane.b32.xlu0 %v948, 112
  %v956 = vpop.permute.xlu0 %955
  %v957 = vsel %vm634, %v950, %v952
  %v958 = vsel %vm634, %v954, %v956
  %v961 = vadd.f32 %v879, %v957
  %v962 = vadd.f32 %v880, %v958
  %v967 = vrot.slane %v929, 4
  %v968 = vrot.slane %v930, 4
  %v969 = vrot.slane %v931, 4
  %v970 = vsel %vm186, %v967, %v969
  %v971 = vrot.slane %v932, 4
  %v972 = vsel %vm186, %v968, %v971
  %973 = vrot.lane.b32.xlu0 %v967, 112
  %v974 = vpop.permute.xlu0 %973
  %975 = vrot.lane.b32.xlu0 %v968, 112
  %v976 = vpop.permute.xlu0 %975
  %977 = vrot.lane.b32.xlu0 %v970, 112
  %v978 = vpop.permute.xlu0 %977
  %979 = vrot.lane.b32.xlu0 %v972, 112
  %v980 = vpop.permute.xlu0 %979
  %981 = vrot.lane.b32.xlu0 %v969, 112
  %v982 = vpop.permute.xlu0 %981
  %983 = vrot.lane.b32.xlu0 %v971, 112
  %v984 = vpop.permute.xlu0 %983
  %v985 = vsel %vm634, %v974, %v976
  %v986 = vsel %vm634, %v978, %v980
  %v987 = vsel %vm634, %v982, %v984
  %v991 = vadd.f32 %v911, %v985
  %v992 = vadd.f32 %v912, %v986
  %v993 = vadd.f32 %v913, %v987
  %v994 = vld [vmem:[%s1 + $0x3] sm:$0x1]
  %v995 = vlaneseq
  %v996 = vshrl.u32 %v995, 7
  %v997 = vsub.s32 0, %v996
  %v998 = vrot.slane %v994, %v997
  %1000 = vrot.lane.b32.xlu0 %v998, 24
  %v1001 = vpop.permute.xlu0 %1000
  %v1003 = vmul.f32 %v48, %v1001
  %v1004 = vmul.f32 %v207, %v1001
  %v1005 = vmul.f32 %v49, %v1001
  %v1006 = vmul.f32 %v208, %v1001
  %v1007 = vmul.f32 %v50, %v1001
  %v1008 = vmul.f32 %v209, %v1001
  %v1009 = vmul.f32 %v51, %v1001
  %v1010 = vmul.f32 %v210, %v1001
  %v1011 = vmul.f32 %v52, %v1001
  %v1012 = vmul.f32 %v211, %v1001
  %1017 = vrot.lane.b32.xlu0 %v1003, 104
  %v1018 = vpop.permute.xlu0 %1017
  %1019 = vrot.lane.b32.xlu0 %v1004, 104
  %v1020 = vpop.permute.xlu0 %1019
  %1021 = vrot.lane.b32.xlu0 %v1005, 104
  %v1022 = vpop.permute.xlu0 %1021
  %1023 = vrot.lane.b32.xlu0 %v1006, 104
  %v1024 = vpop.permute.xlu0 %1023
  %vm1025 = vcmask 850944
  %v1026 = vsel %vm1025, %v1018, %v1020
  %v1027 = vsel %vm1025, %v1022, %v1024
  %v1030 = vadd.f32 %v961, %v1026
  %v1031 = vadd.f32 %v962, %v1027
  %1038 = vrot.lane.b32.xlu0 %v1007, 104
  %v1039 = vpop.permute.xlu0 %1038
  %1040 = vrot.lane.b32.xlu0 %v1008, 104
  %v1041 = vpop.permute.xlu0 %1040
  %1042 = vrot.lane.b32.xlu0 %v1009, 104
  %v1043 = vpop.permute.xlu0 %1042
  %1044 = vrot.lane.b32.xlu0 %v1010, 104
  %v1045 = vpop.permute.xlu0 %1044
  %1046 = vrot.lane.b32.xlu0 %v1011, 104
  %v1047 = vpop.permute.xlu0 %1046
  %1048 = vrot.lane.b32.xlu0 %v1012, 104
  %v1049 = vpop.permute.xlu0 %1048
  %v1050 = vsel %vm1025, %v1039, %v1041
  %v1051 = vsel %vm1025, %v1043, %v1045
  %v1052 = vsel %vm1025, %v1047, %v1049
  %v1056 = vadd.f32 %v991, %v1050
  %v1057 = vadd.f32 %v992, %v1051
  %v1058 = vadd.f32 %v993, %v1052
  %v1059 = vld [vmem:[%s1 + $0x8] sm:$0x1]
  %v1060 = vlaneseq
  %v1061 = vshrl.u32 %v1060, 7
  %v1062 = vsub.s32 0, %v1061
  %v1063 = vrot.slane %v1059, %v1062
  %1065 = vrot.lane.b32.xlu0 %v1063, 24
  %v1066 = vpop.permute.xlu0 %1065
  %v1068 = vmul.f32 %v48, %v1066
  %v1069 = vmul.f32 %v207, %v1066
  %v1070 = vmul.f32 %v49, %v1066
  %v1071 = vmul.f32 %v208, %v1066
  %v1072 = vmul.f32 %v50, %v1066
  %v1073 = vmul.f32 %v209, %v1066
  %v1074 = vmul.f32 %v51, %v1066
  %v1075 = vmul.f32 %v210, %v1066
  %v1076 = vmul.f32 %v52, %v1066
  %v1077 = vmul.f32 %v211, %v1066
  %v1084 = vrot.slane %v1068, 1
  %v1085 = vrot.slane %v1070, 1
  %v1086 = vsel %vm81, %v1084, %v1085
  %v1087 = vrot.slane %v1069, 1
  %v1088 = vrot.slane %v1071, 1
  %v1089 = vsel %vm81, %v1087, %v1088
  %v1090 = vrot.slane %v1072, 1
  %v1091 = vsel %vm81, %v1085, %v1090
  %v1092 = vrot.slane %v1073, 1
  %v1093 = vsel %vm81, %v1088, %v1092
  %1094 = vrot.lane.b32.xlu0 %v1086, 104
  %v1095 = vpop.permute.xlu0 %1094
  %1096 = vrot.lane.b32.xlu0 %v1089, 104
  %v1097 = vpop.permute.xlu0 %1096
  %1098 = vrot.lane.b32.xlu0 %v1091, 104
  %v1099 = vpop.permute.xlu0 %1098
  %1100 = vrot.lane.b32.xlu0 %v1093, 104
  %v1101 = vpop.permute.xlu0 %1100
  %v1102 = vsel %vm1025, %v1095, %v1097
  %v1103 = vsel %vm1025, %v1099, %v1101
  %v1106 = vadd.f32 %v1030, %v1102
  %v1107 = vadd.f32 %v1031, %v1103
  %v1112 = vrot.slane %v1074, 1
  %v1113 = vsel %vm81, %v1090, %v1112
  %v1114 = vrot.slane %v1075, 1
  %v1115 = vsel %vm81, %v1092, %v1114
  %v1116 = vrot.slane %v1076, 1
  %v1117 = vsel %vm81, %v1112, %v1116
  %v1118 = vrot.slane %v1077, 1
  %v1119 = vsel %vm81, %v1114, %v1118
  %1120 = vrot.lane.b32.xlu0 %v1113, 104
  %v1121 = vpop.permute.xlu0 %1120
  %1122 = vrot.lane.b32.xlu0 %v1115, 104
  %v1123 = vpop.permute.xlu0 %1122
  %1124 = vrot.lane.b32.xlu0 %v1117, 104
  %v1125 = vpop.permute.xlu0 %1124
  %1126 = vrot.lane.b32.xlu0 %v1119, 104
  %v1127 = vpop.permute.xlu0 %1126
  %1128 = vrot.lane.b32.xlu0 %v1116, 104
  %v1129 = vpop.permute.xlu0 %1128
  %1130 = vrot.lane.b32.xlu0 %v1118, 104
  %v1131 = vpop.permute.xlu0 %1130
  %v1132 = vsel %vm1025, %v1121, %v1123
  %v1133 = vsel %vm1025, %v1125, %v1127
  %v1134 = vsel %vm1025, %v1129, %v1131
  %v1138 = vadd.f32 %v1056, %v1132
  %v1139 = vadd.f32 %v1057, %v1133
  %v1140 = vadd.f32 %v1058, %v1134
  %v1141 = vld [vmem:[%s1 + $0xd] sm:$0x1]
  %v1142 = vlaneseq
  %v1143 = vshrl.u32 %v1142, 7
  %v1144 = vsub.s32 0, %v1143
  %v1145 = vrot.slane %v1141, %v1144
  %1147 = vrot.lane.b32.xlu0 %v1145, 24
  %v1148 = vpop.permute.xlu0 %1147
  %v1150 = vmul.f32 %v48, %v1148
  %v1151 = vmul.f32 %v207, %v1148
  %v1152 = vmul.f32 %v49, %v1148
  %v1153 = vmul.f32 %v208, %v1148
  %v1154 = vmul.f32 %v50, %v1148
  %v1155 = vmul.f32 %v209, %v1148
  %v1156 = vmul.f32 %v51, %v1148
  %v1157 = vmul.f32 %v210, %v1148
  %v1158 = vmul.f32 %v52, %v1148
  %v1159 = vmul.f32 %v211, %v1148
  %v1166 = vrot.slane %v1150, 2
  %v1167 = vrot.slane %v1152, 2
  %v1168 = vsel %vm116, %v1166, %v1167
  %v1169 = vrot.slane %v1151, 2
  %v1170 = vrot.slane %v1153, 2
  %v1171 = vsel %vm116, %v1169, %v1170
  %v1172 = vrot.slane %v1154, 2
  %v1173 = vsel %vm116, %v1167, %v1172
  %v1174 = vrot.slane %v1155, 2
  %v1175 = vsel %vm116, %v1170, %v1174
  %1176 = vrot.lane.b32.xlu0 %v1168, 104
  %v1177 = vpop.permute.xlu0 %1176
  %1178 = vrot.lane.b32.xlu0 %v1171, 104
  %v1179 = vpop.permute.xlu0 %1178
  %1180 = vrot.lane.b32.xlu0 %v1173, 104
  %v1181 = vpop.permute.xlu0 %1180
  %1182 = vrot.lane.b32.xlu0 %v1175, 104
  %v1183 = vpop.permute.xlu0 %1182
  %v1184 = vsel %vm1025, %v1177, %v1179
  %v1185 = vsel %vm1025, %v1181, %v1183
  %v1188 = vadd.f32 %v1106, %v1184
  %v1189 = vadd.f32 %v1107, %v1185
  %v1194 = vrot.slane %v1156, 2
  %v1195 = vsel %vm116, %v1172, %v1194
  %v1196 = vrot.slane %v1157, 2
  %v1197 = vsel %vm116, %v1174, %v1196
  %v1198 = vrot.slane %v1158, 2
  %v1199 = vsel %vm116, %v1194, %v1198
  %v1200 = vrot.slane %v1159, 2
  %v1201 = vsel %vm116, %v1196, %v1200
  %1202 = vrot.lane.b32.xlu0 %v1195, 104
  %v1203 = vpop.permute.xlu0 %1202
  %1204 = vrot.lane.b32.xlu0 %v1197, 104
  %v1205 = vpop.permute.xlu0 %1204
  %1206 = vrot.lane.b32.xlu0 %v1199, 104
  %v1207 = vpop.permute.xlu0 %1206
  %1208 = vrot.lane.b32.xlu0 %v1201, 104
  %v1209 = vpop.permute.xlu0 %1208
  %1210 = vrot.lane.b32.xlu0 %v1198, 104
  %v1211 = vpop.permute.xlu0 %1210
  %1212 = vrot.lane.b32.xlu0 %v1200, 104
  %v1213 = vpop.permute.xlu0 %1212
  %v1214 = vsel %vm1025, %v1203, %v1205
  %v1215 = vsel %vm1025, %v1207, %v1209
  %v1216 = vsel %vm1025, %v1211, %v1213
  %v1220 = vadd.f32 %v1138, %v1214
  %v1221 = vadd.f32 %v1139, %v1215
  %v1222 = vadd.f32 %v1140, %v1216
  %v1223 = vld [vmem:[%s1 + $0x12] sm:$0x1]
  %v1224 = vlaneseq
  %v1225 = vshrl.u32 %v1224, 7
  %v1226 = vsub.s32 0, %v1225
  %v1227 = vrot.slane %v1223, %v1226
  %1229 = vrot.lane.b32.xlu0 %v1227, 24
  %v1230 = vpop.permute.xlu0 %1229
  %v1232 = vmul.f32 %v48, %v1230
  %v1233 = vmul.f32 %v207, %v1230
  %v1234 = vmul.f32 %v49, %v1230
  %v1235 = vmul.f32 %v208, %v1230
  %v1236 = vmul.f32 %v50, %v1230
  %v1237 = vmul.f32 %v209, %v1230
  %v1238 = vmul.f32 %v51, %v1230
  %v1239 = vmul.f32 %v210, %v1230
  %v1240 = vmul.f32 %v52, %v1230
  %v1241 = vmul.f32 %v211, %v1230
  %v1248 = vrot.slane %v1232, 3
  %v1249 = vrot.slane %v1234, 3
  %v1250 = vsel %vm151, %v1248, %v1249
  %v1251 = vrot.slane %v1233, 3
  %v1252 = vrot.slane %v1235, 3
  %v1253 = vsel %vm151, %v1251, %v1252
  %v1254 = vrot.slane %v1236, 3
  %v1255 = vsel %vm151, %v1249, %v1254
  %v1256 = vrot.slane %v1237, 3
  %v1257 = vsel %vm151, %v1252, %v1256
  %1258 = vrot.lane.b32.xlu0 %v1250, 104
  %v1259 = vpop.permute.xlu0 %1258
  %1260 = vrot.lane.b32.xlu0 %v1253, 104
  %v1261 = vpop.permute.xlu0 %1260
  %1262 = vrot.lane.b32.xlu0 %v1255, 104
  %v1263 = vpop.permute.xlu0 %1262
  %1264 = vrot.lane.b32.xlu0 %v1257, 104
  %v1265 = vpop.permute.xlu0 %1264
  %v1266 = vsel %vm1025, %v1259, %v1261
  %v1267 = vsel %vm1025, %v1263, %v1265
  %v1270 = vadd.f32 %v1188, %v1266
  %v1271 = vadd.f32 %v1189, %v1267
  %v1276 = vrot.slane %v1238, 3
  %v1277 = vsel %vm151, %v1254, %v1276
  %v1278 = vrot.slane %v1239, 3
  %v1279 = vsel %vm151, %v1256, %v1278
  %v1280 = vrot.slane %v1240, 3
  %v1281 = vsel %vm151, %v1276, %v1280
  %v1282 = vrot.slane %v1241, 3
  %v1283 = vsel %vm151, %v1278, %v1282
  %1284 = vrot.lane.b32.xlu0 %v1277, 104
  %v1285 = vpop.permute.xlu0 %1284
  %1286 = vrot.lane.b32.xlu0 %v1279, 104
  %v1287 = vpop.permute.xlu0 %1286
  %1288 = vrot.lane.b32.xlu0 %v1281, 104
  %v1289 = vpop.permute.xlu0 %1288
  %1290 = vrot.lane.b32.xlu0 %v1283, 104
  %v1291 = vpop.permute.xlu0 %1290
  %1292 = vrot.lane.b32.xlu0 %v1280, 104
  %v1293 = vpop.permute.xlu0 %1292
  %1294 = vrot.lane.b32.xlu0 %v1282, 104
  %v1295 = vpop.permute.xlu0 %1294
  %v1296 = vsel %vm1025, %v1285, %v1287
  %v1297 = vsel %vm1025, %v1289, %v1291
  %v1298 = vsel %vm1025, %v1293, %v1295
  %v1302 = vadd.f32 %v1220, %v1296
  %v1303 = vadd.f32 %v1221, %v1297
  %v1304 = vadd.f32 %v1222, %v1298
  %v1305 = vld [vmem:[%s1 + $0x17] sm:$0x1]
  %v1306 = vlaneseq
  %v1307 = vshrl.u32 %v1306, 7
  %v1308 = vsub.s32 0, %v1307
  %v1309 = vrot.slane %v1305, %v1308
  %1311 = vrot.lane.b32.xlu0 %v1309, 24
  %v1312 = vpop.permute.xlu0 %1311
  %v1314 = vmul.f32 %v48, %v1312
  %v1315 = vmul.f32 %v207, %v1312
  %v1316 = vmul.f32 %v49, %v1312
  %v1317 = vmul.f32 %v208, %v1312
  %v1318 = vmul.f32 %v50, %v1312
  %v1319 = vmul.f32 %v209, %v1312
  %v1320 = vmul.f32 %v51, %v1312
  %v1321 = vmul.f32 %v210, %v1312
  %v1322 = vmul.f32 %v52, %v1312
  %v1323 = vmul.f32 %v211, %v1312
  %v1330 = vrot.slane %v1314, 4
  %v1331 = vrot.slane %v1316, 4
  %v1332 = vsel %vm186, %v1330, %v1331
  %v1333 = vrot.slane %v1315, 4
  %v1334 = vrot.slane %v1317, 4
  %v1335 = vsel %vm186, %v1333, %v1334
  %v1336 = vrot.slane %v1318, 4
  %v1337 = vsel %vm186, %v1331, %v1336
  %v1338 = vrot.slane %v1319, 4
  %v1339 = vsel %vm186, %v1334, %v1338
  %1340 = vrot.lane.b32.xlu0 %v1332, 104
  %v1341 = vpop.permute.xlu0 %1340
  %1342 = vrot.lane.b32.xlu0 %v1335, 104
  %v1343 = vpop.permute.xlu0 %1342
  %1344 = vrot.lane.b32.xlu0 %v1337, 104
  %v1345 = vpop.permute.xlu0 %1344
  %1346 = vrot.lane.b32.xlu0 %v1339, 104
  %v1347 = vpop.permute.xlu0 %1346
  %v1348 = vsel %vm1025, %v1341, %v1343
  %v1349 = vsel %vm1025, %v1345, %v1347
  %v1352 = vadd.f32 %v1270, %v1348
  %v1353 = vadd.f32 %v1271, %v1349
  %v1358 = vrot.slane %v1320, 4
  %v1359 = vrot.slane %v1321, 4
  %v1360 = vrot.slane %v1322, 4
  %v1361 = vsel %vm186, %v1358, %v1360
  %v1362 = vrot.slane %v1323, 4
  %v1363 = vsel %vm186, %v1359, %v1362
  %1364 = vrot.lane.b32.xlu0 %v1358, 104
  %v1365 = vpop.permute.xlu0 %1364
  %1366 = vrot.lane.b32.xlu0 %v1359, 104
  %v1367 = vpop.permute.xlu0 %1366
  %1368 = vrot.lane.b32.xlu0 %v1361, 104
  %v1369 = vpop.permute.xlu0 %1368
  %1370 = vrot.lane.b32.xlu0 %v1363, 104
  %v1371 = vpop.permute.xlu0 %1370
  %1372 = vrot.lane.b32.xlu0 %v1360, 104
  %v1373 = vpop.permute.xlu0 %1372
  %1374 = vrot.lane.b32.xlu0 %v1362, 104
  %v1375 = vpop.permute.xlu0 %1374
  %v1376 = vsel %vm1025, %v1365, %v1367
  %v1377 = vsel %vm1025, %v1369, %v1371
  %v1378 = vsel %vm1025, %v1373, %v1375
  %v1382 = vadd.f32 %v1302, %v1376
  %v1383 = vadd.f32 %v1303, %v1377
  %v1384 = vadd.f32 %v1304, %v1378
  %v1385 = vld [vmem:[%s1 + $0x4] sm:$0x1]
  %v1386 = vlaneseq
  %v1387 = vshrl.u32 %v1386, 7
  %v1388 = vsub.s32 0, %v1387
  %v1389 = vrot.slane %v1385, %v1388
  %1391 = vrot.lane.b32.xlu0 %v1389, 32
  %v1392 = vpop.permute.xlu0 %1391
  %v1394 = vmul.f32 %v48, %v1392
  %v1395 = vmul.f32 %v207, %v1392
  %v1396 = vmul.f32 %v49, %v1392
  %v1397 = vmul.f32 %v208, %v1392
  %v1398 = vmul.f32 %v50, %v1392
  %v1399 = vmul.f32 %v209, %v1392
  %v1400 = vmul.f32 %v51, %v1392
  %v1401 = vmul.f32 %v210, %v1392
  %v1402 = vmul.f32 %v52, %v1392
  %v1403 = vmul.f32 %v211, %v1392
  %1408 = vrot.lane.b32.xlu0 %v1394, 96
  %v1409 = vpop.permute.xlu0 %1408
  %1410 = vrot.lane.b32.xlu0 %v1395, 96
  %v1411 = vpop.permute.xlu0 %1410
  %1412 = vrot.lane.b32.xlu0 %v1396, 96
  %v1413 = vpop.permute.xlu0 %1412
  %1414 = vrot.lane.b32.xlu0 %v1397, 96
  %v1415 = vpop.permute.xlu0 %1414
  %vm1416 = vcmask 785408
  %v1417 = vsel %vm1416, %v1409, %v1411
  %v1418 = vsel %vm1416, %v1413, %v1415
  %v1421 = vadd.f32 %v1352, %v1417
  %v1422 = vadd.f32 %v1353, %v1418
  %1429 = vrot.lane.b32.xlu0 %v1398, 96
  %v1430 = vpop.permute.xlu0 %1429
  %1431 = vrot.lane.b32.xlu0 %v1399, 96
  %v1432 = vpop.permute.xlu0 %1431
  %1433 = vrot.lane.b32.xlu0 %v1400, 96
  %v1434 = vpop.permute.xlu0 %1433
  %1435 = vrot.lane.b32.xlu0 %v1401, 96
  %v1436 = vpop.permute.xlu0 %1435
  %1437 = vrot.lane.b32.xlu0 %v1402, 96
  %v1438 = vpop.permute.xlu0 %1437
  %1439 = vrot.lane.b32.xlu0 %v1403, 96
  %v1440 = vpop.permute.xlu0 %1439
  %v1441 = vsel %vm1416, %v1430, %v1432
  %v1442 = vsel %vm1416, %v1434, %v1436
  %v1443 = vsel %vm1416, %v1438, %v1440
  %v1447 = vadd.f32 %v1382, %v1441
  %v1448 = vadd.f32 %v1383, %v1442
  %v1449 = vadd.f32 %v1384, %v1443
  %v1450 = vld [vmem:[%s1 + $0x9] sm:$0x1]
  %v1451 = vlaneseq
  %v1452 = vshrl.u32 %v1451, 7
  %v1453 = vsub.s32 0, %v1452
  %v1454 = vrot.slane %v1450, %v1453
  %1456 = vrot.lane.b32.xlu0 %v1454, 32
  %v1457 = vpop.permute.xlu0 %1456
  %v1459 = vmul.f32 %v48, %v1457
  %v1460 = vmul.f32 %v207, %v1457
  %v1461 = vmul.f32 %v49, %v1457
  %v1462 = vmul.f32 %v208, %v1457
  %v1463 = vmul.f32 %v50, %v1457
  %v1464 = vmul.f32 %v209, %v1457
  %v1465 = vmul.f32 %v51, %v1457
  %v1466 = vmul.f32 %v210, %v1457
  %v1467 = vmul.f32 %v52, %v1457
  %v1468 = vmul.f32 %v211, %v1457
  %v1475 = vrot.slane %v1459, 1
  %v1476 = vrot.slane %v1461, 1
  %v1477 = vsel %vm81, %v1475, %v1476
  %v1478 = vrot.slane %v1460, 1
  %v1479 = vrot.slane %v1462, 1
  %v1480 = vsel %vm81, %v1478, %v1479
  %v1481 = vrot.slane %v1463, 1
  %v1482 = vsel %vm81, %v1476, %v1481
  %v1483 = vrot.slane %v1464, 1
  %v1484 = vsel %vm81, %v1479, %v1483
  %1485 = vrot.lane.b32.xlu0 %v1477, 96
  %v1486 = vpop.permute.xlu0 %1485
  %1487 = vrot.lane.b32.xlu0 %v1480, 96
  %v1488 = vpop.permute.xlu0 %1487
  %1489 = vrot.lane.b32.xlu0 %v1482, 96
  %v1490 = vpop.permute.xlu0 %1489
  %1491 = vrot.lane.b32.xlu0 %v1484, 96
  %v1492 = vpop.permute.xlu0 %1491
  %v1493 = vsel %vm1416, %v1486, %v1488
  %v1494 = vsel %vm1416, %v1490, %v1492
  %v1497 = vadd.f32 %v1421, %v1493
  %v1498 = vadd.f32 %v1422, %v1494
  %v1503 = vrot.slane %v1465, 1
  %v1504 = vsel %vm81, %v1481, %v1503
  %v1505 = vrot.slane %v1466, 1
  %v1506 = vsel %vm81, %v1483, %v1505
  %v1507 = vrot.slane %v1467, 1
  %v1508 = vsel %vm81, %v1503, %v1507
  %v1509 = vrot.slane %v1468, 1
  %v1510 = vsel %vm81, %v1505, %v1509
  %1511 = vrot.lane.b32.xlu0 %v1504, 96
  %v1512 = vpop.permute.xlu0 %1511
  %1513 = vrot.lane.b32.xlu0 %v1506, 96
  %v1514 = vpop.permute.xlu0 %1513
  %1515 = vrot.lane.b32.xlu0 %v1508, 96
  %v1516 = vpop.permute.xlu0 %1515
  %1517 = vrot.lane.b32.xlu0 %v1510, 96
  %v1518 = vpop.permute.xlu0 %1517
  %1519 = vrot.lane.b32.xlu0 %v1507, 96
  %v1520 = vpop.permute.xlu0 %1519
  %1521 = vrot.lane.b32.xlu0 %v1509, 96
  %v1522 = vpop.permute.xlu0 %1521
  %v1523 = vsel %vm1416, %v1512, %v1514
  %v1524 = vsel %vm1416, %v1516, %v1518
  %v1525 = vsel %vm1416, %v1520, %v1522
  %v1529 = vadd.f32 %v1447, %v1523
  %v1530 = vadd.f32 %v1448, %v1524
  %v1531 = vadd.f32 %v1449, %v1525
  %v1532 = vld [vmem:[%s1 + $0xe] sm:$0x1]
  %v1533 = vlaneseq
  %v1534 = vshrl.u32 %v1533, 7
  %v1535 = vsub.s32 0, %v1534
  %v1536 = vrot.slane %v1532, %v1535
  %1538 = vrot.lane.b32.xlu0 %v1536, 32
  %v1539 = vpop.permute.xlu0 %1538
  %v1541 = vmul.f32 %v48, %v1539
  %v1542 = vmul.f32 %v207, %v1539
  %v1543 = vmul.f32 %v49, %v1539
  %v1544 = vmul.f32 %v208, %v1539
  %v1545 = vmul.f32 %v50, %v1539
  %v1546 = vmul.f32 %v209, %v1539
  %v1547 = vmul.f32 %v51, %v1539
  %v1548 = vmul.f32 %v210, %v1539
  %v1549 = vmul.f32 %v52, %v1539
  %v1550 = vmul.f32 %v211, %v1539
  %v1557 = vrot.slane %v1541, 2
  %v1558 = vrot.slane %v1543, 2
  %v1559 = vsel %vm116, %v1557, %v1558
  %v1560 = vrot.slane %v1542, 2
  %v1561 = vrot.slane %v1544, 2
  %v1562 = vsel %vm116, %v1560, %v1561
  %v1563 = vrot.slane %v1545, 2
  %v1564 = vsel %vm116, %v1558, %v1563
  %v1565 = vrot.slane %v1546, 2
  %v1566 = vsel %vm116, %v1561, %v1565
  %1567 = vrot.lane.b32.xlu0 %v1559, 96
  %v1568 = vpop.permute.xlu0 %1567
  %1569 = vrot.lane.b32.xlu0 %v1562, 96
  %v1570 = vpop.permute.xlu0 %1569
  %1571 = vrot.lane.b32.xlu0 %v1564, 96
  %v1572 = vpop.permute.xlu0 %1571
  %1573 = vrot.lane.b32.xlu0 %v1566, 96
  %v1574 = vpop.permute.xlu0 %1573
  %v1575 = vsel %vm1416, %v1568, %v1570
  %v1576 = vsel %vm1416, %v1572, %v1574
  %v1579 = vadd.f32 %v1497, %v1575
  %v1580 = vadd.f32 %v1498, %v1576
  %v1585 = vrot.slane %v1547, 2
  %v1586 = vsel %vm116, %v1563, %v1585
  %v1587 = vrot.slane %v1548, 2
  %v1588 = vsel %vm116, %v1565, %v1587
  %v1589 = vrot.slane %v1549, 2
  %v1590 = vsel %vm116, %v1585, %v1589
  %v1591 = vrot.slane %v1550, 2
  %v1592 = vsel %vm116, %v1587, %v1591
  %1593 = vrot.lane.b32.xlu0 %v1586, 96
  %v1594 = vpop.permute.xlu0 %1593
  %1595 = vrot.lane.b32.xlu0 %v1588, 96
  %v1596 = vpop.permute.xlu0 %1595
  %1597 = vrot.lane.b32.xlu0 %v1590, 96
  %v1598 = vpop.permute.xlu0 %1597
  %1599 = vrot.lane.b32.xlu0 %v1592, 96
  %v1600 = vpop.permute.xlu0 %1599
  %1601 = vrot.lane.b32.xlu0 %v1589, 96
  %v1602 = vpop.permute.xlu0 %1601
  %1603 = vrot.lane.b32.xlu0 %v1591, 96
  %v1604 = vpop.permute.xlu0 %1603
  %v1605 = vsel %vm1416, %v1594, %v1596
  %v1606 = vsel %vm1416, %v1598, %v1600
  %v1607 = vsel %vm1416, %v1602, %v1604
  %v1611 = vadd.f32 %v1529, %v1605
  %v1612 = vadd.f32 %v1530, %v1606
  %v1613 = vadd.f32 %v1531, %v1607
  %v1614 = vld [vmem:[%s1 + $0x13] sm:$0x1]
  %v1615 = vlaneseq
  %v1616 = vshrl.u32 %v1615, 7
  %v1617 = vsub.s32 0, %v1616
  %v1618 = vrot.slane %v1614, %v1617
  %1620 = vrot.lane.b32.xlu0 %v1618, 32
  %v1621 = vpop.permute.xlu0 %1620
  %v1623 = vmul.f32 %v48, %v1621
  %v1624 = vmul.f32 %v207, %v1621
  %v1625 = vmul.f32 %v49, %v1621
  %v1626 = vmul.f32 %v208, %v1621
  %v1627 = vmul.f32 %v50, %v1621
  %v1628 = vmul.f32 %v209, %v1621
  %v1629 = vmul.f32 %v51, %v1621
  %v1630 = vmul.f32 %v210, %v1621
  %v1631 = vmul.f32 %v52, %v1621
  %v1632 = vmul.f32 %v211, %v1621
  %v1639 = vrot.slane %v1623, 3
  %v1640 = vrot.slane %v1625, 3
  %v1641 = vsel %vm151, %v1639, %v1640
  %v1642 = vrot.slane %v1624, 3
  %v1643 = vrot.slane %v1626, 3
  %v1644 = vsel %vm151, %v1642, %v1643
  %v1645 = vrot.slane %v1627, 3
  %v1646 = vsel %vm151, %v1640, %v1645
  %v1647 = vrot.slane %v1628, 3
  %v1648 = vsel %vm151, %v1643, %v1647
  %1649 = vrot.lane.b32.xlu0 %v1641, 96
  %v1650 = vpop.permute.xlu0 %1649
  %1651 = vrot.lane.b32.xlu0 %v1644, 96
  %v1652 = vpop.permute.xlu0 %1651
  %1653 = vrot.lane.b32.xlu0 %v1646, 96
  %v1654 = vpop.permute.xlu0 %1653
  %1655 = vrot.lane.b32.xlu0 %v1648, 96
  %v1656 = vpop.permute.xlu0 %1655
  %v1657 = vsel %vm1416, %v1650, %v1652
  %v1658 = vsel %vm1416, %v1654, %v1656
  %v1661 = vadd.f32 %v1579, %v1657
  %v1662 = vadd.f32 %v1580, %v1658
  %v1667 = vrot.slane %v1629, 3
  %v1668 = vsel %vm151, %v1645, %v1667
  %v1669 = vrot.slane %v1630, 3
  %v1670 = vsel %vm151, %v1647, %v1669
  %v1671 = vrot.slane %v1631, 3
  %v1672 = vsel %vm151, %v1667, %v1671
  %v1673 = vrot.slane %v1632, 3
  %v1674 = vsel %vm151, %v1669, %v1673
  %1675 = vrot.lane.b32.xlu0 %v1668, 96
  %v1676 = vpop.permute.xlu0 %1675
  %1677 = vrot.lane.b32.xlu0 %v1670, 96
  %v1678 = vpop.permute.xlu0 %1677
  %1679 = vrot.lane.b32.xlu0 %v1672, 96
  %v1680 = vpop.permute.xlu0 %1679
  %1681 = vrot.lane.b32.xlu0 %v1674, 96
  %v1682 = vpop.permute.xlu0 %1681
  %1683 = vrot.lane.b32.xlu0 %v1671, 96
  %v1684 = vpop.permute.xlu0 %1683
  %1685 = vrot.lane.b32.xlu0 %v1673, 96
  %v1686 = vpop.permute.xlu0 %1685
  %v1687 = vsel %vm1416, %v1676, %v1678
  %v1688 = vsel %vm1416, %v1680, %v1682
  %v1689 = vsel %vm1416, %v1684, %v1686
  %v1693 = vadd.f32 %v1611, %v1687
  %v1694 = vadd.f32 %v1612, %v1688
  %v1695 = vadd.f32 %v1613, %v1689
  %v1696 = vld [vmem:[%s1 + $0x18] sm:$0x1]
  %v1697 = vlaneseq
  %v1698 = vshrl.u32 %v1697, 7
  %v1699 = vsub.s32 0, %v1698
  %v1700 = vrot.slane %v1696, %v1699
  %1702 = vrot.lane.b32.xlu0 %v1700, 32
  %v1703 = vpop.permute.xlu0 %1702
  %v1705 = vmul.f32 %v48, %v1703
  %v1706 = vmul.f32 %v207, %v1703
  %v1707 = vmul.f32 %v49, %v1703
  %v1708 = vmul.f32 %v208, %v1703
  %v1709 = vmul.f32 %v50, %v1703
  %v1710 = vmul.f32 %v209, %v1703
  %v1711 = vmul.f32 %v51, %v1703
  %v1712 = vmul.f32 %v210, %v1703
  %v1713 = vmul.f32 %v52, %v1703
  %v1714 = vmul.f32 %v211, %v1703
  %v1721 = vrot.slane %v1705, 4
  %v1722 = vrot.slane %v1707, 4
  %v1723 = vsel %vm186, %v1721, %v1722
  %v1724 = vrot.slane %v1706, 4
  %v1725 = vrot.slane %v1708, 4
  %v1726 = vsel %vm186, %v1724, %v1725
  %v1727 = vrot.slane %v1709, 4
  %v1728 = vsel %vm186, %v1722, %v1727
  %v1729 = vrot.slane %v1710, 4
  %v1730 = vsel %vm186, %v1725, %v1729
  %1731 = vrot.lane.b32.xlu0 %v1723, 96
  %v1732 = vpop.permute.xlu0 %1731
  %1733 = vrot.lane.b32.xlu0 %v1726, 96
  %v1734 = vpop.permute.xlu0 %1733
  %1735 = vrot.lane.b32.xlu0 %v1728, 96
  %v1736 = vpop.permute.xlu0 %1735
  %1737 = vrot.lane.b32.xlu0 %v1730, 96
  %v1738 = vpop.permute.xlu0 %1737
  %v1739 = vsel %vm1416, %v1732, %v1734
  %v1740 = vsel %vm1416, %v1736, %v1738
  %v1743 = vadd.f32 %v1661, %v1739
  %v1744 = vadd.f32 %v1662, %v1740
  %v1749 = vrot.slane %v1711, 4
  %v1750 = vrot.slane %v1712, 4
  %v1751 = vrot.slane %v1713, 4
  %v1752 = vsel %vm186, %v1749, %v1751
  %v1753 = vrot.slane %v1714, 4
  %v1754 = vsel %vm186, %v1750, %v1753
  %1755 = vrot.lane.b32.xlu0 %v1749, 96
  %v1756 = vpop.permute.xlu0 %1755
  %1757 = vrot.lane.b32.xlu0 %v1750, 96
  %v1758 = vpop.permute.xlu0 %1757
  %1759 = vrot.lane.b32.xlu0 %v1752, 96
  %v1760 = vpop.permute.xlu0 %1759
  %1761 = vrot.lane.b32.xlu0 %v1754, 96
  %v1762 = vpop.permute.xlu0 %1761
  %1763 = vrot.lane.b32.xlu0 %v1751, 96
  %v1764 = vpop.permute.xlu0 %1763
  %1765 = vrot.lane.b32.xlu0 %v1753, 96
  %v1766 = vpop.permute.xlu0 %1765
  %v1767 = vsel %vm1416, %v1756, %v1758
  %v1768 = vsel %vm1416, %v1760, %v1762
  %v1769 = vsel %vm1416, %v1764, %v1766
  %v1773 = vadd.f32 %v1693, %v1767
  %v1774 = vadd.f32 %v1694, %v1768
  %v1775 = vadd.f32 %v1695, %v1769
  %v1776 = vmax.f32 %v1743, 0.0
  %v1777 = vmax.f32 %v1744, 0.0
  %v1778 = vmax.f32 %v1773, 0.0
  %v1779 = vmax.f32 %v1774, 0.0
  %v1780 = vmax.f32 %v1775, 0.0
  %v1784 = vrot.slane %v1778, 4
  %v1785 = vrot.slane %v1779, 4
  %v1786 = vsel %vm186, %v1784, %v1785
  %v1787 = vrot.slane %v1780, 4
  %v1788 = vsel %vm186, %v1785, %v1787
  %v1791 = vld [vmem:[%s2] sm:$0xff]
  %v1792 = vld [vmem:[%s2 + $0x20] sm:$0xff]
  %v1793 = vld [vmem:[%s2 + $0x40] sm:$0xff]
  %v1794 = vld [vmem:[%s2 + $0x60] sm:$0xff]
  %v1795 = vld [vmem:[%s2 + $0x80] sm:$0xff]
  %v1796 = vld [vmem:[%s2 + $0xa0] sm:$0xff]
  %v1797 = vld [vmem:[%s2 + $0xc0] sm:$0xff]
  %v1798 = vld [vmem:[%s2 + $0xe0] sm:$0xff]
  %v1799 = vld [vmem:[%s2 + $0x100] sm:$0xff]
  %v1800 = vld [vmem:[%s2 + $0x120] sm:$0xff]
  %v1801 = vld [vmem:[%s2 + $0x140] sm:$0xff]
  %v1802 = vld [vmem:[%s2 + $0x160] sm:$0xff]
  %v1803 = vld [vmem:[%s2 + $0x180] sm:$0xff]
  %v1804 = vld [vmem:[%s2 + $0x1a0] sm:$0xff]
  %v1805 = vld [vmem:[%s2 + $0x1c0] sm:$0xff]
  %v1806 = vld [vmem:[%s2 + $0x1e0] sm:$0xff]
  %1807 = vmatprep.subr.mxu0 0.0
  %1808 = vmatpush1.msra.mxu0 %v1791
  %1809 = vmatprep.subr.mxu0 0.0
  %1810 = vmatpush1.msra.mxu0 %v1792
  %1811 = vmatprep.subr.mxu0 0.0
  %1812 = vmatpush1.msra.mxu0 %v1793
  %1813 = vmatprep.subr.mxu0 0.0
  %1814 = vmatpush1.msra.mxu0 %v1794
  %1815 = vmatprep.subr.mxu0 0.0
  %1816 = vmatpush1.msra.mxu0 %v1795
  %1817 = vmatprep.subr.mxu0 0.0
  %1818 = vmatpush1.msra.mxu0 %v1796
  %1819 = vmatprep.subr.mxu0 0.0
  %1820 = vmatpush1.msra.mxu0 %v1797
  %1821 = vmatprep.subr.mxu0 0.0
  %1822 = vmatpush1.msra.mxu0 %v1798
  %1823 = vmatprep.subr.mxu0 0.0
  %1824 = vmatpush1.msra.mxu0 %v1799
  %1825 = vmatprep.subr.mxu0 0.0
  %1826 = vmatpush1.msra.mxu0 %v1800
  %1827 = vmatprep.subr.mxu0 0.0
  %1828 = vmatpush1.msra.mxu0 %v1801
  %1829 = vmatprep.subr.mxu0 0.0
  %1830 = vmatpush1.msra.mxu0 %v1802
  %1831 = vmatprep.subr.mxu0 0.0
  %1832 = vmatpush1.msra.mxu0 %v1803
  %1833 = vmatprep.subr.mxu0 0.0
  %1834 = vmatpush1.msra.mxu0 %v1804
  %1835 = vmatprep.subr.mxu0 0.0
  %1836 = vmatpush1.msra.mxu0 %v1805
  %1837 = vmatprep.subr.mxu0 0.0
  %1838 = vmatpush1.msra.mxu0 %v1806
  %1839 = vmatprep.subr.mxu0 0.0
  %1840 = vmatpush1.msra.mxu0 0.0
  %1841 = vmatprep.subr.mxu0 0.0
  %1842 = vmatpush1.msra.mxu0 0.0
  %1843 = vmatprep.subr.mxu0 0.0
  %1844 = vmatpush1.msra.mxu0 0.0
  %1845 = vmatprep.subr.mxu0 0.0
  %1846 = vmatpush1.msra.mxu0 0.0
  %1847 = vmatprep.subr.mxu0 0.0
  %1848 = vmatpush1.msra.mxu0 0.0
  %1849 = vmatprep.subr.mxu0 0.0
  %1850 = vmatpush1.msra.mxu0 0.0
  %1851 = vmatprep.subr.mxu0 0.0
  %1852 = vmatpush1.msra.mxu0 0.0
  %1853 = vmatprep.subr.mxu0 0.0
  %1854 = vmatpush1.msra.mxu0 0.0
  %1855 = vmatprep.subr.mxu0 0.0
  %1856 = vmatpush1.msra.mxu0 0.0
  %1857 = vmatprep.subr.mxu0 0.0
  %1858 = vmatpush1.msra.mxu0 0.0
  %1859 = vmatprep.subr.mxu0 0.0
  %1860 = vmatpush1.msra.mxu0 0.0
  %1861 = vmatprep.subr.mxu0 0.0
  %1862 = vmatpush1.msra.mxu0 0.0
  %1863 = vmatprep.subr.mxu0 0.0
  %1864 = vmatpush1.msra.mxu0 0.0
  %1865 = vmatprep.subr.mxu0 0.0
  %1866 = vmatpush1.msra.mxu0 0.0
  %1867 = vmatprep.subr.mxu0 0.0
  %1868 = vmatpush1.msra.mxu0 0.0
  %1869 = vmatprep.subr.mxu0 0.0
  %1870 = vmatpush1.msra.mxu0 0.0
  %1871 = vmatprep.mubr.f32.mxu0 0.0
  %1872 = vmatmul.mubr.f32.gmra.mrb[0].mxu0 %v1776
  %v1873 = vpop.f32.mrb[0].mxu0
  %v1874 = vadd.f32 %v43, %v1873
  %v1875 = vpop.f32.mrb[0].mxu0
  %1876 = vmatprep.mubr.f32.mxu0 0.0
  %1877 = vmatmul.mubr.f32.gmra.mrb[0].mxu0 %v1777
  %v1878 = vpop.f32.mrb[0].mxu0
  %v1879 = vadd.f32 %v43, %v1878
  %v1880 = vpop.f32.mrb[0].mxu0
  %1881 = vmatprep.mubr.f32.mxu0 0.0
  %1882 = vmatmul.mubr.f32.gmra.mrb[0].mxu0 %v1786
  %v1883 = vpop.f32.mrb[0].mxu0
  %v1884 = vadd.f32 %v43, %v1883
  %v1885 = vpop.f32.mrb[0].mxu0
  %1886 = vmatprep.mubr.f32.mxu0 0.0
  %1887 = vmatmul.mubr.f32.gmra.mrb[0].mxu0 %v1788
  %v1888 = vpop.f32.mrb[0].mxu0
  %v1889 = vadd.f32 %v43, %v1888
  %v1890 = vpop.f32.mrb[0].mxu0
  %1891 = vdwg.mxu0
  %vm1894 = vcmask 1041408
  %v1895 = vrot.slane %v1874, 6
  %v1896 = vrot.slane %v1879, 6
  %v1897 = vsel %vm1894, %v1895, %v1896
  %1898 = vrot.lane.b32.xlu0 %v1895, 16
  %v1899 = vpop.permute.xlu0 %1898
  %1900 = vrot.lane.b32.xlu0 %v1897, 16
  %v1901 = vpop.permute.xlu0 %1900
  %1902 = vrot.lane.b32.xlu0 %v1896, 16
  %v1903 = vpop.permute.xlu0 %1902
  %vm1907 = vcmask 1047682
  %1908 = vst.msk [vmem:[#allocation2] sm:$0xfc] %vm1907, %v1899
  %vm1909 = vcmask 130050
  %1910 = vst.msk [vmem:[#allocation2 + $0x8] sm:$0xfc] %vm1909, %v1899
  %vm1911 = vcmask 1047680
  %1912 = vst.msk [vmem:[#allocation2 + $0x10] sm:$0xff] %vm1911, %v1901
  %vm1913 = vcmask 130048
  %1914 = vst.msk [vmem:[#allocation2 + $0x18] sm:$0xff] %vm1913, %v1901
  %vm1915 = vcmask 1041536
  %1916 = vst.msk [vmem:[#allocation2 + $0x20] sm:$0x3] %vm1915, %v1903
  %vm1917 = vcmask 123904
  %1918 = vst.msk [vmem:[#allocation2 + $0x28] sm:$0x3] %vm1917, %v1903
  %v1921 = vrot.slane %v1884, 2
  %v1922 = vrot.slane %v1889, 2
  %v1923 = vsel %vm116, %v1921, %v1922
  %1924 = vrot.lane.b32.xlu0 %v1921, 16
  %v1925 = vpop.permute.xlu0 %1924
  %1926 = vrot.lane.b32.xlu0 %v1923, 16
  %v1927 = vpop.permute.xlu0 %1926
  %1928 = vrot.lane.b32.xlu0 %v1922, 16
  %v1929 = vpop.permute.xlu0 %1928
  %vm1933 = vcmask 1047686
  %1934 = vst.msk [vmem:[#allocation2 + $0x20] sm:$0xc0] %vm1933, %v1925
  %vm1935 = vcmask 130054
  %1936 = vst.msk [vmem:[#allocation2 + $0x28] sm:$0xc0] %vm1935, %v1925
  %1937 = vst.msk [vmem:[#allocation2 + $0x30] sm:$0xff] %vm1911, %v1927
  %1938 = vst.msk [vmem:[#allocation2 + $0x38] sm:$0xff] %vm1913, %v1927
  %vm1939 = vcmask 1045632
  %1940 = vst.msk [vmem:[#allocation2 + $0x40] sm:$0x3f] %vm1939, %v1929
  %vm1941 = vcmask 128000
  %1942 = vst.msk [vmem:[#allocation2 + $0x48] sm:$0x3f] %vm1941, %v1929
  %v1943 = vld [vmem:[#allocation2] sm:$0xff]
  %v1944 = vld [vmem:[#allocation2 + $0x10] sm:$0xff]
  %v1945 = vld [vmem:[#allocation2 + $0x20] sm:$0xff]
  %v1946 = vld [vmem:[#allocation2 + $0x30] sm:$0xff]
  %v1947 = vld [vmem:[#allocation2 + $0x40] sm:$0xff]
  %v1948 = vld [vmem:[%s1 + $0x19] sm:$0x1]
  %v1949 = vlaneseq
  %v1950 = vshrl.u32 %v1949, 7
  %v1951 = vsub.s32 0, %v1950
  %v1952 = vrot.slane %v1948, %v1951
  %v1953 = vmul.f32 %v1943, %v1952
  %v1954 = vmul.f32 %v1944, %v1952
  %v1955 = vmul.f32 %v1945, %v1952
  %v1956 = vmul.f32 %v1946, %v1952
  %v1957 = vmul.f32 %v1947, %v1952
  %v1958 = vadd.f32 %v44, %v1953
  %v1959 = vadd.f32 %v44, %v1954
  %v1960 = vadd.f32 %v44, %v1955
  %v1961 = vadd.f32 %v44, %v1956
  %v1962 = vadd.f32 %v44, %v1957
  %v1963 = vld [vmem:[%s1 + $0x1e] sm:$0x1]
  %v1964 = vlaneseq
  %v1965 = vshrl.u32 %v1964, 7
  %v1966 = vsub.s32 0, %v1965
  %v1967 = vrot.slane %v1963, %v1966
  %v1968 = vmul.f32 %v1943, %v1967
  %v1969 = vmul.f32 %v1944, %v1967
  %v1970 = vmul.f32 %v1945, %v1967
  %v1971 = vmul.f32 %v1946, %v1967
  %v1972 = vmul.f32 %v1947, %v1967
  %v1976 = vrot.slane %v1968, 1
  %v1977 = vrot.slane %v1969, 1
  %v1978 = vsel %vm81, %v1976, %v1977
  %v1979 = vrot.slane %v1970, 1
  %v1980 = vsel %vm81, %v1977, %v1979
  %v1983 = vadd.f32 %v1958, %v1978
  %v1984 = vadd.f32 %v1959, %v1980
  %v1987 = vrot.slane %v1971, 1
  %v1988 = vsel %vm81, %v1979, %v1987
  %v1989 = vrot.slane %v1972, 1
  %v1990 = vsel %vm81, %v1987, %v1989
  %v1994 = vadd.f32 %v1960, %v1988
  %v1995 = vadd.f32 %v1961, %v1990
  %v1996 = vadd.f32 %v1962, %v1989
  %v1997 = vld [vmem:[%s1 + $0x23] sm:$0x1]
  %v1998 = vlaneseq
  %v1999 = vshrl.u32 %v1998, 7
  %v2000 = vsub.s32 0, %v1999
  %v2001 = vrot.slane %v1997, %v2000
  %v2002 = vmul.f32 %v1943, %v2001
  %v2003 = vmul.f32 %v1944, %v2001
  %v2004 = vmul.f32 %v1945, %v2001
  %v2005 = vmul.f32 %v1946, %v2001
  %v2006 = vmul.f32 %v1947, %v2001
  %v2010 = vrot.slane %v2002, 2
  %v2011 = vrot.slane %v2003, 2
  %v2012 = vsel %vm116, %v2010, %v2011
  %v2013 = vrot.slane %v2004, 2
  %v2014 = vsel %vm116, %v2011, %v2013
  %v2017 = vadd.f32 %v1983, %v2012
  %v2018 = vadd.f32 %v1984, %v2014
  %v2021 = vrot.slane %v2005, 2
  %v2022 = vsel %vm116, %v2013, %v2021
  %v2023 = vrot.slane %v2006, 2
  %v2024 = vsel %vm116, %v2021, %v2023
  %v2028 = vadd.f32 %v1994, %v2022
  %v2029 = vadd.f32 %v1995, %v2024
  %v2030 = vadd.f32 %v1996, %v2023
  %v2031 = vld [vmem:[%s1 + $0x28] sm:$0x1]
  %v2032 = vlaneseq
  %v2033 = vshrl.u32 %v2032, 7
  %v2034 = vsub.s32 0, %v2033
  %v2035 = vrot.slane %v2031, %v2034
  %v2036 = vmul.f32 %v1943, %v2035
  %v2037 = vmul.f32 %v1944, %v2035
  %v2038 = vmul.f32 %v1945, %v2035
  %v2039 = vmul.f32 %v1946, %v2035
  %v2040 = vmul.f32 %v1947, %v2035
  %v2044 = vrot.slane %v2036, 3
  %v2045 = vrot.slane %v2037, 3
  %v2046 = vsel %vm151, %v2044, %v2045
  %v2047 = vrot.slane %v2038, 3
  %v2048 = vsel %vm151, %v2045, %v2047
  %v2051 = vadd.f32 %v2017, %v2046
  %v2052 = vadd.f32 %v2018, %v2048
  %v2055 = vrot.slane %v2039, 3
  %v2056 = vsel %vm151, %v2047, %v2055
  %v2057 = vrot.slane %v2040, 3
  %v2058 = vsel %vm151, %v2055, %v2057
  %v2062 = vadd.f32 %v2028, %v2056
  %v2063 = vadd.f32 %v2029, %v2058
  %v2064 = vadd.f32 %v2030, %v2057
  %v2065 = vld [vmem:[%s1 + $0x2d] sm:$0x1]
  %v2066 = vlaneseq
  %v2067 = vshrl.u32 %v2066, 7
  %v2068 = vsub.s32 0, %v2067
  %v2069 = vrot.slane %v2065, %v2068
  %v2070 = vmul.f32 %v1943, %v2069
  %v2071 = vmul.f32 %v1944, %v2069
  %v2072 = vmul.f32 %v1945, %v2069
  %v2073 = vmul.f32 %v1946, %v2069
  %v2074 = vmul.f32 %v1947, %v2069
  %v2078 = vrot.slane %v2070, 4
  %v2079 = vrot.slane %v2071, 4
  %v2080 = vsel %vm186, %v2078, %v2079
  %v2081 = vrot.slane %v2072, 4
  %v2082 = vsel %vm186, %v2079, %v2081
  %v2085 = vadd.f32 %v2051, %v2080
  %v2086 = vadd.f32 %v2052, %v2082
  %v2089 = vrot.slane %v2073, 4
  %v2090 = vrot.slane %v2074, 4
  %v2091 = vsel %vm186, %v2089, %v2090
  %v2095 = vadd.f32 %v2062, %v2089
  %v2096 = vadd.f32 %v2063, %v2091
  %v2097 = vadd.f32 %v2064, %v2090
  %v2098 = vld [vmem:[#allocation2 + $0x8] sm:$0xff]
  %v2099 = vld [vmem:[#allocation2 + $0x18] sm:$0xff]
  %v2100 = vld [vmem:[#allocation2 + $0x28] sm:$0xff]
  %v2101 = vld [vmem:[#allocation2 + $0x38] sm:$0xff]
  %v2102 = vld [vmem:[#allocation2 + $0x48] sm:$0xff]
  %v2103 = vld [vmem:[%s1 + $0x1a] sm:$0x1]
  %v2104 = vlaneseq
  %v2105 = vshrl.u32 %v2104, 7
  %v2106 = vsub.s32 0, %v2105
  %v2107 = vrot.slane %v2103, %v2106
  %2109 = vrot.lane.b32.xlu0 %v2107, 8
  %v2110 = vpop.permute.xlu0 %2109
  %v2112 = vmul.f32 %v1943, %v2110
  %v2113 = vmul.f32 %v2098, %v2110
  %v2114 = vmul.f32 %v1944, %v2110
  %v2115 = vmul.f32 %v2099, %v2110
  %v2116 = vmul.f32 %v1945, %v2110
  %v2117 = vmul.f32 %v2100, %v2110
  %v2118 = vmul.f32 %v1946, %v2110
  %v2119 = vmul.f32 %v2101, %v2110
  %v2120 = vmul.f32 %v1947, %v2110
  %v2121 = vmul.f32 %v2102, %v2110
  %2126 = vrot.lane.b32.xlu0 %v2112, 120
  %v2127 = vpop.permute.xlu0 %2126
  %2128 = vrot.lane.b32.xlu0 %v2113, 120
  %v2129 = vpop.permute.xlu0 %2128
  %2130 = vrot.lane.b32.xlu0 %v2114, 120
  %v2131 = vpop.permute.xlu0 %2130
  %2132 = vrot.lane.b32.xlu0 %v2115, 120
  %v2133 = vpop.permute.xlu0 %2132
  %v2134 = vsel %vm243, %v2127, %v2129
  %v2135 = vsel %vm243, %v2131, %v2133
  %v2138 = vadd.f32 %v2085, %v2134
  %v2139 = vadd.f32 %v2086, %v2135
  %2146 = vrot.lane.b32.xlu0 %v2116, 120
  %v2147 = vpop.permute.xlu0 %2146
  %2148 = vrot.lane.b32.xlu0 %v2117, 120
  %v2149 = vpop.permute.xlu0 %2148
  %2150 = vrot.lane.b32.xlu0 %v2118, 120
  %v2151 = vpop.permute.xlu0 %2150
  %2152 = vrot.lane.b32.xlu0 %v2119, 120
  %v2153 = vpop.permute.xlu0 %2152
  %2154 = vrot.lane.b32.xlu0 %v2120, 120
  %v2155 = vpop.permute.xlu0 %2154
  %2156 = vrot.lane.b32.xlu0 %v2121, 120
  %v2157 = vpop.permute.xlu0 %2156
  %v2158 = vsel %vm243, %v2147, %v2149
  %v2159 = vsel %vm243, %v2151, %v2153
  %v2160 = vsel %vm243, %v2155, %v2157
  %v2164 = vadd.f32 %v2095, %v2158
  %v2165 = vadd.f32 %v2096, %v2159
  %v2166 = vadd.f32 %v2097, %v2160
  %v2167 = vld [vmem:[%s1 + $0x1f] sm:$0x1]
  %v2168 = vlaneseq
  %v2169 = vshrl.u32 %v2168, 7
  %v2170 = vsub.s32 0, %v2169
  %v2171 = vrot.slane %v2167, %v2170
  %2173 = vrot.lane.b32.xlu0 %v2171, 8
  %v2174 = vpop.permute.xlu0 %2173
  %v2176 = vmul.f32 %v1943, %v2174
  %v2177 = vmul.f32 %v2098, %v2174
  %v2178 = vmul.f32 %v1944, %v2174
  %v2179 = vmul.f32 %v2099, %v2174
  %v2180 = vmul.f32 %v1945, %v2174
  %v2181 = vmul.f32 %v2100, %v2174
  %v2182 = vmul.f32 %v1946, %v2174
  %v2183 = vmul.f32 %v2101, %v2174
  %v2184 = vmul.f32 %v1947, %v2174
  %v2185 = vmul.f32 %v2102, %v2174
  %v2192 = vrot.slane %v2176, 1
  %v2193 = vrot.slane %v2178, 1
  %v2194 = vsel %vm81, %v2192, %v2193
  %v2195 = vrot.slane %v2177, 1
  %v2196 = vrot.slane %v2179, 1
  %v2197 = vsel %vm81, %v2195, %v2196
  %v2198 = vrot.slane %v2180, 1
  %v2199 = vsel %vm81, %v2193, %v2198
  %v2200 = vrot.slane %v2181, 1
  %v2201 = vsel %vm81, %v2196, %v2200
  %2202 = vrot.lane.b32.xlu0 %v2194, 120
  %v2203 = vpop.permute.xlu0 %2202
  %2204 = vrot.lane.b32.xlu0 %v2197, 120
  %v2205 = vpop.permute.xlu0 %2204
  %2206 = vrot.lane.b32.xlu0 %v2199, 120
  %v2207 = vpop.permute.xlu0 %2206
  %2208 = vrot.lane.b32.xlu0 %v2201, 120
  %v2209 = vpop.permute.xlu0 %2208
  %v2210 = vsel %vm243, %v2203, %v2205
  %v2211 = vsel %vm243, %v2207, %v2209
  %v2214 = vadd.f32 %v2138, %v2210
  %v2215 = vadd.f32 %v2139, %v2211
  %v2220 = vrot.slane %v2182, 1
  %v2221 = vsel %vm81, %v2198, %v2220
  %v2222 = vrot.slane %v2183, 1
  %v2223 = vsel %vm81, %v2200, %v2222
  %v2224 = vrot.slane %v2184, 1
  %v2225 = vsel %vm81, %v2220, %v2224
  %v2226 = vrot.slane %v2185, 1
  %v2227 = vsel %vm81, %v2222, %v2226
  %2228 = vrot.lane.b32.xlu0 %v2221, 120
  %v2229 = vpop.permute.xlu0 %2228
  %2230 = vrot.lane.b32.xlu0 %v2223, 120
  %v2231 = vpop.permute.xlu0 %2230
  %2232 = vrot.lane.b32.xlu0 %v2225, 120
  %v2233 = vpop.permute.xlu0 %2232
  %2234 = vrot.lane.b32.xlu0 %v2227, 120
  %v2235 = vpop.permute.xlu0 %2234
  %2236 = vrot.lane.b32.xlu0 %v2224, 120
  %v2237 = vpop.permute.xlu0 %2236
  %2238 = vrot.lane.b32.xlu0 %v2226, 120
  %v2239 = vpop.permute.xlu0 %2238
  %v2240 = vsel %vm243, %v2229, %v2231
  %v2241 = vsel %vm243, %v2233, %v2235
  %v2242 = vsel %vm243, %v2237, %v2239
  %v2246 = vadd.f32 %v2164, %v2240
  %v2247 = vadd.f32 %v2165, %v2241
  %v2248 = vadd.f32 %v2166, %v2242
  %v2249 = vld [vmem:[%s1 + $0x24] sm:$0x1]
  %v2250 = vlaneseq
  %v2251 = vshrl.u32 %v2250, 7
  %v2252 = vsub.s32 0, %v2251
  %v2253 = vrot.slane %v2249, %v2252
  %2255 = vrot.lane.b32.xlu0 %v2253, 8
  %v2256 = vpop.permute.xlu0 %2255
  %v2258 = vmul.f32 %v1943, %v2256
  %v2259 = vmul.f32 %v2098, %v2256
  %v2260 = vmul.f32 %v1944, %v2256
  %v2261 = vmul.f32 %v2099, %v2256
  %v2262 = vmul.f32 %v1945, %v2256
  %v2263 = vmul.f32 %v2100, %v2256
  %v2264 = vmul.f32 %v1946, %v2256
  %v2265 = vmul.f32 %v2101, %v2256
  %v2266 = vmul.f32 %v1947, %v2256
  %v2267 = vmul.f32 %v2102, %v2256
  %v2274 = vrot.slane %v2258, 2
  %v2275 = vrot.slane %v2260, 2
  %v2276 = vsel %vm116, %v2274, %v2275
  %v2277 = vrot.slane %v2259, 2
  %v2278 = vrot.slane %v2261, 2
  %v2279 = vsel %vm116, %v2277, %v2278
  %v2280 = vrot.slane %v2262, 2
  %v2281 = vsel %vm116, %v2275, %v2280
  %v2282 = vrot.slane %v2263, 2
  %v2283 = vsel %vm116, %v2278, %v2282
  %2284 = vrot.lane.b32.xlu0 %v2276, 120
  %v2285 = vpop.permute.xlu0 %2284
  %2286 = vrot.lane.b32.xlu0 %v2279, 120
  %v2287 = vpop.permute.xlu0 %2286
  %2288 = vrot.lane.b32.xlu0 %v2281, 120
  %v2289 = vpop.permute.xlu0 %2288
  %2290 = vrot.lane.b32.xlu0 %v2283, 120
  %v2291 = vpop.permute.xlu0 %2290
  %v2292 = vsel %vm243, %v2285, %v2287
  %v2293 = vsel %vm243, %v2289, %v2291
  %v2296 = vadd.f32 %v2214, %v2292
  %v2297 = vadd.f32 %v2215, %v2293
  %v2302 = vrot.slane %v2264, 2
  %v2303 = vsel %vm116, %v2280, %v2302
  %v2304 = vrot.slane %v2265, 2
  %v2305 = vsel %vm116, %v2282, %v2304
  %v2306 = vrot.slane %v2266, 2
  %v2307 = vsel %vm116, %v2302, %v2306
  %v2308 = vrot.slane %v2267, 2
  %v2309 = vsel %vm116, %v2304, %v2308
  %2310 = vrot.lane.b32.xlu0 %v2303, 120
  %v2311 = vpop.permute.xlu0 %2310
  %2312 = vrot.lane.b32.xlu0 %v2305, 120
  %v2313 = vpop.permute.xlu0 %2312
  %2314 = vrot.lane.b32.xlu0 %v2307, 120
  %v2315 = vpop.permute.xlu0 %2314
  %2316 = vrot.lane.b32.xlu0 %v2309, 120
  %v2317 = vpop.permute.xlu0 %2316
  %2318 = vrot.lane.b32.xlu0 %v2306, 120
  %v2319 = vpop.permute.xlu0 %2318
  %2320 = vrot.lane.b32.xlu0 %v2308, 120
  %v2321 = vpop.permute.xlu0 %2320
  %v2322 = vsel %vm243, %v2311, %v2313
  %v2323 = vsel %vm243, %v2315, %v2317
  %v2324 = vsel %vm243, %v2319, %v2321
  %v2328 = vadd.f32 %v2246, %v2322
  %v2329 = vadd.f32 %v2247, %v2323
  %v2330 = vadd.f32 %v2248, %v2324
  %v2331 = vld [vmem:[%s1 + $0x29] sm:$0x1]
  %v2332 = vlaneseq
  %v2333 = vshrl.u32 %v2332, 7
  %v2334 = vsub.s32 0, %v2333
  %v2335 = vrot.slane %v2331, %v2334
  %2337 = vrot.lane.b32.xlu0 %v2335, 8
  %v2338 = vpop.permute.xlu0 %2337
  %v2340 = vmul.f32 %v1943, %v2338
  %v2341 = vmul.f32 %v2098, %v2338
  %v2342 = vmul.f32 %v1944, %v2338
  %v2343 = vmul.f32 %v2099, %v2338
  %v2344 = vmul.f32 %v1945, %v2338
  %v2345 = vmul.f32 %v2100, %v2338
  %v2346 = vmul.f32 %v1946, %v2338
  %v2347 = vmul.f32 %v2101, %v2338
  %v2348 = vmul.f32 %v1947, %v2338
  %v2349 = vmul.f32 %v2102, %v2338
  %v2356 = vrot.slane %v2340, 3
  %v2357 = vrot.slane %v2342, 3
  %v2358 = vsel %vm151, %v2356, %v2357
  %v2359 = vrot.slane %v2341, 3
  %v2360 = vrot.slane %v2343, 3
  %v2361 = vsel %vm151, %v2359, %v2360
  %v2362 = vrot.slane %v2344, 3
  %v2363 = vsel %vm151, %v2357, %v2362
  %v2364 = vrot.slane %v2345, 3
  %v2365 = vsel %vm151, %v2360, %v2364
  %2366 = vrot.lane.b32.xlu0 %v2358, 120
  %v2367 = vpop.permute.xlu0 %2366
  %2368 = vrot.lane.b32.xlu0 %v2361, 120
  %v2369 = vpop.permute.xlu0 %2368
  %2370 = vrot.lane.b32.xlu0 %v2363, 120
  %v2371 = vpop.permute.xlu0 %2370
  %2372 = vrot.lane.b32.xlu0 %v2365, 120
  %v2373 = vpop.permute.xlu0 %2372
  %v2374 = vsel %vm243, %v2367, %v2369
  %v2375 = vsel %vm243, %v2371, %v2373
  %v2378 = vadd.f32 %v2296, %v2374
  %v2379 = vadd.f32 %v2297, %v2375
  %v2384 = vrot.slane %v2346, 3
  %v2385 = vsel %vm151, %v2362, %v2384
  %v2386 = vrot.slane %v2347, 3
  %v2387 = vsel %vm151, %v2364, %v2386
  %v2388 = vrot.slane %v2348, 3
  %v2389 = vsel %vm151, %v2384, %v2388
  %v2390 = vrot.slane %v2349, 3
  %v2391 = vsel %vm151, %v2386, %v2390
  %2392 = vrot.lane.b32.xlu0 %v2385, 120
  %v2393 = vpop.permute.xlu0 %2392
  %2394 = vrot.lane.b32.xlu0 %v2387, 120
  %v2395 = vpop.permute.xlu0 %2394
  %2396 = vrot.lane.b32.xlu0 %v2389, 120
  %v2397 = vpop.permute.xlu0 %2396
  %2398 = vrot.lane.b32.xlu0 %v2391, 120
  %v2399 = vpop.permute.xlu0 %2398
  %2400 = vrot.lane.b32.xlu0 %v2388, 120
  %v2401 = vpop.permute.xlu0 %2400
  %2402 = vrot.lane.b32.xlu0 %v2390, 120
  %v2403 = vpop.permute.xlu0 %2402
  %v2404 = vsel %vm243, %v2393, %v2395
  %v2405 = vsel %vm243, %v2397, %v2399
  %v2406 = vsel %vm243, %v2401, %v2403
  %v2410 = vadd.f32 %v2328, %v2404
  %v2411 = vadd.f32 %v2329, %v2405
  %v2412 = vadd.f32 %v2330, %v2406
  %v2413 = vld [vmem:[%s1 + $0x2e] sm:$0x1]
  %v2414 = vlaneseq
  %v2415 = vshrl.u32 %v2414, 7
  %v2416 = vsub.s32 0, %v2415
  %v2417 = vrot.slane %v2413, %v2416
  %2419 = vrot.lane.b32.xlu0 %v2417, 8
  %v2420 = vpop.permute.xlu0 %2419
  %v2422 = vmul.f32 %v1943, %v2420
  %v2423 = vmul.f32 %v2098, %v2420
  %v2424 = vmul.f32 %v1944, %v2420
  %v2425 = vmul.f32 %v2099, %v2420
  %v2426 = vmul.f32 %v1945, %v2420
  %v2427 = vmul.f32 %v2100, %v2420
  %v2428 = vmul.f32 %v1946, %v2420
  %v2429 = vmul.f32 %v2101, %v2420
  %v2430 = vmul.f32 %v1947, %v2420
  %v2431 = vmul.f32 %v2102, %v2420
  %v2438 = vrot.slane %v2422, 4
  %v2439 = vrot.slane %v2424, 4
  %v2440 = vsel %vm186, %v2438, %v2439
  %v2441 = vrot.slane %v2423, 4
  %v2442 = vrot.slane %v2425, 4
  %v2443 = vsel %vm186, %v2441, %v2442
  %v2444 = vrot.slane %v2426, 4
  %v2445 = vsel %vm186, %v2439, %v2444
  %v2446 = vrot.slane %v2427, 4
  %v2447 = vsel %vm186, %v2442, %v2446
  %2448 = vrot.lane.b32.xlu0 %v2440, 120
  %v2449 = vpop.permute.xlu0 %2448
  %2450 = vrot.lane.b32.xlu0 %v2443, 120
  %v2451 = vpop.permute.xlu0 %2450
  %2452 = vrot.lane.b32.xlu0 %v2445, 120
  %v2453 = vpop.permute.xlu0 %2452
  %2454 = vrot.lane.b32.xlu0 %v2447, 120
  %v2455 = vpop.permute.xlu0 %2454
  %v2456 = vsel %vm243, %v2449, %v2451
  %v2457 = vsel %vm243, %v2453, %v2455
  %v2460 = vadd.f32 %v2378, %v2456
  %v2461 = vadd.f32 %v2379, %v2457
  %v2466 = vrot.slane %v2428, 4
  %v2467 = vrot.slane %v2429, 4
  %v2468 = vrot.slane %v2430, 4
  %v2469 = vsel %vm186, %v2466, %v2468
  %v2470 = vrot.slane %v2431, 4
  %v2471 = vsel %vm186, %v2467, %v2470
  %2472 = vrot.lane.b32.xlu0 %v2466, 120
  %v2473 = vpop.permute.xlu0 %2472
  %2474 = vrot.lane.b32.xlu0 %v2467, 120
  %v2475 = vpop.permute.xlu0 %2474
  %2476 = vrot.lane.b32.xlu0 %v2469, 120
  %v2477 = vpop.permute.xlu0 %2476
  %2478 = vrot.lane.b32.xlu0 %v2471, 120
  %v2479 = vpop.permute.xlu0 %2478
  %2480 = vrot.lane.b32.xlu0 %v2468, 120
  %v2481 = vpop.permute.xlu0 %2480
  %2482 = vrot.lane.b32.xlu0 %v2470, 120
  %v2483 = vpop.permute.xlu0 %2482
  %v2484 = vsel %vm243, %v2473, %v2475
  %v2485 = vsel %vm243, %v2477, %v2479
  %v2486 = vsel %vm243, %v2481, %v2483
  %v2490 = vadd.f32 %v2410, %v2484
  %v2491 = vadd.f32 %v2411, %v2485
  %v2492 = vadd.f32 %v2412, %v2486
  %v2493 = vld [vmem:[%s1 + $0x1b] sm:$0x1]
  %v2494 = vlaneseq
  %v2495 = vshrl.u32 %v2494, 7
  %v2496 = vsub.s32 0, %v2495
  %v2497 = vrot.slane %v2493, %v2496
  %2499 = vrot.lane.b32.xlu0 %v2497, 16
  %v2500 = vpop.permute.xlu0 %2499
  %v2502 = vmul.f32 %v1943, %v2500
  %v2503 = vmul.f32 %v2098, %v2500
  %v2504 = vmul.f32 %v1944, %v2500
  %v2505 = vmul.f32 %v2099, %v2500
  %v2506 = vmul.f32 %v1945, %v2500
  %v2507 = vmul.f32 %v2100, %v2500
  %v2508 = vmul.f32 %v1946, %v2500
  %v2509 = vmul.f32 %v2101, %v2500
  %v2510 = vmul.f32 %v1947, %v2500
  %v2511 = vmul.f32 %v2102, %v2500
  %2516 = vrot.lane.b32.xlu0 %v2502, 112
  %v2517 = vpop.permute.xlu0 %2516
  %2518 = vrot.lane.b32.xlu0 %v2503, 112
  %v2519 = vpop.permute.xlu0 %2518
  %2520 = vrot.lane.b32.xlu0 %v2504, 112
  %v2521 = vpop.permute.xlu0 %2520
  %2522 = vrot.lane.b32.xlu0 %v2505, 112
  %v2523 = vpop.permute.xlu0 %2522
  %v2524 = vsel %vm634, %v2517, %v2519
  %v2525 = vsel %vm634, %v2521, %v2523
  %v2528 = vadd.f32 %v2460, %v2524
  %v2529 = vadd.f32 %v2461, %v2525
  %2536 = vrot.lane.b32.xlu0 %v2506, 112
  %v2537 = vpop.permute.xlu0 %2536
  %2538 = vrot.lane.b32.xlu0 %v2507, 112
  %v2539 = vpop.permute.xlu0 %2538
  %2540 = vrot.lane.b32.xlu0 %v2508, 112
  %v2541 = vpop.permute.xlu0 %2540
  %2542 = vrot.lane.b32.xlu0 %v2509, 112
  %v2543 = vpop.permute.xlu0 %2542
  %2544 = vrot.lane.b32.xlu0 %v2510, 112
  %v2545 = vpop.permute.xlu0 %2544
  %2546 = vrot.lane.b32.xlu0 %v2511, 112
  %v2547 = vpop.permute.xlu0 %2546
  %v2548 = vsel %vm634, %v2537, %v2539
  %v2549 = vsel %vm634, %v2541, %v2543
  %v2550 = vsel %vm634, %v2545, %v2547
  %v2554 = vadd.f32 %v2490, %v2548
  %v2555 = vadd.f32 %v2491, %v2549
  %v2556 = vadd.f32 %v2492, %v2550
  %v2557 = vld [vmem:[%s1 + $0x20] sm:$0x1]
  %v2558 = vlaneseq
  %v2559 = vshrl.u32 %v2558, 7
  %v2560 = vsub.s32 0, %v2559
  %v2561 = vrot.slane %v2557, %v2560
  %2563 = vrot.lane.b32.xlu0 %v2561, 16
  %v2564 = vpop.permute.xlu0 %2563
  %v2566 = vmul.f32 %v1943, %v2564
  %v2567 = vmul.f32 %v2098, %v2564
  %v2568 = vmul.f32 %v1944, %v2564
  %v2569 = vmul.f32 %v2099, %v2564
  %v2570 = vmul.f32 %v1945, %v2564
  %v2571 = vmul.f32 %v2100, %v2564
  %v2572 = vmul.f32 %v1946, %v2564
  %v2573 = vmul.f32 %v2101, %v2564
  %v2574 = vmul.f32 %v1947, %v2564
  %v2575 = vmul.f32 %v2102, %v2564
  %v2582 = vrot.slane %v2566, 1
  %v2583 = vrot.slane %v2568, 1
  %v2584 = vsel %vm81, %v2582, %v2583
  %v2585 = vrot.slane %v2567, 1
  %v2586 = vrot.slane %v2569, 1
  %v2587 = vsel %vm81, %v2585, %v2586
  %v2588 = vrot.slane %v2570, 1
  %v2589 = vsel %vm81, %v2583, %v2588
  %v2590 = vrot.slane %v2571, 1
  %v2591 = vsel %vm81, %v2586, %v2590
  %2592 = vrot.lane.b32.xlu0 %v2584, 112
  %v2593 = vpop.permute.xlu0 %2592
  %2594 = vrot.lane.b32.xlu0 %v2587, 112
  %v2595 = vpop.permute.xlu0 %2594
  %2596 = vrot.lane.b32.xlu0 %v2589, 112
  %v2597 = vpop.permute.xlu0 %2596
  %2598 = vrot.lane.b32.xlu0 %v2591, 112
  %v2599 = vpop.permute.xlu0 %2598
  %v2600 = vsel %vm634, %v2593, %v2595
  %v2601 = vsel %vm634, %v2597, %v2599
  %v2604 = vadd.f32 %v2528, %v2600
  %v2605 = vadd.f32 %v2529, %v2601
  %v2610 = vrot.slane %v2572, 1
  %v2611 = vsel %vm81, %v2588, %v2610
  %v2612 = vrot.slane %v2573, 1
  %v2613 = vsel %vm81, %v2590, %v2612
  %v2614 = vrot.slane %v2574, 1
  %v2615 = vsel %vm81, %v2610, %v2614
  %v2616 = vrot.slane %v2575, 1
  %v2617 = vsel %vm81, %v2612, %v2616
  %2618 = vrot.lane.b32.xlu0 %v2611, 112
  %v2619 = vpop.permute.xlu0 %2618
  %2620 = vrot.lane.b32.xlu0 %v2613, 112
  %v2621 = vpop.permute.xlu0 %2620
  %2622 = vrot.lane.b32.xlu0 %v2615, 112
  %v2623 = vpop.permute.xlu0 %2622
  %2624 = vrot.lane.b32.xlu0 %v2617, 112
  %v2625 = vpop.permute.xlu0 %2624
  %2626 = vrot.lane.b32.xlu0 %v2614, 112
  %v2627 = vpop.permute.xlu0 %2626
  %2628 = vrot.lane.b32.xlu0 %v2616, 112
  %v2629 = vpop.permute.xlu0 %2628
  %v2630 = vsel %vm634, %v2619, %v2621
  %v2631 = vsel %vm634, %v2623, %v2625
  %v2632 = vsel %vm634, %v2627, %v2629
  %v2636 = vadd.f32 %v2554, %v2630
  %v2637 = vadd.f32 %v2555, %v2631
  %v2638 = vadd.f32 %v2556, %v2632
  %v2639 = vld [vmem:[%s1 + $0x25] sm:$0x1]
  %v2640 = vlaneseq
  %v2641 = vshrl.u32 %v2640, 7
  %v2642 = vsub.s32 0, %v2641
  %v2643 = vrot.slane %v2639, %v2642
  %2645 = vrot.lane.b32.xlu0 %v2643, 16
  %v2646 = vpop.permute.xlu0 %2645
  %v2648 = vmul.f32 %v1943, %v2646
  %v2649 = vmul.f32 %v2098, %v2646
  %v2650 = vmul.f32 %v1944, %v2646
  %v2651 = vmul.f32 %v2099, %v2646
  %v2652 = vmul.f32 %v1945, %v2646
  %v2653 = vmul.f32 %v2100, %v2646
  %v2654 = vmul.f32 %v1946, %v2646
  %v2655 = vmul.f32 %v2101, %v2646
  %v2656 = vmul.f32 %v1947, %v2646
  %v2657 = vmul.f32 %v2102, %v2646
  %v2664 = vrot.slane %v2648, 2
  %v2665 = vrot.slane %v2650, 2
  %v2666 = vsel %vm116, %v2664, %v2665
  %v2667 = vrot.slane %v2649, 2
  %v2668 = vrot.slane %v2651, 2
  %v2669 = vsel %vm116, %v2667, %v2668
  %v2670 = vrot.slane %v2652, 2
  %v2671 = vsel %vm116, %v2665, %v2670
  %v2672 = vrot.slane %v2653, 2
  %v2673 = vsel %vm116, %v2668, %v2672
  %2674 = vrot.lane.b32.xlu0 %v2666, 112
  %v2675 = vpop.permute.xlu0 %2674
  %2676 = vrot.lane.b32.xlu0 %v2669, 112
  %v2677 = vpop.permute.xlu0 %2676
  %2678 = vrot.lane.b32.xlu0 %v2671, 112
  %v2679 = vpop.permute.xlu0 %2678
  %2680 = vrot.lane.b32.xlu0 %v2673, 112
  %v2681 = vpop.permute.xlu0 %2680
  %v2682 = vsel %vm634, %v2675, %v2677
  %v2683 = vsel %vm634, %v2679, %v2681
  %v2686 = vadd.f32 %v2604, %v2682
  %v2687 = vadd.f32 %v2605, %v2683
  %v2692 = vrot.slane %v2654, 2
  %v2693 = vsel %vm116, %v2670, %v2692
  %v2694 = vrot.slane %v2655, 2
  %v2695 = vsel %vm116, %v2672, %v2694
  %v2696 = vrot.slane %v2656, 2
  %v2697 = vsel %vm116, %v2692, %v2696
  %v2698 = vrot.slane %v2657, 2
  %v2699 = vsel %vm116, %v2694, %v2698
  %2700 = vrot.lane.b32.xlu0 %v2693, 112
  %v2701 = vpop.permute.xlu0 %2700
  %2702 = vrot.lane.b32.xlu0 %v2695, 112
  %v2703 = vpop.permute.xlu0 %2702
  %2704 = vrot.lane.b32.xlu0 %v2697, 112
  %v2705 = vpop.permute.xlu0 %2704
  %2706 = vrot.lane.b32.xlu0 %v2699, 112
  %v2707 = vpop.permute.xlu0 %2706
  %2708 = vrot.lane.b32.xlu0 %v2696, 112
  %v2709 = vpop.permute.xlu0 %2708
  %2710 = vrot.lane.b32.xlu0 %v2698, 112
  %v2711 = vpop.permute.xlu0 %2710
  %v2712 = vsel %vm634, %v2701, %v2703
  %v2713 = vsel %vm634, %v2705, %v2707
  %v2714 = vsel %vm634, %v2709, %v2711
  %v2718 = vadd.f32 %v2636, %v2712
  %v2719 = vadd.f32 %v2637, %v2713
  %v2720 = vadd.f32 %v2638, %v2714
  %v2721 = vld [vmem:[%s1 + $0x2a] sm:$0x1]
  %v2722 = vlaneseq
  %v2723 = vshrl.u32 %v2722, 7
  %v2724 = vsub.s32 0, %v2723
  %v2725 = vrot.slane %v2721, %v2724
  %2727 = vrot.lane.b32.xlu0 %v2725, 16
  %v2728 = vpop.permute.xlu0 %2727
  %v2730 = vmul.f32 %v1943, %v2728
  %v2731 = vmul.f32 %v2098, %v2728
  %v2732 = vmul.f32 %v1944, %v2728
  %v2733 = vmul.f32 %v2099, %v2728
  %v2734 = vmul.f32 %v1945, %v2728
  %v2735 = vmul.f32 %v2100, %v2728
  %v2736 = vmul.f32 %v1946, %v2728
  %v2737 = vmul.f32 %v2101, %v2728
  %v2738 = vmul.f32 %v1947, %v2728
  %v2739 = vmul.f32 %v2102, %v2728
  %v2746 = vrot.slane %v2730, 3
  %v2747 = vrot.slane %v2732, 3
  %v2748 = vsel %vm151, %v2746, %v2747
  %v2749 = vrot.slane %v2731, 3
  %v2750 = vrot.slane %v2733, 3
  %v2751 = vsel %vm151, %v2749, %v2750
  %v2752 = vrot.slane %v2734, 3
  %v2753 = vsel %vm151, %v2747, %v2752
  %v2754 = vrot.slane %v2735, 3
  %v2755 = vsel %vm151, %v2750, %v2754
  %2756 = vrot.lane.b32.xlu0 %v2748, 112
  %v2757 = vpop.permute.xlu0 %2756
  %2758 = vrot.lane.b32.xlu0 %v2751, 112
  %v2759 = vpop.permute.xlu0 %2758
  %2760 = vrot.lane.b32.xlu0 %v2753, 112
  %v2761 = vpop.permute.xlu0 %2760
  %2762 = vrot.lane.b32.xlu0 %v2755, 112
  %v2763 = vpop.permute.xlu0 %2762
  %v2764 = vsel %vm634, %v2757, %v2759
  %v2765 = vsel %vm634, %v2761, %v2763
  %v2768 = vadd.f32 %v2686, %v2764
  %v2769 = vadd.f32 %v2687, %v2765
  %v2774 = vrot.slane %v2736, 3
  %v2775 = vsel %vm151, %v2752, %v2774
  %v2776 = vrot.slane %v2737, 3
  %v2777 = vsel %vm151, %v2754, %v2776
  %v2778 = vrot.slane %v2738, 3
  %v2779 = vsel %vm151, %v2774, %v2778
  %v2780 = vrot.slane %v2739, 3
  %v2781 = vsel %vm151, %v2776, %v2780
  %2782 = vrot.lane.b32.xlu0 %v2775, 112
  %v2783 = vpop.permute.xlu0 %2782
  %2784 = vrot.lane.b32.xlu0 %v2777, 112
  %v2785 = vpop.permute.xlu0 %2784
  %2786 = vrot.lane.b32.xlu0 %v2779, 112
  %v2787 = vpop.permute.xlu0 %2786
  %2788 = vrot.lane.b32.xlu0 %v2781, 112
  %v2789 = vpop.permute.xlu0 %2788
  %2790 = vrot.lane.b32.xlu0 %v2778, 112
  %v2791 = vpop.permute.xlu0 %2790
  %2792 = vrot.lane.b32.xlu0 %v2780, 112
  %v2793 = vpop.permute.xlu0 %2792
  %v2794 = vsel %vm634, %v2783, %v2785
  %v2795 = vsel %vm634, %v2787, %v2789
  %v2796 = vsel %vm634, %v2791, %v2793
  %v2800 = vadd.f32 %v2718, %v2794
  %v2801 = vadd.f32 %v2719, %v2795
  %v2802 = vadd.f32 %v2720, %v2796
  %v2803 = vld [vmem:[%s1 + $0x2f] sm:$0x1]
  %v2804 = vlaneseq
  %v2805 = vshrl.u32 %v2804, 7
  %v2806 = vsub.s32 0, %v2805
  %v2807 = vrot.slane %v2803, %v2806
  %2809 = vrot.lane.b32.xlu0 %v2807, 16
  %v2810 = vpop.permute.xlu0 %2809
  %v2812 = vmul.f32 %v1943, %v2810
  %v2813 = vmul.f32 %v2098, %v2810
  %v2814 = vmul.f32 %v1944, %v2810
  %v2815 = vmul.f32 %v2099, %v2810
  %v2816 = vmul.f32 %v1945, %v2810
  %v2817 = vmul.f32 %v2100, %v2810
  %v2818 = vmul.f32 %v1946, %v2810
  %v2819 = vmul.f32 %v2101, %v2810
  %v2820 = vmul.f32 %v1947, %v2810
  %v2821 = vmul.f32 %v2102, %v2810
  %v2828 = vrot.slane %v2812, 4
  %v2829 = vrot.slane %v2814, 4
  %v2830 = vsel %vm186, %v2828, %v2829
  %v2831 = vrot.slane %v2813, 4
  %v2832 = vrot.slane %v2815, 4
  %v2833 = vsel %vm186, %v2831, %v2832
  %v2834 = vrot.slane %v2816, 4
  %v2835 = vsel %vm186, %v2829, %v2834
  %v2836 = vrot.slane %v2817, 4
  %v2837 = vsel %vm186, %v2832, %v2836
  %2838 = vrot.lane.b32.xlu0 %v2830, 112
  %v2839 = vpop.permute.xlu0 %2838
  %2840 = vrot.lane.b32.xlu0 %v2833, 112
  %v2841 = vpop.permute.xlu0 %2840
  %2842 = vrot.lane.b32.xlu0 %v2835, 112
  %v2843 = vpop.permute.xlu0 %2842
  %2844 = vrot.lane.b32.xlu0 %v2837, 112
  %v2845 = vpop.permute.xlu0 %2844
  %v2846 = vsel %vm634, %v2839, %v2841
  %v2847 = vsel %vm634, %v2843, %v2845
  %v2850 = vadd.f32 %v2768, %v2846
  %v2851 = vadd.f32 %v2769, %v2847
  %v2856 = vrot.slane %v2818, 4
  %v2857 = vrot.slane %v2819, 4
  %v2858 = vrot.slane %v2820, 4
  %v2859 = vsel %vm186, %v2856, %v2858
  %v2860 = vrot.slane %v2821, 4
  %v2861 = vsel %vm186, %v2857, %v2860
  %2862 = vrot.lane.b32.xlu0 %v2856, 112
  %v2863 = vpop.permute.xlu0 %2862
  %2864 = vrot.lane.b32.xlu0 %v2857, 112
  %v2865 = vpop.permute.xlu0 %2864
  %2866 = vrot.lane.b32.xlu0 %v2859, 112
  %v2867 = vpop.permute.xlu0 %2866
  %2868 = vrot.lane.b32.xlu0 %v2861, 112
  %v2869 = vpop.permute.xlu0 %2868
  %2870 = vrot.lane.b32.xlu0 %v2858, 112
  %v2871 = vpop.permute.xlu0 %2870
  %2872 = vrot.lane.b32.xlu0 %v2860, 112
  %v2873 = vpop.permute.xlu0 %2872
  %v2874 = vsel %vm634, %v2863, %v2865
  %v2875 = vsel %vm634, %v2867, %v2869
  %v2876 = vsel %vm634, %v2871, %v2873
  %v2880 = vadd.f32 %v2800, %v2874
  %v2881 = vadd.f32 %v2801, %v2875
  %v2882 = vadd.f32 %v2802, %v2876
  %v2883 = vld [vmem:[%s1 + $0x1c] sm:$0x1]
  %v2884 = vlaneseq
  %v2885 = vshrl.u32 %v2884, 7
  %v2886 = vsub.s32 0, %v2885
  %v2887 = vrot.slane %v2883, %v2886
  %2889 = vrot.lane.b32.xlu0 %v2887, 24
  %v2890 = vpop.permute.xlu0 %2889
  %v2892 = vmul.f32 %v1943, %v2890
  %v2893 = vmul.f32 %v2098, %v2890
  %v2894 = vmul.f32 %v1944, %v2890
  %v2895 = vmul.f32 %v2099, %v2890
  %v2896 = vmul.f32 %v1945, %v2890
  %v2897 = vmul.f32 %v2100, %v2890
  %v2898 = vmul.f32 %v1946, %v2890
  %v2899 = vmul.f32 %v2101, %v2890
  %v2900 = vmul.f32 %v1947, %v2890
  %v2901 = vmul.f32 %v2102, %v2890
  %2906 = vrot.lane.b32.xlu0 %v2892, 104
  %v2907 = vpop.permute.xlu0 %2906
  %2908 = vrot.lane.b32.xlu0 %v2893, 104
  %v2909 = vpop.permute.xlu0 %2908
  %2910 = vrot.lane.b32.xlu0 %v2894, 104
  %v2911 = vpop.permute.xlu0 %2910
  %2912 = vrot.lane.b32.xlu0 %v2895, 104
  %v2913 = vpop.permute.xlu0 %2912
  %v2914 = vsel %vm1025, %v2907, %v2909
  %v2915 = vsel %vm1025, %v2911, %v2913
  %v2918 = vadd.f32 %v2850, %v2914
  %v2919 = vadd.f32 %v2851, %v2915
  %2926 = vrot.lane.b32.xlu0 %v2896, 104
  %v2927 = vpop.permute.xlu0 %2926
  %2928 = vrot.lane.b32.xlu0 %v2897, 104
  %v2929 = vpop.permute.xlu0 %2928
  %2930 = vrot.lane.b32.xlu0 %v2898, 104
  %v2931 = vpop.permute.xlu0 %2930
  %2932 = vrot.lane.b32.xlu0 %v2899, 104
  %v2933 = vpop.permute.xlu0 %2932
  %2934 = vrot.lane.b32.xlu0 %v2900, 104
  %v2935 = vpop.permute.xlu0 %2934
  %2936 = vrot.lane.b32.xlu0 %v2901, 104
  %v2937 = vpop.permute.xlu0 %2936
  %v2938 = vsel %vm1025, %v2927, %v2929
  %v2939 = vsel %vm1025, %v2931, %v2933
  %v2940 = vsel %vm1025, %v2935, %v2937
  %v2944 = vadd.f32 %v2880, %v2938
  %v2945 = vadd.f32 %v2881, %v2939
  %v2946 = vadd.f32 %v2882, %v2940
  %v2947 = vld [vmem:[%s1 + $0x21] sm:$0x1]
  %v2948 = vlaneseq
  %v2949 = vshrl.u32 %v2948, 7
  %v2950 = vsub.s32 0, %v2949
  %v2951 = vrot.slane %v2947, %v2950
  %2953 = vrot.lane.b32.xlu0 %v2951, 24
  %v2954 = vpop.permute.xlu0 %2953
  %v2956 = vmul.f32 %v1943, %v2954
  %v2957 = vmul.f32 %v2098, %v2954
  %v2958 = vmul.f32 %v1944, %v2954
  %v2959 = vmul.f32 %v2099, %v2954
  %v2960 = vmul.f32 %v1945, %v2954
  %v2961 = vmul.f32 %v2100, %v2954
  %v2962 = vmul.f32 %v1946, %v2954
  %v2963 = vmul.f32 %v2101, %v2954
  %v2964 = vmul.f32 %v1947, %v2954
  %v2965 = vmul.f32 %v2102, %v2954
  %v2972 = vrot.slane %v2956, 1
  %v2973 = vrot.slane %v2958, 1
  %v2974 = vsel %vm81, %v2972, %v2973
  %v2975 = vrot.slane %v2957, 1
  %v2976 = vrot.slane %v2959, 1
  %v2977 = vsel %vm81, %v2975, %v2976
  %v2978 = vrot.slane %v2960, 1
  %v2979 = vsel %vm81, %v2973, %v2978
  %v2980 = vrot.slane %v2961, 1
  %v2981 = vsel %vm81, %v2976, %v2980
  %2982 = vrot.lane.b32.xlu0 %v2974, 104
  %v2983 = vpop.permute.xlu0 %2982
  %2984 = vrot.lane.b32.xlu0 %v2977, 104
  %v2985 = vpop.permute.xlu0 %2984
  %2986 = vrot.lane.b32.xlu0 %v2979, 104
  %v2987 = vpop.permute.xlu0 %2986
  %2988 = vrot.lane.b32.xlu0 %v2981, 104
  %v2989 = vpop.permute.xlu0 %2988
  %v2990 = vsel %vm1025, %v2983, %v2985
  %v2991 = vsel %vm1025, %v2987, %v2989
  %v2994 = vadd.f32 %v2918, %v2990
  %v2995 = vadd.f32 %v2919, %v2991
  %v3000 = vrot.slane %v2962, 1
  %v3001 = vsel %vm81, %v2978, %v3000
  %v3002 = vrot.slane %v2963, 1
  %v3003 = vsel %vm81, %v2980, %v3002
  %v3004 = vrot.slane %v2964, 1
  %v3005 = vsel %vm81, %v3000, %v3004
  %v3006 = vrot.slane %v2965, 1
  %v3007 = vsel %vm81, %v3002, %v3006
  %3008 = vrot.lane.b32.xlu0 %v3001, 104
  %v3009 = vpop.permute.xlu0 %3008
  %3010 = vrot.lane.b32.xlu0 %v3003, 104
  %v3011 = vpop.permute.xlu0 %3010
  %3012 = vrot.lane.b32.xlu0 %v3005, 104
  %v3013 = vpop.permute.xlu0 %3012
  %3014 = vrot.lane.b32.xlu0 %v3007, 104
  %v3015 = vpop.permute.xlu0 %3014
  %3016 = vrot.lane.b32.xlu0 %v3004, 104
  %v3017 = vpop.permute.xlu0 %3016
  %3018 = vrot.lane.b32.xlu0 %v3006, 104
  %v3019 = vpop.permute.xlu0 %3018
  %v3020 = vsel %vm1025, %v3009, %v3011
  %v3021 = vsel %vm1025, %v3013, %v3015
  %v3022 = vsel %vm1025, %v3017, %v3019
  %v3026 = vadd.f32 %v2944, %v3020
  %v3027 = vadd.f32 %v2945, %v3021
  %v3028 = vadd.f32 %v2946, %v3022
  %v3029 = vld [vmem:[%s1 + $0x26] sm:$0x1]
  %v3030 = vlaneseq
  %v3031 = vshrl.u32 %v3030, 7
  %v3032 = vsub.s32 0, %v3031
  %v3033 = vrot.slane %v3029, %v3032
  %3035 = vrot.lane.b32.xlu0 %v3033, 24
  %v3036 = vpop.permute.xlu0 %3035
  %v3038 = vmul.f32 %v1943, %v3036
  %v3039 = vmul.f32 %v2098, %v3036
  %v3040 = vmul.f32 %v1944, %v3036
  %v3041 = vmul.f32 %v2099, %v3036
  %v3042 = vmul.f32 %v1945, %v3036
  %v3043 = vmul.f32 %v2100, %v3036
  %v3044 = vmul.f32 %v1946, %v3036
  %v3045 = vmul.f32 %v2101, %v3036
  %v3046 = vmul.f32 %v1947, %v3036
  %v3047 = vmul.f32 %v2102, %v3036
  %v3054 = vrot.slane %v3038, 2
  %v3055 = vrot.slane %v3040, 2
  %v3056 = vsel %vm116, %v3054, %v3055
  %v3057 = vrot.slane %v3039, 2
  %v3058 = vrot.slane %v3041, 2
  %v3059 = vsel %vm116, %v3057, %v3058
  %v3060 = vrot.slane %v3042, 2
  %v3061 = vsel %vm116, %v3055, %v3060
  %v3062 = vrot.slane %v3043, 2
  %v3063 = vsel %vm116, %v3058, %v3062
  %3064 = vrot.lane.b32.xlu0 %v3056, 104
  %v3065 = vpop.permute.xlu0 %3064
  %3066 = vrot.lane.b32.xlu0 %v3059, 104
  %v3067 = vpop.permute.xlu0 %3066
  %3068 = vrot.lane.b32.xlu0 %v3061, 104
  %v3069 = vpop.permute.xlu0 %3068
  %3070 = vrot.lane.b32.xlu0 %v3063, 104
  %v3071 = vpop.permute.xlu0 %3070
  %v3072 = vsel %vm1025, %v3065, %v3067
  %v3073 = vsel %vm1025, %v3069, %v3071
  %v3076 = vadd.f32 %v2994, %v3072
  %v3077 = vadd.f32 %v2995, %v3073
  %v3082 = vrot.slane %v3044, 2
  %v3083 = vsel %vm116, %v3060, %v3082
  %v3084 = vrot.slane %v3045, 2
  %v3085 = vsel %vm116, %v3062, %v3084
  %v3086 = vrot.slane %v3046, 2
  %v3087 = vsel %vm116, %v3082, %v3086
  %v3088 = vrot.slane %v3047, 2
  %v3089 = vsel %vm116, %v3084, %v3088
  %3090 = vrot.lane.b32.xlu0 %v3083, 104
  %v3091 = vpop.permute.xlu0 %3090
  %3092 = vrot.lane.b32.xlu0 %v3085, 104
  %v3093 = vpop.permute.xlu0 %3092
  %3094 = vrot.lane.b32.xlu0 %v3087, 104
  %v3095 = vpop.permute.xlu0 %3094
  %3096 = vrot.lane.b32.xlu0 %v3089, 104
  %v3097 = vpop.permute.xlu0 %3096
  %3098 = vrot.lane.b32.xlu0 %v3086, 104
  %v3099 = vpop.permute.xlu0 %3098
  %3100 = vrot.lane.b32.xlu0 %v3088, 104
  %v3101 = vpop.permute.xlu0 %3100
  %v3102 = vsel %vm1025, %v3091, %v3093
  %v3103 = vsel %vm1025, %v3095, %v3097
  %v3104 = vsel %vm1025, %v3099, %v3101
  %v3108 = vadd.f32 %v3026, %v3102
  %v3109 = vadd.f32 %v3027, %v3103
  %v3110 = vadd.f32 %v3028, %v3104
  %v3111 = vld [vmem:[%s1 + $0x2b] sm:$0x1]
  %v3112 = vlaneseq
  %v3113 = vshrl.u32 %v3112, 7
  %v3114 = vsub.s32 0, %v3113
  %v3115 = vrot.slane %v3111, %v3114
  %3117 = vrot.lane.b32.xlu0 %v3115, 24
  %v3118 = vpop.permute.xlu0 %3117
  %v3120 = vmul.f32 %v1943, %v3118
  %v3121 = vmul.f32 %v2098, %v3118
  %v3122 = vmul.f32 %v1944, %v3118
  %v3123 = vmul.f32 %v2099, %v3118
  %v3124 = vmul.f32 %v1945, %v3118
  %v3125 = vmul.f32 %v2100, %v3118
  %v3126 = vmul.f32 %v1946, %v3118
  %v3127 = vmul.f32 %v2101, %v3118
  %v3128 = vmul.f32 %v1947, %v3118
  %v3129 = vmul.f32 %v2102, %v3118
  %v3136 = vrot.slane %v3120, 3
  %v3137 = vrot.slane %v3122, 3
  %v3138 = vsel %vm151, %v3136, %v3137
  %v3139 = vrot.slane %v3121, 3
  %v3140 = vrot.slane %v3123, 3
  %v3141 = vsel %vm151, %v3139, %v3140
  %v3142 = vrot.slane %v3124, 3
  %v3143 = vsel %vm151, %v3137, %v3142
  %v3144 = vrot.slane %v3125, 3
  %v3145 = vsel %vm151, %v3140, %v3144
  %3146 = vrot.lane.b32.xlu0 %v3138, 104
  %v3147 = vpop.permute.xlu0 %3146
  %3148 = vrot.lane.b32.xlu0 %v3141, 104
  %v3149 = vpop.permute.xlu0 %3148
  %3150 = vrot.lane.b32.xlu0 %v3143, 104
  %v3151 = vpop.permute.xlu0 %3150
  %3152 = vrot.lane.b32.xlu0 %v3145, 104
  %v3153 = vpop.permute.xlu0 %3152
  %v3154 = vsel %vm1025, %v3147, %v3149
  %v3155 = vsel %vm1025, %v3151, %v3153
  %v3158 = vadd.f32 %v3076, %v3154
  %v3159 = vadd.f32 %v3077, %v3155
  %v3164 = vrot.slane %v3126, 3
  %v3165 = vsel %vm151, %v3142, %v3164
  %v3166 = vrot.slane %v3127, 3
  %v3167 = vsel %vm151, %v3144, %v3166
  %v3168 = vrot.slane %v3128, 3
  %v3169 = vsel %vm151, %v3164, %v3168
  %v3170 = vrot.slane %v3129, 3
  %v3171 = vsel %vm151, %v3166, %v3170
  %3172 = vrot.lane.b32.xlu0 %v3165, 104
  %v3173 = vpop.permute.xlu0 %3172
  %3174 = vrot.lane.b32.xlu0 %v3167, 104
  %v3175 = vpop.permute.xlu0 %3174
  %3176 = vrot.lane.b32.xlu0 %v3169, 104
  %v3177 = vpop.permute.xlu0 %3176
  %3178 = vrot.lane.b32.xlu0 %v3171, 104
  %v3179 = vpop.permute.xlu0 %3178
  %3180 = vrot.lane.b32.xlu0 %v3168, 104
  %v3181 = vpop.permute.xlu0 %3180
  %3182 = vrot.lane.b32.xlu0 %v3170, 104
  %v3183 = vpop.permute.xlu0 %3182
  %v3184 = vsel %vm1025, %v3173, %v3175
  %v3185 = vsel %vm1025, %v3177, %v3179
  %v3186 = vsel %vm1025, %v3181, %v3183
  %v3190 = vadd.f32 %v3108, %v3184
  %v3191 = vadd.f32 %v3109, %v3185
  %v3192 = vadd.f32 %v3110, %v3186
  %v3193 = vld [vmem:[%s1 + $0x30] sm:$0x1]
  %v3194 = vlaneseq
  %v3195 = vshrl.u32 %v3194, 7
  %v3196 = vsub.s32 0, %v3195
  %v3197 = vrot.slane %v3193, %v3196
  %3199 = vrot.lane.b32.xlu0 %v3197, 24
  %v3200 = vpop.permute.xlu0 %3199
  %v3202 = vmul.f32 %v1943, %v3200
  %v3203 = vmul.f32 %v2098, %v3200
  %v3204 = vmul.f32 %v1944, %v3200
  %v3205 = vmul.f32 %v2099, %v3200
  %v3206 = vmul.f32 %v1945, %v3200
  %v3207 = vmul.f32 %v2100, %v3200
  %v3208 = vmul.f32 %v1946, %v3200
  %v3209 = vmul.f32 %v2101, %v3200
  %v3210 = vmul.f32 %v1947, %v3200
  %v3211 = vmul.f32 %v2102, %v3200
  %v3218 = vrot.slane %v3202, 4
  %v3219 = vrot.slane %v3204, 4
  %v3220 = vsel %vm186, %v3218, %v3219
  %v3221 = vrot.slane %v3203, 4
  %v3222 = vrot.slane %v3205, 4
  %v3223 = vsel %vm186, %v3221, %v3222
  %v3224 = vrot.slane %v3206, 4
  %v3225 = vsel %vm186, %v3219, %v3224
  %v3226 = vrot.slane %v3207, 4
  %v3227 = vsel %vm186, %v3222, %v3226
  %3228 = vrot.lane.b32.xlu0 %v3220, 104
  %v3229 = vpop.permute.xlu0 %3228
  %3230 = vrot.lane.b32.xlu0 %v3223, 104
  %v3231 = vpop.permute.xlu0 %3230
  %3232 = vrot.lane.b32.xlu0 %v3225, 104
  %v3233 = vpop.permute.xlu0 %3232
  %3234 = vrot.lane.b32.xlu0 %v3227, 104
  %v3235 = vpop.permute.xlu0 %3234
  %v3236 = vsel %vm1025, %v3229, %v3231
  %v3237 = vsel %vm1025, %v3233, %v3235
  %v3240 = vadd.f32 %v3158, %v3236
  %v3241 = vadd.f32 %v3159, %v3237
  %v3246 = vrot.slane %v3208, 4
  %v3247 = vrot.slane %v3209, 4
  %v3248 = vrot.slane %v3210, 4
  %v3249 = vsel %vm186, %v3246, %v3248
  %v3250 = vrot.slane %v3211, 4
  %v3251 = vsel %vm186, %v3247, %v3250
  %3252 = vrot.lane.b32.xlu0 %v3246, 104
  %v3253 = vpop.permute.xlu0 %3252
  %3254 = vrot.lane.b32.xlu0 %v3247, 104
  %v3255 = vpop.permute.xlu0 %3254
  %3256 = vrot.lane.b32.xlu0 %v3249, 104
  %v3257 = vpop.permute.xlu0 %3256
  %3258 = vrot.lane.b32.xlu0 %v3251, 104
  %v3259 = vpop.permute.xlu0 %3258
  %3260 = vrot.lane.b32.xlu0 %v3248, 104
  %v3261 = vpop.permute.xlu0 %3260
  %3262 = vrot.lane.b32.xlu0 %v3250, 104
  %v3263 = vpop.permute.xlu0 %3262
  %v3264 = vsel %vm1025, %v3253, %v3255
  %v3265 = vsel %vm1025, %v3257, %v3259
  %v3266 = vsel %vm1025, %v3261, %v3263
  %v3270 = vadd.f32 %v3190, %v3264
  %v3271 = vadd.f32 %v3191, %v3265
  %v3272 = vadd.f32 %v3192, %v3266
  %v3273 = vld [vmem:[%s1 + $0x1d] sm:$0x1]
  %v3274 = vlaneseq
  %v3275 = vshrl.u32 %v3274, 7
  %v3276 = vsub.s32 0, %v3275
  %v3277 = vrot.slane %v3273, %v3276
  %3279 = vrot.lane.b32.xlu0 %v3277, 32
  %v3280 = vpop.permute.xlu0 %3279
  %v3282 = vmul.f32 %v1943, %v3280
  %v3283 = vmul.f32 %v2098, %v3280
  %v3284 = vmul.f32 %v1944, %v3280
  %v3285 = vmul.f32 %v2099, %v3280
  %v3286 = vmul.f32 %v1945, %v3280
  %v3287 = vmul.f32 %v2100, %v3280
  %v3288 = vmul.f32 %v1946, %v3280
  %v3289 = vmul.f32 %v2101, %v3280
  %v3290 = vmul.f32 %v1947, %v3280
  %v3291 = vmul.f32 %v2102, %v3280
  %3296 = vrot.lane.b32.xlu0 %v3282, 96
  %v3297 = vpop.permute.xlu0 %3296
  %3298 = vrot.lane.b32.xlu0 %v3283, 96
  %v3299 = vpop.permute.xlu0 %3298
  %3300 = vrot.lane.b32.xlu0 %v3284, 96
  %v3301 = vpop.permute.xlu0 %3300
  %3302 = vrot.lane.b32.xlu0 %v3285, 96
  %v3303 = vpop.permute.xlu0 %3302
  %v3304 = vsel %vm1416, %v3297, %v3299
  %v3305 = vsel %vm1416, %v3301, %v3303
  %v3308 = vadd.f32 %v3240, %v3304
  %v3309 = vadd.f32 %v3241, %v3305
  %3316 = vrot.lane.b32.xlu0 %v3286, 96
  %v3317 = vpop.permute.xlu0 %3316
  %3318 = vrot.lane.b32.xlu0 %v3287, 96
  %v3319 = vpop.permute.xlu0 %3318
  %3320 = vrot.lane.b32.xlu0 %v3288, 96
  %v3321 = vpop.permute.xlu0 %3320
  %3322 = vrot.lane.b32.xlu0 %v3289, 96
  %v3323 = vpop.permute.xlu0 %3322
  %3324 = vrot.lane.b32.xlu0 %v3290, 96
  %v3325 = vpop.permute.xlu0 %3324
  %3326 = vrot.lane.b32.xlu0 %v3291, 96
  %v3327 = vpop.permute.xlu0 %3326
  %v3328 = vsel %vm1416, %v3317, %v3319
  %v3329 = vsel %vm1416, %v3321, %v3323
  %v3330 = vsel %vm1416, %v3325, %v3327
  %v3334 = vadd.f32 %v3270, %v3328
  %v3335 = vadd.f32 %v3271, %v3329
  %v3336 = vadd.f32 %v3272, %v3330
  %v3337 = vld [vmem:[%s1 + $0x22] sm:$0x1]
  %v3338 = vlaneseq
  %v3339 = vshrl.u32 %v3338, 7
  %v3340 = vsub.s32 0, %v3339
  %v3341 = vrot.slane %v3337, %v3340
  %3343 = vrot.lane.b32.xlu0 %v3341, 32
  %v3344 = vpop.permute.xlu0 %3343
  %v3346 = vmul.f32 %v1943, %v3344
  %v3347 = vmul.f32 %v2098, %v3344
  %v3348 = vmul.f32 %v1944, %v3344
  %v3349 = vmul.f32 %v2099, %v3344
  %v3350 = vmul.f32 %v1945, %v3344
  %v3351 = vmul.f32 %v2100, %v3344
  %v3352 = vmul.f32 %v1946, %v3344
  %v3353 = vmul.f32 %v2101, %v3344
  %v3354 = vmul.f32 %v1947, %v3344
  %v3355 = vmul.f32 %v2102, %v3344
  %v3362 = vrot.slane %v3346, 1
  %v3363 = vrot.slane %v3348, 1
  %v3364 = vsel %vm81, %v3362, %v3363
  %v3365 = vrot.slane %v3347, 1
  %v3366 = vrot.slane %v3349, 1
  %v3367 = vsel %vm81, %v3365, %v3366
  %v3368 = vrot.slane %v3350, 1
  %v3369 = vsel %vm81, %v3363, %v3368
  %v3370 = vrot.slane %v3351, 1
  %v3371 = vsel %vm81, %v3366, %v3370
  %3372 = vrot.lane.b32.xlu0 %v3364, 96
  %v3373 = vpop.permute.xlu0 %3372
  %3374 = vrot.lane.b32.xlu0 %v3367, 96
  %v3375 = vpop.permute.xlu0 %3374
  %3376 = vrot.lane.b32.xlu0 %v3369, 96
  %v3377 = vpop.permute.xlu0 %3376
  %3378 = vrot.lane.b32.xlu0 %v3371, 96
  %v3379 = vpop.permute.xlu0 %3378
  %v3380 = vsel %vm1416, %v3373, %v3375
  %v3381 = vsel %vm1416, %v3377, %v3379
  %v3384 = vadd.f32 %v3308, %v3380
  %v3385 = vadd.f32 %v3309, %v3381
  %v3390 = vrot.slane %v3352, 1
  %v3391 = vsel %vm81, %v3368, %v3390
  %v3392 = vrot.slane %v3353, 1
  %v3393 = vsel %vm81, %v3370, %v3392
  %v3394 = vrot.slane %v3354, 1
  %v3395 = vsel %vm81, %v3390, %v3394
  %v3396 = vrot.slane %v3355, 1
  %v3397 = vsel %vm81, %v3392, %v3396
  %3398 = vrot.lane.b32.xlu0 %v3391, 96
  %v3399 = vpop.permute.xlu0 %3398
  %3400 = vrot.lane.b32.xlu0 %v3393, 96
  %v3401 = vpop.permute.xlu0 %3400
  %3402 = vrot.lane.b32.xlu0 %v3395, 96
  %v3403 = vpop.permute.xlu0 %3402
  %3404 = vrot.lane.b32.xlu0 %v3397, 96
  %v3405 = vpop.permute.xlu0 %3404
  %3406 = vrot.lane.b32.xlu0 %v3394, 96
  %v3407 = vpop.permute.xlu0 %3406
  %3408 = vrot.lane.b32.xlu0 %v3396, 96
  %v3409 = vpop.permute.xlu0 %3408
  %v3410 = vsel %vm1416, %v3399, %v3401
  %v3411 = vsel %vm1416, %v3403, %v3405
  %v3412 = vsel %vm1416, %v3407, %v3409
  %v3416 = vadd.f32 %v3334, %v3410
  %v3417 = vadd.f32 %v3335, %v3411
  %v3418 = vadd.f32 %v3336, %v3412
  %v3419 = vld [vmem:[%s1 + $0x27] sm:$0x1]
  %v3420 = vlaneseq
  %v3421 = vshrl.u32 %v3420, 7
  %v3422 = vsub.s32 0, %v3421
  %v3423 = vrot.slane %v3419, %v3422
  %3425 = vrot.lane.b32.xlu0 %v3423, 32
  %v3426 = vpop.permute.xlu0 %3425
  %v3428 = vmul.f32 %v1943, %v3426
  %v3429 = vmul.f32 %v2098, %v3426
  %v3430 = vmul.f32 %v1944, %v3426
  %v3431 = vmul.f32 %v2099, %v3426
  %v3432 = vmul.f32 %v1945, %v3426
  %v3433 = vmul.f32 %v2100, %v3426
  %v3434 = vmul.f32 %v1946, %v3426
  %v3435 = vmul.f32 %v2101, %v3426
  %v3436 = vmul.f32 %v1947, %v3426
  %v3437 = vmul.f32 %v2102, %v3426
  %v3444 = vrot.slane %v3428, 2
  %v3445 = vrot.slane %v3430, 2
  %v3446 = vsel %vm116, %v3444, %v3445
  %v3447 = vrot.slane %v3429, 2
  %v3448 = vrot.slane %v3431, 2
  %v3449 = vsel %vm116, %v3447, %v3448
  %v3450 = vrot.slane %v3432, 2
  %v3451 = vsel %vm116, %v3445, %v3450
  %v3452 = vrot.slane %v3433, 2
  %v3453 = vsel %vm116, %v3448, %v3452
  %3454 = vrot.lane.b32.xlu0 %v3446, 96
  %v3455 = vpop.permute.xlu0 %3454
  %3456 = vrot.lane.b32.xlu0 %v3449, 96
  %v3457 = vpop.permute.xlu0 %3456
  %3458 = vrot.lane.b32.xlu0 %v3451, 96
  %v3459 = vpop.permute.xlu0 %3458
  %3460 = vrot.lane.b32.xlu0 %v3453, 96
  %v3461 = vpop.permute.xlu0 %3460
  %v3462 = vsel %vm1416, %v3455, %v3457
  %v3463 = vsel %vm1416, %v3459, %v3461
  %v3466 = vadd.f32 %v3384, %v3462
  %v3467 = vadd.f32 %v3385, %v3463
  %v3472 = vrot.slane %v3434, 2
  %v3473 = vsel %vm116, %v3450, %v3472
  %v3474 = vrot.slane %v3435, 2
  %v3475 = vsel %vm116, %v3452, %v3474
  %v3476 = vrot.slane %v3436, 2
  %v3477 = vsel %vm116, %v3472, %v3476
  %v3478 = vrot.slane %v3437, 2
  %v3479 = vsel %vm116, %v3474, %v3478
  %3480 = vrot.lane.b32.xlu0 %v3473, 96
  %v3481 = vpop.permute.xlu0 %3480
  %3482 = vrot.lane.b32.xlu0 %v3475, 96
  %v3483 = vpop.permute.xlu0 %3482
  %3484 = vrot.lane.b32.xlu0 %v3477, 96
  %v3485 = vpop.permute.xlu0 %3484
  %3486 = vrot.lane.b32.xlu0 %v3479, 96
  %v3487 = vpop.permute.xlu0 %3486
  %3488 = vrot.lane.b32.xlu0 %v3476, 96
  %v3489 = vpop.permute.xlu0 %3488
  %3490 = vrot.lane.b32.xlu0 %v3478, 96
  %v3491 = vpop.permute.xlu0 %3490
  %v3492 = vsel %vm1416, %v3481, %v3483
  %v3493 = vsel %vm1416, %v3485, %v3487
  %v3494 = vsel %vm1416, %v3489, %v3491
  %v3498 = vadd.f32 %v3416, %v3492
  %v3499 = vadd.f32 %v3417, %v3493
  %v3500 = vadd.f32 %v3418, %v3494
  %v3501 = vld [vmem:[%s1 + $0x2c] sm:$0x1]
  %v3502 = vlaneseq
  %v3503 = vshrl.u32 %v3502, 7
  %v3504 = vsub.s32 0, %v3503
  %v3505 = vrot.slane %v3501, %v3504
  %3507 = vrot.lane.b32.xlu0 %v3505, 32
  %v3508 = vpop.permute.xlu0 %3507
  %v3510 = vmul.f32 %v1943, %v3508
  %v3511 = vmul.f32 %v2098, %v3508
  %v3512 = vmul.f32 %v1944, %v3508
  %v3513 = vmul.f32 %v2099, %v3508
  %v3514 = vmul.f32 %v1945, %v3508
  %v3515 = vmul.f32 %v2100, %v3508
  %v3516 = vmul.f32 %v1946, %v3508
  %v3517 = vmul.f32 %v2101, %v3508
  %v3518 = vmul.f32 %v1947, %v3508
  %v3519 = vmul.f32 %v2102, %v3508
  %v3526 = vrot.slane %v3510, 3
  %v3527 = vrot.slane %v3512, 3
  %v3528 = vsel %vm151, %v3526, %v3527
  %v3529 = vrot.slane %v3511, 3
  %v3530 = vrot.slane %v3513, 3
  %v3531 = vsel %vm151, %v3529, %v3530
  %v3532 = vrot.slane %v3514, 3
  %v3533 = vsel %vm151, %v3527, %v3532
  %v3534 = vrot.slane %v3515, 3
  %v3535 = vsel %vm151, %v3530, %v3534
  %3536 = vrot.lane.b32.xlu0 %v3528, 96
  %v3537 = vpop.permute.xlu0 %3536
  %3538 = vrot.lane.b32.xlu0 %v3531, 96
  %v3539 = vpop.permute.xlu0 %3538
  %3540 = vrot.lane.b32.xlu0 %v3533, 96
  %v3541 = vpop.permute.xlu0 %3540
  %3542 = vrot.lane.b32.xlu0 %v3535, 96
  %v3543 = vpop.permute.xlu0 %3542
  %v3544 = vsel %vm1416, %v3537, %v3539
  %v3545 = vsel %vm1416, %v3541, %v3543
  %v3548 = vadd.f32 %v3466, %v3544
  %v3549 = vadd.f32 %v3467, %v3545
  %v3554 = vrot.slane %v3516, 3
  %v3555 = vsel %vm151, %v3532, %v3554
  %v3556 = vrot.slane %v3517, 3
  %v3557 = vsel %vm151, %v3534, %v3556
  %v3558 = vrot.slane %v3518, 3
  %v3559 = vsel %vm151, %v3554, %v3558
  %v3560 = vrot.slane %v3519, 3
  %v3561 = vsel %vm151, %v3556, %v3560
  %3562 = vrot.lane.b32.xlu0 %v3555, 96
  %v3563 = vpop.permute.xlu0 %3562
  %3564 = vrot.lane.b32.xlu0 %v3557, 96
  %v3565 = vpop.permute.xlu0 %3564
  %3566 = vrot.lane.b32.xlu0 %v3559, 96
  %v3567 = vpop.permute.xlu0 %3566
  %3568 = vrot.lane.b32.xlu0 %v3561, 96
  %v3569 = vpop.permute.xlu0 %3568
  %3570 = vrot.lane.b32.xlu0 %v3558, 96
  %v3571 = vpop.permute.xlu0 %3570
  %3572 = vrot.lane.b32.xlu0 %v3560, 96
  %v3573 = vpop.permute.xlu0 %3572
  %v3574 = vsel %vm1416, %v3563, %v3565
  %v3575 = vsel %vm1416, %v3567, %v3569
  %v3576 = vsel %vm1416, %v3571, %v3573
  %v3580 = vadd.f32 %v3498, %v3574
  %v3581 = vadd.f32 %v3499, %v3575
  %v3582 = vadd.f32 %v3500, %v3576
  %v3583 = vld [vmem:[%s1 + $0x31] sm:$0x1]
  %v3584 = vlaneseq
  %v3585 = vshrl.u32 %v3584, 7
  %v3586 = vsub.s32 0, %v3585
  %v3587 = vrot.slane %v3583, %v3586
  %3589 = vrot.lane.b32.xlu0 %v3587, 32
  %v3590 = vpop.permute.xlu0 %3589
  %v3592 = vmul.f32 %v1943, %v3590
  %v3593 = vmul.f32 %v2098, %v3590
  %v3594 = vmul.f32 %v1944, %v3590
  %v3595 = vmul.f32 %v2099, %v3590
  %v3596 = vmul.f32 %v1945, %v3590
  %v3597 = vmul.f32 %v2100, %v3590
  %v3598 = vmul.f32 %v1946, %v3590
  %v3599 = vmul.f32 %v2101, %v3590
  %v3600 = vmul.f32 %v1947, %v3590
  %v3601 = vmul.f32 %v2102, %v3590
  %v3608 = vrot.slane %v3592, 4
  %v3609 = vrot.slane %v3594, 4
  %v3610 = vsel %vm186, %v3608, %v3609
  %v3611 = vrot.slane %v3593, 4
  %v3612 = vrot.slane %v3595, 4
  %v3613 = vsel %vm186, %v3611, %v3612
  %v3614 = vrot.slane %v3596, 4
  %v3615 = vsel %vm186, %v3609, %v3614
  %v3616 = vrot.slane %v3597, 4
  %v3617 = vsel %vm186, %v3612, %v3616
  %3618 = vrot.lane.b32.xlu0 %v3610, 96
  %v3619 = vpop.permute.xlu0 %3618
  %3620 = vrot.lane.b32.xlu0 %v3613, 96
  %v3621 = vpop.permute.xlu0 %3620
  %3622 = vrot.lane.b32.xlu0 %v3615, 96
  %v3623 = vpop.permute.xlu0 %3622
  %3624 = vrot.lane.b32.xlu0 %v3617, 96
  %v3625 = vpop.permute.xlu0 %3624
  %v3626 = vsel %vm1416, %v3619, %v3621
  %v3627 = vsel %vm1416, %v3623, %v3625
  %v3630 = vadd.f32 %v3548, %v3626
  %v3631 = vadd.f32 %v3549, %v3627
  %v3636 = vrot.slane %v3598, 4
  %v3637 = vrot.slane %v3599, 4
  %v3638 = vrot.slane %v3600, 4
  %v3639 = vsel %vm186, %v3636, %v3638
  %v3640 = vrot.slane %v3601, 4
  %v3641 = vsel %vm186, %v3637, %v3640
  %3642 = vrot.lane.b32.xlu0 %v3636, 96
  %v3643 = vpop.permute.xlu0 %3642
  %3644 = vrot.lane.b32.xlu0 %v3637, 96
  %v3645 = vpop.permute.xlu0 %3644
  %3646 = vrot.lane.b32.xlu0 %v3639, 96
  %v3647 = vpop.permute.xlu0 %3646
  %3648 = vrot.lane.b32.xlu0 %v3641, 96
  %v3649 = vpop.permute.xlu0 %3648
  %3650 = vrot.lane.b32.xlu0 %v3638, 96
  %v3651 = vpop.permute.xlu0 %3650
  %3652 = vrot.lane.b32.xlu0 %v3640, 96
  %v3653 = vpop.permute.xlu0 %3652
  %v3654 = vsel %vm1416, %v3643, %v3645
  %v3655 = vsel %vm1416, %v3647, %v3649
  %v3656 = vsel %vm1416, %v3651, %v3653
  %v3660 = vadd.f32 %v3580, %v3654
  %v3661 = vadd.f32 %v3581, %v3655
  %v3662 = vadd.f32 %v3582, %v3656
  %v3663 = vmax.f32 %v3630, 0.0
  %v3664 = vmax.f32 %v3631, 0.0
  %v3665 = vmax.f32 %v3660, 0.0
  %v3666 = vmax.f32 %v3661, 0.0
  %v3667 = vmax.f32 %v3662, 0.0
  %v3671 = vrot.slane %v3665, 4
  %v3672 = vrot.slane %v3666, 4
  %v3673 = vsel %vm186, %v3671, %v3672
  %v3674 = vrot.slane %v3667, 4
  %v3675 = vsel %vm186, %v3672, %v3674
  %v3678 = vld [vmem:[%s2 + $0x8] sm:$0xff]
  %v3679 = vld [vmem:[%s2 + $0x28] sm:$0xff]
  %v3680 = vld [vmem:[%s2 + $0x48] sm:$0xff]
  %v3681 = vld [vmem:[%s2 + $0x68] sm:$0xff]
  %v3682 = vld [vmem:[%s2 + $0x88] sm:$0xff]
  %v3683 = vld [vmem:[%s2 + $0xa8] sm:$0xff]
  %v3684 = vld [vmem:[%s2 + $0xc8] sm:$0xff]
  %v3685 = vld [vmem:[%s2 + $0xe8] sm:$0xff]
  %v3686 = vld [vmem:[%s2 + $0x108] sm:$0xff]
  %v3687 = vld [vmem:[%s2 + $0x128] sm:$0xff]
  %v3688 = vld [vmem:[%s2 + $0x148] sm:$0xff]
  %v3689 = vld [vmem:[%s2 + $0x168] sm:$0xff]
  %v3690 = vld [vmem:[%s2 + $0x188] sm:$0xff]
  %v3691 = vld [vmem:[%s2 + $0x1a8] sm:$0xff]
  %v3692 = vld [vmem:[%s2 + $0x1c8] sm:$0xff]
  %v3693 = vld [vmem:[%s2 + $0x1e8] sm:$0xff]
  %3694 = vmatprep.subr.mxu0 0.0
  %3695 = vmatpush1.msra.mxu0 %v3678
  %3696 = vmatprep.subr.mxu0 0.0
  %3697 = vmatpush1.msra.mxu0 %v3679
  %3698 = vmatprep.subr.mxu0 0.0
  %3699 = vmatpush1.msra.mxu0 %v3680
  %3700 = vmatprep.subr.mxu0 0.0
  %3701 = vmatpush1.msra.mxu0 %v3681
  %3702 = vmatprep.subr.mxu0 0.0
  %3703 = vmatpush1.msra.mxu0 %v3682
  %3704 = vmatprep.subr.mxu0 0.0
  %3705 = vmatpush1.msra.mxu0 %v3683
  %3706 = vmatprep.subr.mxu0 0.0
  %3707 = vmatpush1.msra.mxu0 %v3684
  %3708 = vmatprep.subr.mxu0 0.0
  %3709 = vmatpush1.msra.mxu0 %v3685
  %3710 = vmatprep.subr.mxu0 0.0
  %3711 = vmatpush1.msra.mxu0 %v3686
  %3712 = vmatprep.subr.mxu0 0.0
  %3713 = vmatpush1.msra.mxu0 %v3687
  %3714 = vmatprep.subr.mxu0 0.0
  %3715 = vmatpush1.msra.mxu0 %v3688
  %3716 = vmatprep.subr.mxu0 0.0
  %3717 = vmatpush1.msra.mxu0 %v3689
  %3718 = vmatprep.subr.mxu0 0.0
  %3719 = vmatpush1.msra.mxu0 %v3690
  %3720 = vmatprep.subr.mxu0 0.0
  %3721 = vmatpush1.msra.mxu0 %v3691
  %3722 = vmatprep.subr.mxu0 0.0
  %3723 = vmatpush1.msra.mxu0 %v3692
  %3724 = vmatprep.subr.mxu0 0.0
  %3725 = vmatpush1.msra.mxu0 %v3693
  %3726 = vmatprep.subr.mxu0 0.0
  %3727 = vmatpush1.msra.mxu0 0.0
  %3728 = vmatprep.subr.mxu0 0.0
  %3729 = vmatpush1.msra.mxu0 0.0
  %3730 = vmatprep.subr.mxu0 0.0
  %3731 = vmatpush1.msra.mxu0 0.0
  %3732 = vmatprep.subr.mxu0 0.0
  %3733 = vmatpush1.msra.mxu0 0.0
  %3734 = vmatprep.subr.mxu0 0.0
  %3735 = vmatpush1.msra.mxu0 0.0
  %3736 = vmatprep.subr.mxu0 0.0
  %3737 = vmatpush1.msra.mxu0 0.0
  %3738 = vmatprep.subr.mxu0 0.0
  %3739 = vmatpush1.msra.mxu0 0.0
  %3740 = vmatprep.subr.mxu0 0.0
  %3741 = vmatpush1.msra.mxu0 0.0
  %3742 = vmatprep.subr.mxu0 0.0
  %3743 = vmatpush1.msra.mxu0 0.0
  %3744 = vmatprep.subr.mxu0 0.0
  %3745 = vmatpush1.msra.mxu0 0.0
  %3746 = vmatprep.subr.mxu0 0.0
  %3747 = vmatpush1.msra.mxu0 0.0
  %3748 = vmatprep.subr.mxu0 0.0
  %3749 = vmatpush1.msra.mxu0 0.0
  %3750 = vmatprep.subr.mxu0 0.0
  %3751 = vmatpush1.msra.mxu0 0.0
  %3752 = vmatprep.subr.mxu0 0.0
  %3753 = vmatpush1.msra.mxu0 0.0
  %3754 = vmatprep.subr.mxu0 0.0
  %3755 = vmatpush1.msra.mxu0 0.0
  %3756 = vmatprep.subr.mxu0 0.0
  %3757 = vmatpush1.msra.mxu0 0.0
  %3758 = vmatprep.mubr.f32.mxu0 0.0
  %3759 = vmatmul.mubr.f32.gmra.mrb[0].mxu0 %v3663
  %v3760 = vpop.f32.mrb[0].mxu0
  %v3761 = vadd.f32 %v45, %v3760
  %v3762 = vpop.f32.mrb[0].mxu0
  %3763 = vmatprep.mubr.f32.mxu0 0.0
  %3764 = vmatmul.mubr.f32.gmra.mrb[0].mxu0 %v3664
  %v3765 = vpop.f32.mrb[0].mxu0
  %v3766 = vadd.f32 %v45, %v3765
  %v3767 = vpop.f32.mrb[0].mxu0
  %3768 = vmatprep.mubr.f32.mxu0 0.0
  %3769 = vmatmul.mubr.f32.gmra.mrb[0].mxu0 %v3673
  %v3770 = vpop.f32.mrb[0].mxu0
  %v3771 = vadd.f32 %v45, %v3770
  %v3772 = vpop.f32.mrb[0].mxu0
  %3773 = vmatprep.mubr.f32.mxu0 0.0
  %3774 = vmatmul.mubr.f32.gmra.mrb[0].mxu0 %v3675
  %v3775 = vpop.f32.mrb[0].mxu0
  %v3776 = vadd.f32 %v45, %v3775
  %v3777 = vpop.f32.mrb[0].mxu0
  %3778 = vdwg.mxu0
  %v3779 = vld [vmem:[%s2 + $0x10] sm:$0xff]
  %v3780 = vld [vmem:[%s2 + $0x18] sm:$0xff]
  %v3781 = vld [vmem:[%s2 + $0x30] sm:$0xff]
  %v3782 = vld [vmem:[%s2 + $0x38] sm:$0xff]
  %v3783 = vld [vmem:[%s2 + $0x50] sm:$0xff]
  %v3784 = vld [vmem:[%s2 + $0x58] sm:$0xff]
  %v3785 = vld [vmem:[%s2 + $0x70] sm:$0xff]
  %v3786 = vld [vmem:[%s2 + $0x78] sm:$0xff]
  %v3787 = vld [vmem:[%s2 + $0x90] sm:$0xff]
  %v3788 = vld [vmem:[%s2 + $0x98] sm:$0xff]
  %v3789 = vld [vmem:[%s2 + $0xb0] sm:$0xff]
  %v3790 = vld [vmem:[%s2 + $0xb8] sm:$0xff]
  %v3791 = vld [vmem:[%s2 + $0xd0] sm:$0xff]
  %v3792 = vld [vmem:[%s2 + $0xd8] sm:$0xff]
  %v3793 = vld [vmem:[%s2 + $0xf0] sm:$0xff]
  %v3794 = vld [vmem:[%s2 + $0xf8] sm:$0xff]
  %v3795 = vld [vmem:[%s2 + $0x110] sm:$0xff]
  %v3796 = vld [vmem:[%s2 + $0x118] sm:$0xff]
  %v3797 = vld [vmem:[%s2 + $0x130] sm:$0xff]
  %v3798 = vld [vmem:[%s2 + $0x138] sm:$0xff]
  %v3799 = vld [vmem:[%s2 + $0x150] sm:$0xff]
  %v3800 = vld [vmem:[%s2 + $0x158] sm:$0xff]
  %v3801 = vld [vmem:[%s2 + $0x170] sm:$0xff]
  %v3802 = vld [vmem:[%s2 + $0x178] sm:$0xff]
  %v3803 = vld [vmem:[%s2 + $0x190] sm:$0xff]
  %v3804 = vld [vmem:[%s2 + $0x198] sm:$0xff]
  %v3805 = vld [vmem:[%s2 + $0x1b0] sm:$0xff]
  %v3806 = vld [vmem:[%s2 + $0x1b8] sm:$0xff]
  %v3807 = vld [vmem:[%s2 + $0x1d0] sm:$0xff]
  %v3808 = vld [vmem:[%s2 + $0x1d8] sm:$0xff]
  %v3809 = vld [vmem:[%s2 + $0x1f0] sm:$0xff]
  %v3810 = vld [vmem:[%s2 + $0x1f8] sm:$0xff]
  %v3812 = vlaneseq
  %v3813 = vshrl.u32 %v3812, 7
  %v3814 = vsub.s32 0, %v3813
  %v3815 = vrot.slane %v47, %v3814
  %v3816 = vlaneseq
  %v3817 = vshrl.u32 %v3816, 7
  %v3818 = vsub.s32 1, %v3817
  %v3819 = vrot.slane %v47, %v3818
  %3822 = vmatprep.subr.mxu0 %v3780
  %3823 = vmatpush1.msra.mxu0 %v3779
  %3824 = vmatprep.subr.mxu0 %v3782
  %3825 = vmatpush1.msra.mxu0 %v3781
  %3826 = vmatprep.subr.mxu0 %v3784
  %3827 = vmatpush1.msra.mxu0 %v3783
  %3828 = vmatprep.subr.mxu0 %v3786
  %3829 = vmatpush1.msra.mxu0 %v3785
  %3830 = vmatprep.subr.mxu0 %v3788
  %3831 = vmatpush1.msra.mxu0 %v3787
  %3832 = vmatprep.subr.mxu0 %v3790
  %3833 = vmatpush1.msra.mxu0 %v3789
  %3834 = vmatprep.subr.mxu0 %v3792
  %3835 = vmatpush1.msra.mxu0 %v3791
  %3836 = vmatprep.subr.mxu0 %v3794
  %3837 = vmatpush1.msra.mxu0 %v3793
  %3838 = vmatprep.subr.mxu0 %v3796
  %3839 = vmatpush1.msra.mxu0 %v3795
  %3840 = vmatprep.subr.mxu0 %v3798
  %3841 = vmatpush1.msra.mxu0 %v3797
  %3842 = vmatprep.subr.mxu0 %v3800
  %3843 = vmatpush1.msra.mxu0 %v3799
  %3844 = vmatprep.subr.mxu0 %v3802
  %3845 = vmatpush1.msra.mxu0 %v3801
  %3846 = vmatprep.subr.mxu0 %v3804
  %3847 = vmatpush1.msra.mxu0 %v3803
  %3848 = vmatprep.subr.mxu0 %v3806
  %3849 = vmatpush1.msra.mxu0 %v3805
  %3850 = vmatprep.subr.mxu0 %v3808
  %3851 = vmatpush1.msra.mxu0 %v3807
  %3852 = vmatprep.subr.mxu0 %v3810
  %3853 = vmatpush1.msra.mxu0 %v3809
  %3854 = vmatprep.subr.mxu0 0.0
  %3855 = vmatpush1.msra.mxu0 0.0
  %3856 = vmatprep.subr.mxu0 0.0
  %3857 = vmatpush1.msra.mxu0 0.0
  %3858 = vmatprep.subr.mxu0 0.0
  %3859 = vmatpush1.msra.mxu0 0.0
  %3860 = vmatprep.subr.mxu0 0.0
  %3861 = vmatpush1.msra.mxu0 0.0
  %3862 = vmatprep.subr.mxu0 0.0
  %3863 = vmatpush1.msra.mxu0 0.0
  %3864 = vmatprep.subr.mxu0 0.0
  %3865 = vmatpush1.msra.mxu0 0.0
  %3866 = vmatprep.subr.mxu0 0.0
  %3867 = vmatpush1.msra.mxu0 0.0
  %3868 = vmatprep.subr.mxu0 0.0
  %3869 = vmatpush1.msra.mxu0 0.0
  %3870 = vmatprep.subr.mxu0 0.0
  %3871 = vmatpush1.msra.mxu0 0.0
  %3872 = vmatprep.subr.mxu0 0.0
  %3873 = vmatpush1.msra.mxu0 0.0
  %3874 = vmatprep.subr.mxu0 0.0
  %3875 = vmatpush1.msra.mxu0 0.0
  %3876 = vmatprep.subr.mxu0 0.0
  %3877 = vmatpush1.msra.mxu0 0.0
  %3878 = vmatprep.subr.mxu0 0.0
  %3879 = vmatpush1.msra.mxu0 0.0
  %3880 = vmatprep.subr.mxu0 0.0
  %3881 = vmatpush1.msra.mxu0 0.0
  %3882 = vmatprep.subr.mxu0 0.0
  %3883 = vmatpush1.msra.mxu0 0.0
  %3884 = vmatprep.subr.mxu0 0.0
  %3885 = vmatpush1.msra.mxu0 0.0
  %3886 = vmatprep.mubr.f32.mxu0 0.0
  %3887 = vmatmul.mubr.f32.gmra.mrb[0].mxu0 %v3761
  %v3888 = vpop.f32.mrb[0].mxu0
  %v3889 = vadd.f32 %v3815, %v3888
  %v3890 = vpop.f32.mrb[0].mxu0
  %v3891 = vadd.f32 %v3819, %v3890
  %3892 = vmatprep.mubr.f32.mxu0 0.0
  %3893 = vmatmul.mubr.f32.gmra.mrb[0].mxu0 %v3766
  %v3894 = vpop.f32.mrb[0].mxu0
  %v3895 = vadd.f32 %v3815, %v3894
  %v3896 = vpop.f32.mrb[0].mxu0
  %v3897 = vadd.f32 %v3819, %v3896
  %3898 = vmatprep.mubr.f32.mxu0 0.0
  %3899 = vmatmul.mubr.f32.gmra.mrb[0].mxu0 %v3771
  %v3900 = vpop.f32.mrb[0].mxu0
  %v3901 = vadd.f32 %v3815, %v3900
  %v3902 = vpop.f32.mrb[0].mxu0
  %v3903 = vadd.f32 %v3819, %v3902
  %3904 = vmatprep.mubr.f32.mxu0 0.0
  %3905 = vmatmul.mubr.f32.gmra.mrb[0].mxu0 %v3776
  %v3906 = vpop.f32.mrb[0].mxu0
  %v3907 = vadd.f32 %v3815, %v3906
  %v3908 = vpop.f32.mrb[0].mxu0
  %v3909 = vadd.f32 %v3819, %v3908
  %3910 = vdwg.mxu0
  %3911 = vst [vmem:[%s8] sm:$0xff] %v3889
  %3912 = vst [vmem:[%s8 + $0x8] sm:$0xff] %v3891
  %3913 = vst [vmem:[%s8 + $0x10] sm:$0xff] %v3895
  %3914 = vst [vmem:[%s8 + $0x18] sm:$0xff] %v3897
  %3915 = vst [vmem:[%s8 + $0x20] sm:$0xff] %v3901
  %3916 = vst [vmem:[%s8 + $0x28] sm:$0xff] %v3903
  %3917 = vst [vmem:[%s8 + $0x30] sm:$0xff] %v3907
  %3918 = vst [vmem:[%s8 + $0x38] sm:$0xff] %v3909
  %3919 = vst.msk [vmem:[#allocation3] sm:$0xff] %vm1416, 0.0
  %3920 = vst.msk [vmem:[#allocation3 + $0x8] sm:$0xff] %vm1416, 0.0
  %3921 = vst.msk [vmem:[#allocation3 + $0x10] sm:$0xff] %vm1416, 0.0
  %v3922 = vld [vmem:[%s7] sm:$0x1]
  %v3923 = vld [vmem:[%s7 + $0x1] sm:$0x1]
  %v3924 = vld [vmem:[%s7 + $0x2] sm:$0x1]
  %v3925 = vld [vmem:[%s7 + $0x3] sm:$0x1]
  %v3926 = vld [vmem:[%s7 + $0x4] sm:$0x1]
  %v3927 = vlaneseq
  %v3928 = vshrl.u32 %v3927, 7
  %v3929 = vsub.s32 0, %v3928
  %v3930 = vrot.slane %v3922, %v3929
  %v3931 = vld [vmem:[%s4] sm:$0xff]
  %v3932 = vld [vmem:[%s4 + $0x8] sm:$0xff]
  %v3933 = vld [vmem:[%s4 + $0x10] sm:$0xff]
  %v3934 = vld [vmem:[%s5] sm:$0x1]
  %v3935 = vlaneseq
  %v3936 = vshrl.u32 %v3935, 7
  %v3937 = vsub.s32 0, %v3936
  %v3938 = vrot.slane %v3934, %v3937
  %v3939 = vmul.f32 %v3931, %v3938
  %v3940 = vmul.f32 %v3932, %v3938
  %v3941 = vmul.f32 %v3933, %v3938
  %v3942 = vadd.f32 %v3930, %v3939
  %v3943 = vadd.f32 %v3930, %v3940
  %v3944 = vadd.f32 %v3930, %v3941
  %v3945 = vld [vmem:[%s5 + $0x5] sm:$0x1]
  %v3946 = vlaneseq
  %v3947 = vshrl.u32 %v3946, 7
  %v3948 = vsub.s32 0, %v3947
  %v3949 = vrot.slane %v3945, %v3948
  %v3950 = vmul.f32 %v3931, %v3949
  %v3951 = vmul.f32 %v3932, %v3949
  %v3952 = vmul.f32 %v3933, %v3949
  %v3955 = vrot.slane %v3950, 1
  %v3956 = vrot.slane %v3951, 1
  %v3957 = vsel %vm81, %v3955, %v3956
  %v3959 = vadd.f32 %v3942, %v3957
  %v3961 = vrot.slane %v3952, 1
  %v3962 = vsel %vm81, %v3956, %v3961
  %v3965 = vadd.f32 %v3943, %v3962
  %v3966 = vadd.f32 %v3944, %v3961
  %v3967 = vld [vmem:[%s5 + $0xa] sm:$0x1]
  %v3968 = vlaneseq
  %v3969 = vshrl.u32 %v3968, 7
  %v3970 = vsub.s32 0, %v3969
  %v3971 = vrot.slane %v3967, %v3970
  %v3972 = vmul.f32 %v3931, %v3971
  %v3973 = vmul.f32 %v3932, %v3971
  %v3974 = vmul.f32 %v3933, %v3971
  %v3977 = vrot.slane %v3972, 2
  %v3978 = vrot.slane %v3973, 2
  %v3979 = vsel %vm116, %v3977, %v3978
  %v3981 = vadd.f32 %v3959, %v3979
  %v3983 = vrot.slane %v3974, 2
  %v3984 = vsel %vm116, %v3978, %v3983
  %v3987 = vadd.f32 %v3965, %v3984
  %v3988 = vadd.f32 %v3966, %v3983
  %v3989 = vld [vmem:[%s5 + $0xf] sm:$0x1]
  %v3990 = vlaneseq
  %v3991 = vshrl.u32 %v3990, 7
  %v3992 = vsub.s32 0, %v3991
  %v3993 = vrot.slane %v3989, %v3992
  %v3994 = vmul.f32 %v3931, %v3993
  %v3995 = vmul.f32 %v3932, %v3993
  %v3996 = vmul.f32 %v3933, %v3993
  %v3999 = vrot.slane %v3994, 3
  %v4000 = vrot.slane %v3995, 3
  %v4001 = vsel %vm151, %v3999, %v4000
  %v4003 = vadd.f32 %v3981, %v4001
  %v4005 = vrot.slane %v3996, 3
  %v4006 = vsel %vm151, %v4000, %v4005
  %v4009 = vadd.f32 %v3987, %v4006
  %v4010 = vadd.f32 %v3988, %v4005
  %v4011 = vld [vmem:[%s5 + $0x14] sm:$0x1]
  %v4012 = vlaneseq
  %v4013 = vshrl.u32 %v4012, 7
  %v4014 = vsub.s32 0, %v4013
  %v4015 = vrot.slane %v4011, %v4014
  %v4016 = vmul.f32 %v3931, %v4015
  %v4017 = vmul.f32 %v3932, %v4015
  %v4018 = vmul.f32 %v3933, %v4015
  %v4021 = vrot.slane %v4016, 4
  %v4022 = vrot.slane %v4017, 4
  %v4023 = vsel %vm186, %v4021, %v4022
  %v4025 = vadd.f32 %v4003, %v4023
  %v4027 = vrot.slane %v4018, 4
  %v4029 = vadd.f32 %v4009, %v4027
  %v4030 = vadd.f32 %v4010, %v4027
  %v4031 = vld [vmem:[%s5 + $0x1] sm:$0x1]
  %v4032 = vlaneseq
  %v4033 = vshrl.u32 %v4032, 7
  %v4034 = vsub.s32 0, %v4033
  %v4035 = vrot.slane %v4031, %v4034
  %4037 = vrot.lane.b32.xlu0 %v4035, 8
  %v4038 = vpop.permute.xlu0 %4037
  %v4040 = vmul.f32 %v3931, %v4038
  %v4041 = vmul.f32 %v3932, %v4038
  %v4042 = vmul.f32 %v3933, %v4038
  %4044 = vrot.lane.b32.xlu0 %v4040, 120
  %v4045 = vpop.permute.xlu0 %4044
  %v4047 = vadd.f32 %v4025, %v4045
  %4050 = vrot.lane.b32.xlu0 %v4041, 120
  %v4051 = vpop.permute.xlu0 %4050
  %4052 = vrot.lane.b32.xlu0 %v4042, 120
  %v4053 = vpop.permute.xlu0 %4052
  %v4056 = vadd.f32 %v4029, %v4051
  %v4057 = vadd.f32 %v4030, %v4053
  %v4058 = vld [vmem:[%s5 + $0x6] sm:$0x1]
  %v4059 = vlaneseq
  %v4060 = vshrl.u32 %v4059, 7
  %v4061 = vsub.s32 0, %v4060
  %v4062 = vrot.slane %v4058, %v4061
  %4064 = vrot.lane.b32.xlu0 %v4062, 8
  %v4065 = vpop.permute.xlu0 %4064
  %v4067 = vmul.f32 %v3931, %v4065
  %v4068 = vmul.f32 %v3932, %v4065
  %v4069 = vmul.f32 %v3933, %v4065
  %v4072 = vrot.slane %v4067, 1
  %v4073 = vrot.slane %v4068, 1
  %v4074 = vsel %vm81, %v4072, %v4073
  %4075 = vrot.lane.b32.xlu0 %v4074, 120
  %v4076 = vpop.permute.xlu0 %4075
  %v4078 = vadd.f32 %v4047, %v4076
  %v4080 = vrot.slane %v4069, 1
  %v4081 = vsel %vm81, %v4073, %v4080
  %4082 = vrot.lane.b32.xlu0 %v4081, 120
  %v4083 = vpop.permute.xlu0 %4082
  %4084 = vrot.lane.b32.xlu0 %v4080, 120
  %v4085 = vpop.permute.xlu0 %4084
  %v4088 = vadd.f32 %v4056, %v4083
  %v4089 = vadd.f32 %v4057, %v4085
  %v4090 = vld [vmem:[%s5 + $0xb] sm:$0x1]
  %v4091 = vlaneseq
  %v4092 = vshrl.u32 %v4091, 7
  %v4093 = vsub.s32 0, %v4092
  %v4094 = vrot.slane %v4090, %v4093
  %4096 = vrot.lane.b32.xlu0 %v4094, 8
  %v4097 = vpop.permute.xlu0 %4096
  %v4099 = vmul.f32 %v3931, %v4097
  %v4100 = vmul.f32 %v3932, %v4097
  %v4101 = vmul.f32 %v3933, %v4097
  %v4104 = vrot.slane %v4099, 2
  %v4105 = vrot.slane %v4100, 2
  %v4106 = vsel %vm116, %v4104, %v4105
  %4107 = vrot.lane.b32.xlu0 %v4106, 120
  %v4108 = vpop.permute.xlu0 %4107
  %v4110 = vadd.f32 %v4078, %v4108
  %v4112 = vrot.slane %v4101, 2
  %v4113 = vsel %vm116, %v4105, %v4112
  %4114 = vrot.lane.b32.xlu0 %v4113, 120
  %v4115 = vpop.permute.xlu0 %4114
  %4116 = vrot.lane.b32.xlu0 %v4112, 120
  %v4117 = vpop.permute.xlu0 %4116
  %v4120 = vadd.f32 %v4088, %v4115
  %v4121 = vadd.f32 %v4089, %v4117
  %v4122 = vld [vmem:[%s5 + $0x10] sm:$0x1]
  %v4123 = vlaneseq
  %v4124 = vshrl.u32 %v4123, 7
  %v4125 = vsub.s32 0, %v4124
  %v4126 = vrot.slane %v4122, %v4125
  %4128 = vrot.lane.b32.xlu0 %v4126, 8
  %v4129 = vpop.permute.xlu0 %4128
  %v4131 = vmul.f32 %v3931, %v4129
  %v4132 = vmul.f32 %v3932, %v4129
  %v4133 = vmul.f32 %v3933, %v4129
  %v4136 = vrot.slane %v4131, 3
  %v4137 = vrot.slane %v4132, 3
  %v4138 = vsel %vm151, %v4136, %v4137
  %4139 = vrot.lane.b32.xlu0 %v4138, 120
  %v4140 = vpop.permute.xlu0 %4139
  %v4142 = vadd.f32 %v4110, %v4140
  %v4144 = vrot.slane %v4133, 3
  %v4145 = vsel %vm151, %v4137, %v4144
  %4146 = vrot.lane.b32.xlu0 %v4145, 120
  %v4147 = vpop.permute.xlu0 %4146
  %4148 = vrot.lane.b32.xlu0 %v4144, 120
  %v4149 = vpop.permute.xlu0 %4148
  %v4152 = vadd.f32 %v4120, %v4147
  %v4153 = vadd.f32 %v4121, %v4149
  %v4154 = vld [vmem:[%s5 + $0x15] sm:$0x1]
  %v4155 = vlaneseq
  %v4156 = vshrl.u32 %v4155, 7
  %v4157 = vsub.s32 0, %v4156
  %v4158 = vrot.slane %v4154, %v4157
  %4160 = vrot.lane.b32.xlu0 %v4158, 8
  %v4161 = vpop.permute.xlu0 %4160
  %v4163 = vmul.f32 %v3931, %v4161
  %v4164 = vmul.f32 %v3932, %v4161
  %v4165 = vmul.f32 %v3933, %v4161
  %v4168 = vrot.slane %v4163, 4
  %v4169 = vrot.slane %v4164, 4
  %v4170 = vsel %vm186, %v4168, %v4169
  %4171 = vrot.lane.b32.xlu0 %v4170, 120
  %v4172 = vpop.permute.xlu0 %4171
  %v4174 = vadd.f32 %v4142, %v4172
  %v4176 = vrot.slane %v4165, 4
  %4177 = vrot.lane.b32.xlu0 %v4176, 120
  %v4178 = vpop.permute.xlu0 %4177
  %v4180 = vadd.f32 %v4152, %v4178
  %v4181 = vadd.f32 %v4153, %v4178
  %v4182 = vld [vmem:[%s5 + $0x2] sm:$0x1]
  %v4183 = vlaneseq
  %v4184 = vshrl.u32 %v4183, 7
  %v4185 = vsub.s32 0, %v4184
  %v4186 = vrot.slane %v4182, %v4185
  %4188 = vrot.lane.b32.xlu0 %v4186, 16
  %v4189 = vpop.permute.xlu0 %4188
  %v4191 = vmul.f32 %v3931, %v4189
  %v4192 = vmul.f32 %v3932, %v4189
  %v4193 = vmul.f32 %v3933, %v4189
  %4195 = vrot.lane.b32.xlu0 %v4191, 112
  %v4196 = vpop.permute.xlu0 %4195
  %v4198 = vadd.f32 %v4174, %v4196
  %4201 = vrot.lane.b32.xlu0 %v4192, 112
  %v4202 = vpop.permute.xlu0 %4201
  %4203 = vrot.lane.b32.xlu0 %v4193, 112
  %v4204 = vpop.permute.xlu0 %4203
  %v4207 = vadd.f32 %v4180, %v4202
  %v4208 = vadd.f32 %v4181, %v4204
  %v4209 = vld [vmem:[%s5 + $0x7] sm:$0x1]
  %v4210 = vlaneseq
  %v4211 = vshrl.u32 %v4210, 7
  %v4212 = vsub.s32 0, %v4211
  %v4213 = vrot.slane %v4209, %v4212
  %4215 = vrot.lane.b32.xlu0 %v4213, 16
  %v4216 = vpop.permute.xlu0 %4215
  %v4218 = vmul.f32 %v3931, %v4216
  %v4219 = vmul.f32 %v3932, %v4216
  %v4220 = vmul.f32 %v3933, %v4216
  %v4223 = vrot.slane %v4218, 1
  %v4224 = vrot.slane %v4219, 1
  %v4225 = vsel %vm81, %v4223, %v4224
  %4226 = vrot.lane.b32.xlu0 %v4225, 112
  %v4227 = vpop.permute.xlu0 %4226
  %v4229 = vadd.f32 %v4198, %v4227
  %v4231 = vrot.slane %v4220, 1
  %v4232 = vsel %vm81, %v4224, %v4231
  %4233 = vrot.lane.b32.xlu0 %v4232, 112
  %v4234 = vpop.permute.xlu0 %4233
  %4235 = vrot.lane.b32.xlu0 %v4231, 112
  %v4236 = vpop.permute.xlu0 %4235
  %v4239 = vadd.f32 %v4207, %v4234
  %v4240 = vadd.f32 %v4208, %v4236
  %v4241 = vld [vmem:[%s5 + $0xc] sm:$0x1]
  %v4242 = vlaneseq
  %v4243 = vshrl.u32 %v4242, 7
  %v4244 = vsub.s32 0, %v4243
  %v4245 = vrot.slane %v4241, %v4244
  %4247 = vrot.lane.b32.xlu0 %v4245, 16
  %v4248 = vpop.permute.xlu0 %4247
  %v4250 = vmul.f32 %v3931, %v4248
  %v4251 = vmul.f32 %v3932, %v4248
  %v4252 = vmul.f32 %v3933, %v4248
  %v4255 = vrot.slane %v4250, 2
  %v4256 = vrot.slane %v4251, 2
  %v4257 = vsel %vm116, %v4255, %v4256
  %4258 = vrot.lane.b32.xlu0 %v4257, 112
  %v4259 = vpop.permute.xlu0 %4258
  %v4261 = vadd.f32 %v4229, %v4259
  %v4263 = vrot.slane %v4252, 2
  %v4264 = vsel %vm116, %v4256, %v4263
  %4265 = vrot.lane.b32.xlu0 %v4264, 112
  %v4266 = vpop.permute.xlu0 %4265
  %4267 = vrot.lane.b32.xlu0 %v4263, 112
  %v4268 = vpop.permute.xlu0 %4267
  %v4271 = vadd.f32 %v4239, %v4266
  %v4272 = vadd.f32 %v4240, %v4268
  %v4273 = vld [vmem:[%s5 + $0x11] sm:$0x1]
  %v4274 = vlaneseq
  %v4275 = vshrl.u32 %v4274, 7
  %v4276 = vsub.s32 0, %v4275
  %v4277 = vrot.slane %v4273, %v4276
  %4279 = vrot.lane.b32.xlu0 %v4277, 16
  %v4280 = vpop.permute.xlu0 %4279
  %v4282 = vmul.f32 %v3931, %v4280
  %v4283 = vmul.f32 %v3932, %v4280
  %v4284 = vmul.f32 %v3933, %v4280
  %v4287 = vrot.slane %v4282, 3
  %v4288 = vrot.slane %v4283, 3
  %v4289 = vsel %vm151, %v4287, %v4288
  %4290 = vrot.lane.b32.xlu0 %v4289, 112
  %v4291 = vpop.permute.xlu0 %4290
  %v4293 = vadd.f32 %v4261, %v4291
  %v4295 = vrot.slane %v4284, 3
  %v4296 = vsel %vm151, %v4288, %v4295
  %4297 = vrot.lane.b32.xlu0 %v4296, 112
  %v4298 = vpop.permute.xlu0 %4297
  %4299 = vrot.lane.b32.xlu0 %v4295, 112
  %v4300 = vpop.permute.xlu0 %4299
  %v4303 = vadd.f32 %v4271, %v4298
  %v4304 = vadd.f32 %v4272, %v4300
  %v4305 = vld [vmem:[%s5 + $0x16] sm:$0x1]
  %v4306 = vlaneseq
  %v4307 = vshrl.u32 %v4306, 7
  %v4308 = vsub.s32 0, %v4307
  %v4309 = vrot.slane %v4305, %v4308
  %4311 = vrot.lane.b32.xlu0 %v4309, 16
  %v4312 = vpop.permute.xlu0 %4311
  %v4314 = vmul.f32 %v3931, %v4312
  %v4315 = vmul.f32 %v3932, %v4312
  %v4316 = vmul.f32 %v3933, %v4312
  %v4319 = vrot.slane %v4314, 4
  %v4320 = vrot.slane %v4315, 4
  %v4321 = vsel %vm186, %v4319, %v4320
  %4322 = vrot.lane.b32.xlu0 %v4321, 112
  %v4323 = vpop.permute.xlu0 %4322
  %v4325 = vadd.f32 %v4293, %v4323
  %v4327 = vrot.slane %v4316, 4
  %4328 = vrot.lane.b32.xlu0 %v4327, 112
  %v4329 = vpop.permute.xlu0 %4328
  %v4331 = vadd.f32 %v4303, %v4329
  %v4332 = vadd.f32 %v4304, %v4329
  %v4333 = vld [vmem:[%s5 + $0x3] sm:$0x1]
  %v4334 = vlaneseq
  %v4335 = vshrl.u32 %v4334, 7
  %v4336 = vsub.s32 0, %v4335
  %v4337 = vrot.slane %v4333, %v4336
  %4339 = vrot.lane.b32.xlu0 %v4337, 24
  %v4340 = vpop.permute.xlu0 %4339
  %v4342 = vmul.f32 %v3931, %v4340
  %v4343 = vmul.f32 %v3932, %v4340
  %v4344 = vmul.f32 %v3933, %v4340
  %4346 = vrot.lane.b32.xlu0 %v4342, 104
  %v4347 = vpop.permute.xlu0 %4346
  %v4349 = vadd.f32 %v4325, %v4347
  %4352 = vrot.lane.b32.xlu0 %v4343, 104
  %v4353 = vpop.permute.xlu0 %4352
  %4354 = vrot.lane.b32.xlu0 %v4344, 104
  %v4355 = vpop.permute.xlu0 %4354
  %v4358 = vadd.f32 %v4331, %v4353
  %v4359 = vadd.f32 %v4332, %v4355
  %v4360 = vld [vmem:[%s5 + $0x8] sm:$0x1]
  %v4361 = vlaneseq
  %v4362 = vshrl.u32 %v4361, 7
  %v4363 = vsub.s32 0, %v4362
  %v4364 = vrot.slane %v4360, %v4363
  %4366 = vrot.lane.b32.xlu0 %v4364, 24
  %v4367 = vpop.permute.xlu0 %4366
  %v4369 = vmul.f32 %v3931, %v4367
  %v4370 = vmul.f32 %v3932, %v4367
  %v4371 = vmul.f32 %v3933, %v4367
  %v4374 = vrot.slane %v4369, 1
  %v4375 = vrot.slane %v4370, 1
  %v4376 = vsel %vm81, %v4374, %v4375
  %4377 = vrot.lane.b32.xlu0 %v4376, 104
  %v4378 = vpop.permute.xlu0 %4377
  %v4380 = vadd.f32 %v4349, %v4378
  %v4382 = vrot.slane %v4371, 1
  %v4383 = vsel %vm81, %v4375, %v4382
  %4384 = vrot.lane.b32.xlu0 %v4383, 104
  %v4385 = vpop.permute.xlu0 %4384
  %4386 = vrot.lane.b32.xlu0 %v4382, 104
  %v4387 = vpop.permute.xlu0 %4386
  %v4390 = vadd.f32 %v4358, %v4385
  %v4391 = vadd.f32 %v4359, %v4387
  %v4392 = vld [vmem:[%s5 + $0xd] sm:$0x1]
  %v4393 = vlaneseq
  %v4394 = vshrl.u32 %v4393, 7
  %v4395 = vsub.s32 0, %v4394
  %v4396 = vrot.slane %v4392, %v4395
  %4398 = vrot.lane.b32.xlu0 %v4396, 24
  %v4399 = vpop.permute.xlu0 %4398
  %v4401 = vmul.f32 %v3931, %v4399
  %v4402 = vmul.f32 %v3932, %v4399
  %v4403 = vmul.f32 %v3933, %v4399
  %v4406 = vrot.slane %v4401, 2
  %v4407 = vrot.slane %v4402, 2
  %v4408 = vsel %vm116, %v4406, %v4407
  %4409 = vrot.lane.b32.xlu0 %v4408, 104
  %v4410 = vpop.permute.xlu0 %4409
  %v4412 = vadd.f32 %v4380, %v4410
  %v4414 = vrot.slane %v4403, 2
  %v4415 = vsel %vm116, %v4407, %v4414
  %4416 = vrot.lane.b32.xlu0 %v4415, 104
  %v4417 = vpop.permute.xlu0 %4416
  %4418 = vrot.lane.b32.xlu0 %v4414, 104
  %v4419 = vpop.permute.xlu0 %4418
  %v4422 = vadd.f32 %v4390, %v4417
  %v4423 = vadd.f32 %v4391, %v4419
  %v4424 = vld [vmem:[%s5 + $0x12] sm:$0x1]
  %v4425 = vlaneseq
  %v4426 = vshrl.u32 %v4425, 7
  %v4427 = vsub.s32 0, %v4426
  %v4428 = vrot.slane %v4424, %v4427
  %4430 = vrot.lane.b32.xlu0 %v4428, 24
  %v4431 = vpop.permute.xlu0 %4430
  %v4433 = vmul.f32 %v3931, %v4431
  %v4434 = vmul.f32 %v3932, %v4431
  %v4435 = vmul.f32 %v3933, %v4431
  %v4438 = vrot.slane %v4433, 3
  %v4439 = vrot.slane %v4434, 3
  %v4440 = vsel %vm151, %v4438, %v4439
  %4441 = vrot.lane.b32.xlu0 %v4440, 104
  %v4442 = vpop.permute.xlu0 %4441
  %v4444 = vadd.f32 %v4412, %v4442
  %v4446 = vrot.slane %v4435, 3
  %v4447 = vsel %vm151, %v4439, %v4446
  %4448 = vrot.lane.b32.xlu0 %v4447, 104
  %v4449 = vpop.permute.xlu0 %4448
  %4450 = vrot.lane.b32.xlu0 %v4446, 104
  %v4451 = vpop.permute.xlu0 %4450
  %v4454 = vadd.f32 %v4422, %v4449
  %v4455 = vadd.f32 %v4423, %v4451
  %v4456 = vld [vmem:[%s5 + $0x17] sm:$0x1]
  %v4457 = vlaneseq
  %v4458 = vshrl.u32 %v4457, 7
  %v4459 = vsub.s32 0, %v4458
  %v4460 = vrot.slane %v4456, %v4459
  %4462 = vrot.lane.b32.xlu0 %v4460, 24
  %v4463 = vpop.permute.xlu0 %4462
  %v4465 = vmul.f32 %v3931, %v4463
  %v4466 = vmul.f32 %v3932, %v4463
  %v4467 = vmul.f32 %v3933, %v4463
  %v4470 = vrot.slane %v4465, 4
  %v4471 = vrot.slane %v4466, 4
  %v4472 = vsel %vm186, %v4470, %v4471
  %4473 = vrot.lane.b32.xlu0 %v4472, 104
  %v4474 = vpop.permute.xlu0 %4473
  %v4476 = vadd.f32 %v4444, %v4474
  %v4478 = vrot.slane %v4467, 4
  %4479 = vrot.lane.b32.xlu0 %v4478, 104
  %v4480 = vpop.permute.xlu0 %4479
  %v4482 = vadd.f32 %v4454, %v4480
  %v4483 = vadd.f32 %v4455, %v4480
  %v4484 = vld [vmem:[%s5 + $0x4] sm:$0x1]
  %v4485 = vlaneseq
  %v4486 = vshrl.u32 %v4485, 7
  %v4487 = vsub.s32 0, %v4486
  %v4488 = vrot.slane %v4484, %v4487
  %4490 = vrot.lane.b32.xlu0 %v4488, 32
  %v4491 = vpop.permute.xlu0 %4490
  %v4493 = vmul.f32 %v3931, %v4491
  %v4494 = vmul.f32 %v3932, %v4491
  %v4495 = vmul.f32 %v3933, %v4491
  %4497 = vrot.lane.b32.xlu0 %v4493, 96
  %v4498 = vpop.permute.xlu0 %4497
  %v4500 = vadd.f32 %v4476, %v4498
  %4503 = vrot.lane.b32.xlu0 %v4494, 96
  %v4504 = vpop.permute.xlu0 %4503
  %4505 = vrot.lane.b32.xlu0 %v4495, 96
  %v4506 = vpop.permute.xlu0 %4505
  %v4509 = vadd.f32 %v4482, %v4504
  %v4510 = vadd.f32 %v4483, %v4506
  %v4511 = vld [vmem:[%s5 + $0x9] sm:$0x1]
  %v4512 = vlaneseq
  %v4513 = vshrl.u32 %v4512, 7
  %v4514 = vsub.s32 0, %v4513
  %v4515 = vrot.slane %v4511, %v4514
  %4517 = vrot.lane.b32.xlu0 %v4515, 32
  %v4518 = vpop.permute.xlu0 %4517
  %v4520 = vmul.f32 %v3931, %v4518
  %v4521 = vmul.f32 %v3932, %v4518
  %v4522 = vmul.f32 %v3933, %v4518
  %v4525 = vrot.slane %v4520, 1
  %v4526 = vrot.slane %v4521, 1
  %v4527 = vsel %vm81, %v4525, %v4526
  %4528 = vrot.lane.b32.xlu0 %v4527, 96
  %v4529 = vpop.permute.xlu0 %4528
  %v4531 = vadd.f32 %v4500, %v4529
  %v4533 = vrot.slane %v4522, 1
  %v4534 = vsel %vm81, %v4526, %v4533
  %4535 = vrot.lane.b32.xlu0 %v4534, 96
  %v4536 = vpop.permute.xlu0 %4535
  %4537 = vrot.lane.b32.xlu0 %v4533, 96
  %v4538 = vpop.permute.xlu0 %4537
  %v4541 = vadd.f32 %v4509, %v4536
  %v4542 = vadd.f32 %v4510, %v4538
  %v4543 = vld [vmem:[%s5 + $0xe] sm:$0x1]
  %v4544 = vlaneseq
  %v4545 = vshrl.u32 %v4544, 7
  %v4546 = vsub.s32 0, %v4545
  %v4547 = vrot.slane %v4543, %v4546
  %4549 = vrot.lane.b32.xlu0 %v4547, 32
  %v4550 = vpop.permute.xlu0 %4549
  %v4552 = vmul.f32 %v3931, %v4550
  %v4553 = vmul.f32 %v3932, %v4550
  %v4554 = vmul.f32 %v3933, %v4550
  %v4557 = vrot.slane %v4552, 2
  %v4558 = vrot.slane %v4553, 2
  %v4559 = vsel %vm116, %v4557, %v4558
  %4560 = vrot.lane.b32.xlu0 %v4559, 96
  %v4561 = vpop.permute.xlu0 %4560
  %v4563 = vadd.f32 %v4531, %v4561
  %v4565 = vrot.slane %v4554, 2
  %v4566 = vsel %vm116, %v4558, %v4565
  %4567 = vrot.lane.b32.xlu0 %v4566, 96
  %v4568 = vpop.permute.xlu0 %4567
  %4569 = vrot.lane.b32.xlu0 %v4565, 96
  %v4570 = vpop.permute.xlu0 %4569
  %v4573 = vadd.f32 %v4541, %v4568
  %v4574 = vadd.f32 %v4542, %v4570
  %v4575 = vld [vmem:[%s5 + $0x13] sm:$0x1]
  %v4576 = vlaneseq
  %v4577 = vshrl.u32 %v4576, 7
  %v4578 = vsub.s32 0, %v4577
  %v4579 = vrot.slane %v4575, %v4578
  %4581 = vrot.lane.b32.xlu0 %v4579, 32
  %v4582 = vpop.permute.xlu0 %4581
  %v4584 = vmul.f32 %v3931, %v4582
  %v4585 = vmul.f32 %v3932, %v4582
  %v4586 = vmul.f32 %v3933, %v4582
  %v4589 = vrot.slane %v4584, 3
  %v4590 = vrot.slane %v4585, 3
  %v4591 = vsel %vm151, %v4589, %v4590
  %4592 = vrot.lane.b32.xlu0 %v4591, 96
  %v4593 = vpop.permute.xlu0 %4592
  %v4595 = vadd.f32 %v4563, %v4593
  %v4597 = vrot.slane %v4586, 3
  %v4598 = vsel %vm151, %v4590, %v4597
  %4599 = vrot.lane.b32.xlu0 %v4598, 96
  %v4600 = vpop.permute.xlu0 %4599
  %4601 = vrot.lane.b32.xlu0 %v4597, 96
  %v4602 = vpop.permute.xlu0 %4601
  %v4605 = vadd.f32 %v4573, %v4600
  %v4606 = vadd.f32 %v4574, %v4602
  %v4607 = vld [vmem:[%s5 + $0x18] sm:$0x1]
  %v4608 = vlaneseq
  %v4609 = vshrl.u32 %v4608, 7
  %v4610 = vsub.s32 0, %v4609
  %v4611 = vrot.slane %v4607, %v4610
  %4613 = vrot.lane.b32.xlu0 %v4611, 32
  %v4614 = vpop.permute.xlu0 %4613
  %v4616 = vmul.f32 %v3931, %v4614
  %v4617 = vmul.f32 %v3932, %v4614
  %v4618 = vmul.f32 %v3933, %v4614
  %v4621 = vrot.slane %v4616, 4
  %v4622 = vrot.slane %v4617, 4
  %v4623 = vsel %vm186, %v4621, %v4622
  %4624 = vrot.lane.b32.xlu0 %v4623, 96
  %v4625 = vpop.permute.xlu0 %4624
  %v4627 = vadd.f32 %v4595, %v4625
  %v4629 = vrot.slane %v4618, 4
  %4630 = vrot.lane.b32.xlu0 %v4629, 96
  %v4631 = vpop.permute.xlu0 %4630
  %v4633 = vadd.f32 %v4605, %v4631
  %v4634 = vadd.f32 %v4606, %v4631
  %v4635 = vmax.f32 %v4627, 0.0
  %v4636 = vmax.f32 %v4633, 0.0
  %v4637 = vmax.f32 %v4634, 0.0
  %v4640 = vrot.slane %v4636, 4
  %v4641 = vrot.slane %v4637, 4
  %v4642 = vsel %vm186, %v4640, %v4641
  %v4643 = vld [vmem:[%s6] sm:$0xff]
  %v4644 = vld [vmem:[%s6 + $0x18] sm:$0xff]
  %v4645 = vld [vmem:[%s6 + $0x30] sm:$0xff]
  %v4646 = vld [vmem:[%s6 + $0x48] sm:$0xff]
  %v4647 = vld [vmem:[%s6 + $0x60] sm:$0xff]
  %v4648 = vld [vmem:[%s6 + $0x78] sm:$0xff]
  %v4649 = vld [vmem:[%s6 + $0x90] sm:$0xff]
  %v4650 = vld [vmem:[%s6 + $0xa8] sm:$0xff]
  %v4651 = vlaneseq
  %v4652 = vshrl.u32 %v4651, 7
  %v4653 = vsub.s32 0, %v4652
  %v4654 = vrot.slane %v3923, %v4653
  %vm4655 = vcmask 523264
  %v4657 = vsel %vm4655, %v4635, 0
  %v4659 = vsel %vm4655, %v4642, 0
  %4661 = vmatprep.subr.mxu0 0.0
  %4662 = vmatpush1.msra.mxu0 %v4643
  %4663 = vmatprep.subr.mxu0 0.0
  %4664 = vmatpush1.msra.mxu0 %v4644
  %4665 = vmatprep.subr.mxu0 0.0
  %4666 = vmatpush1.msra.mxu0 %v4645
  %4667 = vmatprep.subr.mxu0 0.0
  %4668 = vmatpush1.msra.mxu0 %v4646
  %4669 = vmatprep.subr.mxu0 0.0
  %4670 = vmatpush1.msra.mxu0 %v4647
  %4671 = vmatprep.subr.mxu0 0.0
  %4672 = vmatpush1.msra.mxu0 %v4648
  %4673 = vmatprep.subr.mxu0 0.0
  %4674 = vmatpush1.msra.mxu0 %v4649
  %4675 = vmatprep.subr.mxu0 0.0
  %4676 = vmatpush1.msra.mxu0 %v4650
  %4677 = vmatprep.subr.mxu0 0.0
  %4678 = vmatpush1.msra.mxu0 0.0
  %4679 = vmatprep.subr.mxu0 0.0
  %4680 = vmatpush1.msra.mxu0 0.0
  %4681 = vmatprep.subr.mxu0 0.0
  %4682 = vmatpush1.msra.mxu0 0.0
  %4683 = vmatprep.subr.mxu0 0.0
  %4684 = vmatpush1.msra.mxu0 0.0
  %4685 = vmatprep.subr.mxu0 0.0
  %4686 = vmatpush1.msra.mxu0 0.0
  %4687 = vmatprep.subr.mxu0 0.0
  %4688 = vmatpush1.msra.mxu0 0.0
  %4689 = vmatprep.subr.mxu0 0.0
  %4690 = vmatpush1.msra.mxu0 0.0
  %4691 = vmatprep.subr.mxu0 0.0
  %4692 = vmatpush1.msra.mxu0 0.0
  %4693 = vmatprep.subr.mxu0 0.0
  %4694 = vmatpush1.msra.mxu0 0.0
  %4695 = vmatprep.subr.mxu0 0.0
  %4696 = vmatpush1.msra.mxu0 0.0
  %4697 = vmatprep.subr.mxu0 0.0
  %4698 = vmatpush1.msra.mxu0 0.0
  %4699 = vmatprep.subr.mxu0 0.0
  %4700 = vmatpush1.msra.mxu0 0.0
  %4701 = vmatprep.subr.mxu0 0.0
  %4702 = vmatpush1.msra.mxu0 0.0
  %4703 = vmatprep.subr.mxu0 0.0
  %4704 = vmatpush1.msra.mxu0 0.0
  %4705 = vmatprep.subr.mxu0 0.0
  %4706 = vmatpush1.msra.mxu0 0.0
  %4707 = vmatprep.subr.mxu0 0.0
  %4708 = vmatpush1.msra.mxu0 0.0
  %4709 = vmatprep.subr.mxu0 0.0
  %4710 = vmatpush1.msra.mxu0 0.0
  %4711 = vmatprep.subr.mxu0 0.0
  %4712 = vmatpush1.msra.mxu0 0.0
  %4713 = vmatprep.subr.mxu0 0.0
  %4714 = vmatpush1.msra.mxu0 0.0
  %4715 = vmatprep.subr.mxu0 0.0
  %4716 = vmatpush1.msra.mxu0 0.0
  %4717 = vmatprep.subr.mxu0 0.0
  %4718 = vmatpush1.msra.mxu0 0.0
  %4719 = vmatprep.subr.mxu0 0.0
  %4720 = vmatpush1.msra.mxu0 0.0
  %4721 = vmatprep.subr.mxu0 0.0
  %4722 = vmatpush1.msra.mxu0 0.0
  %4723 = vmatprep.subr.mxu0 0.0
  %4724 = vmatpush1.msra.mxu0 0.0
  %4725 = vmatprep.mubr.f32.mxu0 0.0
  %4726 = vmatmul.mubr.f32.gmra.mrb[0].mxu0 %v4657
  %v4727 = vpop.f32.mrb[0].mxu0
  %v4728 = vadd.f32 %v4654, %v4727
  %v4729 = vpop.f32.mrb[0].mxu0
  %4730 = vmatprep.mubr.f32.mxu0 0.0
  %4731 = vmatmul.mubr.f32.gmra.mrb[0].mxu0 %v4659
  %v4732 = vpop.f32.mrb[0].mxu0
  %v4733 = vadd.f32 %v4654, %v4732
  %v4734 = vpop.f32.mrb[0].mxu0
  %4735 = vdwg.mxu0
  %4737 = vrot.lane.b32.xlu0 %v4728, 16
  %v4738 = vpop.permute.xlu0 %4737
  %vm4740 = vcmask 654464
  %4741 = vst.msk [vmem:[#allocation3 + $0x2] sm:$0xff] %vm4740, %v4738
  %4743 = vrot.lane.b32.xlu0 %v4733, 16
  %v4744 = vpop.permute.xlu0 %4743
  %4746 = vst.msk [vmem:[#allocation3 + $0xe] sm:$0xff] %vm4740, %v4744
  %v4747 = vlaneseq
  %v4748 = vshrl.u32 %v4747, 7
  %v4749 = vsub.s32 0, %v4748
  %v4750 = vrot.slane %v3924, %v4749
  %v4751 = vld [vmem:[#allocation3] sm:$0xff]
  %v4752 = vld [vmem:[#allocation3 + $0x8] sm:$0xff]
  %v4753 = vld [vmem:[#allocation3 + $0x10] sm:$0xff]
  %v4754 = vld [vmem:[%s5 + $0x19] sm:$0x1]
  %v4755 = vlaneseq
  %v4756 = vshrl.u32 %v4755, 7
  %v4757 = vsub.s32 0, %v4756
  %v4758 = vrot.slane %v4754, %v4757
  %v4759 = vmul.f32 %v4751, %v4758
  %v4760 = vmul.f32 %v4752, %v4758
  %v4761 = vmul.f32 %v4753, %v4758
  %v4762 = vadd.f32 %v4750, %v4759
  %v4763 = vadd.f32 %v4750, %v4760
  %v4764 = vadd.f32 %v4750, %v4761
  %v4765 = vld [vmem:[%s5 + $0x1e] sm:$0x1]
  %v4766 = vlaneseq
  %v4767 = vshrl.u32 %v4766, 7
  %v4768 = vsub.s32 0, %v4767
  %v4769 = vrot.slane %v4765, %v4768
  %v4770 = vmul.f32 %v4751, %v4769
  %v4771 = vmul.f32 %v4752, %v4769
  %v4772 = vmul.f32 %v4753, %v4769
  %v4775 = vrot.slane %v4770, 1
  %v4776 = vrot.slane %v4771, 1
  %v4777 = vsel %vm81, %v4775, %v4776
  %v4779 = vadd.f32 %v4762, %v4777
  %v4781 = vrot.slane %v4772, 1
  %v4782 = vsel %vm81, %v4776, %v4781
  %v4785 = vadd.f32 %v4763, %v4782
  %v4786 = vadd.f32 %v4764, %v4781
  %v4787 = vld [vmem:[%s5 + $0x23] sm:$0x1]
  %v4788 = vlaneseq
  %v4789 = vshrl.u32 %v4788, 7
  %v4790 = vsub.s32 0, %v4789
  %v4791 = vrot.slane %v4787, %v4790
  %v4792 = vmul.f32 %v4751, %v4791
  %v4793 = vmul.f32 %v4752, %v4791
  %v4794 = vmul.f32 %v4753, %v4791
  %v4797 = vrot.slane %v4792, 2
  %v4798 = vrot.slane %v4793, 2
  %v4799 = vsel %vm116, %v4797, %v4798
  %v4801 = vadd.f32 %v4779, %v4799
  %v4803 = vrot.slane %v4794, 2
  %v4804 = vsel %vm116, %v4798, %v4803
  %v4807 = vadd.f32 %v4785, %v4804
  %v4808 = vadd.f32 %v4786, %v4803
  %v4809 = vld [vmem:[%s5 + $0x28] sm:$0x1]
  %v4810 = vlaneseq
  %v4811 = vshrl.u32 %v4810, 7
  %v4812 = vsub.s32 0, %v4811
  %v4813 = vrot.slane %v4809, %v4812
  %v4814 = vmul.f32 %v4751, %v4813
  %v4815 = vmul.f32 %v4752, %v4813
  %v4816 = vmul.f32 %v4753, %v4813
  %v4819 = vrot.slane %v4814, 3
  %v4820 = vrot.slane %v4815, 3
  %v4821 = vsel %vm151, %v4819, %v4820
  %v4823 = vadd.f32 %v4801, %v4821
  %v4825 = vrot.slane %v4816, 3
  %v4826 = vsel %vm151, %v4820, %v4825
  %v4829 = vadd.f32 %v4807, %v4826
  %v4830 = vadd.f32 %v4808, %v4825
  %v4831 = vld [vmem:[%s5 + $0x2d] sm:$0x1]
  %v4832 = vlaneseq
  %v4833 = vshrl.u32 %v4832, 7
  %v4834 = vsub.s32 0, %v4833
  %v4835 = vrot.slane %v4831, %v4834
  %v4836 = vmul.f32 %v4751, %v4835
  %v4837 = vmul.f32 %v4752, %v4835
  %v4838 = vmul.f32 %v4753, %v4835
  %v4841 = vrot.slane %v4836, 4
  %v4842 = vrot.slane %v4837, 4
  %v4843 = vsel %vm186, %v4841, %v4842
  %v4845 = vadd.f32 %v4823, %v4843
  %v4847 = vrot.slane %v4838, 4
  %v4849 = vadd.f32 %v4829, %v4847
  %v4850 = vadd.f32 %v4830, %v4847
  %v4851 = vld [vmem:[%s5 + $0x1a] sm:$0x1]
  %v4852 = vlaneseq
  %v4853 = vshrl.u32 %v4852, 7
  %v4854 = vsub.s32 0, %v4853
  %v4855 = vrot.slane %v4851, %v4854
  %4857 = vrot.lane.b32.xlu0 %v4855, 8
  %v4858 = vpop.permute.xlu0 %4857
  %v4860 = vmul.f32 %v4751, %v4858
  %v4861 = vmul.f32 %v4752, %v4858
  %v4862 = vmul.f32 %v4753, %v4858
  %4864 = vrot.lane.b32.xlu0 %v4860, 120
  %v4865 = vpop.permute.xlu0 %4864
  %v4867 = vadd.f32 %v4845, %v4865
  %4870 = vrot.lane.b32.xlu0 %v4861, 120
  %v4871 = vpop.permute.xlu0 %4870
  %4872 = vrot.lane.b32.xlu0 %v4862, 120
  %v4873 = vpop.permute.xlu0 %4872
  %v4876 = vadd.f32 %v4849, %v4871
  %v4877 = vadd.f32 %v4850, %v4873
  %v4878 = vld [vmem:[%s5 + $0x1f] sm:$0x1]
  %v4879 = vlaneseq
  %v4880 = vshrl.u32 %v4879, 7
  %v4881 = vsub.s32 0, %v4880
  %v4882 = vrot.slane %v4878, %v4881
  %4884 = vrot.lane.b32.xlu0 %v4882, 8
  %v4885 = vpop.permute.xlu0 %4884
  %v4887 = vmul.f32 %v4751, %v4885
  %v4888 = vmul.f32 %v4752, %v4885
  %v4889 = vmul.f32 %v4753, %v4885
  %v4892 = vrot.slane %v4887, 1
  %v4893 = vrot.slane %v4888, 1
  %v4894 = vsel %vm81, %v4892, %v4893
  %4895 = vrot.lane.b32.xlu0 %v4894, 120
  %v4896 = vpop.permute.xlu0 %4895
  %v4898 = vadd.f32 %v4867, %v4896
  %v4900 = vrot.slane %v4889, 1
  %v4901 = vsel %vm81, %v4893, %v4900
  %4902 = vrot.lane.b32.xlu0 %v4901, 120
  %v4903 = vpop.permute.xlu0 %4902
  %4904 = vrot.lane.b32.xlu0 %v4900, 120
  %v4905 = vpop.permute.xlu0 %4904
  %v4908 = vadd.f32 %v4876, %v4903
  %v4909 = vadd.f32 %v4877, %v4905
  %v4910 = vld [vmem:[%s5 + $0x24] sm:$0x1]
  %v4911 = vlaneseq
  %v4912 = vshrl.u32 %v4911, 7
  %v4913 = vsub.s32 0, %v4912
  %v4914 = vrot.slane %v4910, %v4913
  %4916 = vrot.lane.b32.xlu0 %v4914, 8
  %v4917 = vpop.permute.xlu0 %4916
  %v4919 = vmul.f32 %v4751, %v4917
  %v4920 = vmul.f32 %v4752, %v4917
  %v4921 = vmul.f32 %v4753, %v4917
  %v4924 = vrot.slane %v4919, 2
  %v4925 = vrot.slane %v4920, 2
  %v4926 = vsel %vm116, %v4924, %v4925
  %4927 = vrot.lane.b32.xlu0 %v4926, 120
  %v4928 = vpop.permute.xlu0 %4927
  %v4930 = vadd.f32 %v4898, %v4928
  %v4932 = vrot.slane %v4921, 2
  %v4933 = vsel %vm116, %v4925, %v4932
  %4934 = vrot.lane.b32.xlu0 %v4933, 120
  %v4935 = vpop.permute.xlu0 %4934
  %4936 = vrot.lane.b32.xlu0 %v4932, 120
  %v4937 = vpop.permute.xlu0 %4936
  %v4940 = vadd.f32 %v4908, %v4935
  %v4941 = vadd.f32 %v4909, %v4937
  %v4942 = vld [vmem:[%s5 + $0x29] sm:$0x1]
  %v4943 = vlaneseq
  %v4944 = vshrl.u32 %v4943, 7
  %v4945 = vsub.s32 0, %v4944
  %v4946 = vrot.slane %v4942, %v4945
  %4948 = vrot.lane.b32.xlu0 %v4946, 8
  %v4949 = vpop.permute.xlu0 %4948
  %v4951 = vmul.f32 %v4751, %v4949
  %v4952 = vmul.f32 %v4752, %v4949
  %v4953 = vmul.f32 %v4753, %v4949
  %v4956 = vrot.slane %v4951, 3
  %v4957 = vrot.slane %v4952, 3
  %v4958 = vsel %vm151, %v4956, %v4957
  %4959 = vrot.lane.b32.xlu0 %v4958, 120
  %v4960 = vpop.permute.xlu0 %4959
  %v4962 = vadd.f32 %v4930, %v4960
  %v4964 = vrot.slane %v4953, 3
  %v4965 = vsel %vm151, %v4957, %v4964
  %4966 = vrot.lane.b32.xlu0 %v4965, 120
  %v4967 = vpop.permute.xlu0 %4966
  %4968 = vrot.lane.b32.xlu0 %v4964, 120
  %v4969 = vpop.permute.xlu0 %4968
  %v4972 = vadd.f32 %v4940, %v4967
  %v4973 = vadd.f32 %v4941, %v4969
  %v4974 = vld [vmem:[%s5 + $0x2e] sm:$0x1]
  %v4975 = vlaneseq
  %v4976 = vshrl.u32 %v4975, 7
  %v4977 = vsub.s32 0, %v4976
  %v4978 = vrot.slane %v4974, %v4977
  %4980 = vrot.lane.b32.xlu0 %v4978, 8
  %v4981 = vpop.permute.xlu0 %4980
  %v4983 = vmul.f32 %v4751, %v4981
  %v4984 = vmul.f32 %v4752, %v4981
  %v4985 = vmul.f32 %v4753, %v4981
  %v4988 = vrot.slane %v4983, 4
  %v4989 = vrot.slane %v4984, 4
  %v4990 = vsel %vm186, %v4988, %v4989
  %4991 = vrot.lane.b32.xlu0 %v4990, 120
  %v4992 = vpop.permute.xlu0 %4991
  %v4994 = vadd.f32 %v4962, %v4992
  %v4996 = vrot.slane %v4985, 4
  %4997 = vrot.lane.b32.xlu0 %v4996, 120
  %v4998 = vpop.permute.xlu0 %4997
  %v5000 = vadd.f32 %v4972, %v4998
  %v5001 = vadd.f32 %v4973, %v4998
  %v5002 = vld [vmem:[%s5 + $0x1b] sm:$0x1]
  %v5003 = vlaneseq
  %v5004 = vshrl.u32 %v5003, 7
  %v5005 = vsub.s32 0, %v5004
  %v5006 = vrot.slane %v5002, %v5005
  %5008 = vrot.lane.b32.xlu0 %v5006, 16
  %v5009 = vpop.permute.xlu0 %5008
  %v5011 = vmul.f32 %v4751, %v5009
  %v5012 = vmul.f32 %v4752, %v5009
  %v5013 = vmul.f32 %v4753, %v5009
  %5015 = vrot.lane.b32.xlu0 %v5011, 112
  %v5016 = vpop.permute.xlu0 %5015
  %v5018 = vadd.f32 %v4994, %v5016
  %5021 = vrot.lane.b32.xlu0 %v5012, 112
  %v5022 = vpop.permute.xlu0 %5021
  %5023 = vrot.lane.b32.xlu0 %v5013, 112
  %v5024 = vpop.permute.xlu0 %5023
  %v5027 = vadd.f32 %v5000, %v5022
  %v5028 = vadd.f32 %v5001, %v5024
  %v5029 = vld [vmem:[%s5 + $0x20] sm:$0x1]
  %v5030 = vlaneseq
  %v5031 = vshrl.u32 %v5030, 7
  %v5032 = vsub.s32 0, %v5031
  %v5033 = vrot.slane %v5029, %v5032
  %5035 = vrot.lane.b32.xlu0 %v5033, 16
  %v5036 = vpop.permute.xlu0 %5035
  %v5038 = vmul.f32 %v4751, %v5036
  %v5039 = vmul.f32 %v4752, %v5036
  %v5040 = vmul.f32 %v4753, %v5036
  %v5043 = vrot.slane %v5038, 1
  %v5044 = vrot.slane %v5039, 1
  %v5045 = vsel %vm81, %v5043, %v5044
  %5046 = vrot.lane.b32.xlu0 %v5045, 112
  %v5047 = vpop.permute.xlu0 %5046
  %v5049 = vadd.f32 %v5018, %v5047
  %v5051 = vrot.slane %v5040, 1
  %v5052 = vsel %vm81, %v5044, %v5051
  %5053 = vrot.lane.b32.xlu0 %v5052, 112
  %v5054 = vpop.permute.xlu0 %5053
  %5055 = vrot.lane.b32.xlu0 %v5051, 112
  %v5056 = vpop.permute.xlu0 %5055
  %v5059 = vadd.f32 %v5027, %v5054
  %v5060 = vadd.f32 %v5028, %v5056
  %v5061 = vld [vmem:[%s5 + $0x25] sm:$0x1]
  %v5062 = vlaneseq
  %v5063 = vshrl.u32 %v5062, 7
  %v5064 = vsub.s32 0, %v5063
  %v5065 = vrot.slane %v5061, %v5064
  %5067 = vrot.lane.b32.xlu0 %v5065, 16
  %v5068 = vpop.permute.xlu0 %5067
  %v5070 = vmul.f32 %v4751, %v5068
  %v5071 = vmul.f32 %v4752, %v5068
  %v5072 = vmul.f32 %v4753, %v5068
  %v5075 = vrot.slane %v5070, 2
  %v5076 = vrot.slane %v5071, 2
  %v5077 = vsel %vm116, %v5075, %v5076
  %5078 = vrot.lane.b32.xlu0 %v5077, 112
  %v5079 = vpop.permute.xlu0 %5078
  %v5081 = vadd.f32 %v5049, %v5079
  %v5083 = vrot.slane %v5072, 2
  %v5084 = vsel %vm116, %v5076, %v5083
  %5085 = vrot.lane.b32.xlu0 %v5084, 112
  %v5086 = vpop.permute.xlu0 %5085
  %5087 = vrot.lane.b32.xlu0 %v5083, 112
  %v5088 = vpop.permute.xlu0 %5087
  %v5091 = vadd.f32 %v5059, %v5086
  %v5092 = vadd.f32 %v5060, %v5088
  %v5093 = vld [vmem:[%s5 + $0x2a] sm:$0x1]
  %v5094 = vlaneseq
  %v5095 = vshrl.u32 %v5094, 7
  %v5096 = vsub.s32 0, %v5095
  %v5097 = vrot.slane %v5093, %v5096
  %5099 = vrot.lane.b32.xlu0 %v5097, 16
  %v5100 = vpop.permute.xlu0 %5099
  %v5102 = vmul.f32 %v4751, %v5100
  %v5103 = vmul.f32 %v4752, %v5100
  %v5104 = vmul.f32 %v4753, %v5100
  %v5107 = vrot.slane %v5102, 3
  %v5108 = vrot.slane %v5103, 3
  %v5109 = vsel %vm151, %v5107, %v5108
  %5110 = vrot.lane.b32.xlu0 %v5109, 112
  %v5111 = vpop.permute.xlu0 %5110
  %v5113 = vadd.f32 %v5081, %v5111
  %v5115 = vrot.slane %v5104, 3
  %v5116 = vsel %vm151, %v5108, %v5115
  %5117 = vrot.lane.b32.xlu0 %v5116, 112
  %v5118 = vpop.permute.xlu0 %5117
  %5119 = vrot.lane.b32.xlu0 %v5115, 112
  %v5120 = vpop.permute.xlu0 %5119
  %v5123 = vadd.f32 %v5091, %v5118
  %v5124 = vadd.f32 %v5092, %v5120
  %v5125 = vld [vmem:[%s5 + $0x2f] sm:$0x1]
  %v5126 = vlaneseq
  %v5127 = vshrl.u32 %v5126, 7
  %v5128 = vsub.s32 0, %v5127
  %v5129 = vrot.slane %v5125, %v5128
  %5131 = vrot.lane.b32.xlu0 %v5129, 16
  %v5132 = vpop.permute.xlu0 %5131
  %v5134 = vmul.f32 %v4751, %v5132
  %v5135 = vmul.f32 %v4752, %v5132
  %v5136 = vmul.f32 %v4753, %v5132
  %v5139 = vrot.slane %v5134, 4
  %v5140 = vrot.slane %v5135, 4
  %v5141 = vsel %vm186, %v5139, %v5140
  %5142 = vrot.lane.b32.xlu0 %v5141, 112
  %v5143 = vpop.permute.xlu0 %5142
  %v5145 = vadd.f32 %v5113, %v5143
  %v5147 = vrot.slane %v5136, 4
  %5148 = vrot.lane.b32.xlu0 %v5147, 112
  %v5149 = vpop.permute.xlu0 %5148
  %v5151 = vadd.f32 %v5123, %v5149
  %v5152 = vadd.f32 %v5124, %v5149
  %v5153 = vld [vmem:[%s5 + $0x1c] sm:$0x1]
  %v5154 = vlaneseq
  %v5155 = vshrl.u32 %v5154, 7
  %v5156 = vsub.s32 0, %v5155
  %v5157 = vrot.slane %v5153, %v5156
  %5159 = vrot.lane.b32.xlu0 %v5157, 24
  %v5160 = vpop.permute.xlu0 %5159
  %v5162 = vmul.f32 %v4751, %v5160
  %v5163 = vmul.f32 %v4752, %v5160
  %v5164 = vmul.f32 %v4753, %v5160
  %5166 = vrot.lane.b32.xlu0 %v5162, 104
  %v5167 = vpop.permute.xlu0 %5166
  %v5169 = vadd.f32 %v5145, %v5167
  %5172 = vrot.lane.b32.xlu0 %v5163, 104
  %v5173 = vpop.permute.xlu0 %5172
  %5174 = vrot.lane.b32.xlu0 %v5164, 104
  %v5175 = vpop.permute.xlu0 %5174
  %v5178 = vadd.f32 %v5151, %v5173
  %v5179 = vadd.f32 %v5152, %v5175
  %v5180 = vld [vmem:[%s5 + $0x21] sm:$0x1]
  %v5181 = vlaneseq
  %v5182 = vshrl.u32 %v5181, 7
  %v5183 = vsub.s32 0, %v5182
  %v5184 = vrot.slane %v5180, %v5183
  %5186 = vrot.lane.b32.xlu0 %v5184, 24
  %v5187 = vpop.permute.xlu0 %5186
  %v5189 = vmul.f32 %v4751, %v5187
  %v5190 = vmul.f32 %v4752, %v5187
  %v5191 = vmul.f32 %v4753, %v5187
  %v5194 = vrot.slane %v5189, 1
  %v5195 = vrot.slane %v5190, 1
  %v5196 = vsel %vm81, %v5194, %v5195
  %5197 = vrot.lane.b32.xlu0 %v5196, 104
  %v5198 = vpop.permute.xlu0 %5197
  %v5200 = vadd.f32 %v5169, %v5198
  %v5202 = vrot.slane %v5191, 1
  %v5203 = vsel %vm81, %v5195, %v5202
  %5204 = vrot.lane.b32.xlu0 %v5203, 104
  %v5205 = vpop.permute.xlu0 %5204
  %5206 = vrot.lane.b32.xlu0 %v5202, 104
  %v5207 = vpop.permute.xlu0 %5206
  %v5210 = vadd.f32 %v5178, %v5205
  %v5211 = vadd.f32 %v5179, %v5207
  %v5212 = vld [vmem:[%s5 + $0x26] sm:$0x1]
  %v5213 = vlaneseq
  %v5214 = vshrl.u32 %v5213, 7
  %v5215 = vsub.s32 0, %v5214
  %v5216 = vrot.slane %v5212, %v5215
  %5218 = vrot.lane.b32.xlu0 %v5216, 24
  %v5219 = vpop.permute.xlu0 %5218
  %v5221 = vmul.f32 %v4751, %v5219
  %v5222 = vmul.f32 %v4752, %v5219
  %v5223 = vmul.f32 %v4753, %v5219
  %v5226 = vrot.slane %v5221, 2
  %v5227 = vrot.slane %v5222, 2
  %v5228 = vsel %vm116, %v5226, %v5227
  %5229 = vrot.lane.b32.xlu0 %v5228, 104
  %v5230 = vpop.permute.xlu0 %5229
  %v5232 = vadd.f32 %v5200, %v5230
  %v5234 = vrot.slane %v5223, 2
  %v5235 = vsel %vm116, %v5227, %v5234
  %5236 = vrot.lane.b32.xlu0 %v5235, 104
  %v5237 = vpop.permute.xlu0 %5236
  %5238 = vrot.lane.b32.xlu0 %v5234, 104
  %v5239 = vpop.permute.xlu0 %5238
  %v5242 = vadd.f32 %v5210, %v5237
  %v5243 = vadd.f32 %v5211, %v5239
  %v5244 = vld [vmem:[%s5 + $0x2b] sm:$0x1]
  %v5245 = vlaneseq
  %v5246 = vshrl.u32 %v5245, 7
  %v5247 = vsub.s32 0, %v5246
  %v5248 = vrot.slane %v5244, %v5247
  %5250 = vrot.lane.b32.xlu0 %v5248, 24
  %v5251 = vpop.permute.xlu0 %5250
  %v5253 = vmul.f32 %v4751, %v5251
  %v5254 = vmul.f32 %v4752, %v5251
  %v5255 = vmul.f32 %v4753, %v5251
  %v5258 = vrot.slane %v5253, 3
  %v5259 = vrot.slane %v5254, 3
  %v5260 = vsel %vm151, %v5258, %v5259
  %5261 = vrot.lane.b32.xlu0 %v5260, 104
  %v5262 = vpop.permute.xlu0 %5261
  %v5264 = vadd.f32 %v5232, %v5262
  %v5266 = vrot.slane %v5255, 3
  %v5267 = vsel %vm151, %v5259, %v5266
  %5268 = vrot.lane.b32.xlu0 %v5267, 104
  %v5269 = vpop.permute.xlu0 %5268
  %5270 = vrot.lane.b32.xlu0 %v5266, 104
  %v5271 = vpop.permute.xlu0 %5270
  %v5274 = vadd.f32 %v5242, %v5269
  %v5275 = vadd.f32 %v5243, %v5271
  %v5276 = vld [vmem:[%s5 + $0x30] sm:$0x1]
  %v5277 = vlaneseq
  %v5278 = vshrl.u32 %v5277, 7
  %v5279 = vsub.s32 0, %v5278
  %v5280 = vrot.slane %v5276, %v5279
  %5282 = vrot.lane.b32.xlu0 %v5280, 24
  %v5283 = vpop.permute.xlu0 %5282
  %v5285 = vmul.f32 %v4751, %v5283
  %v5286 = vmul.f32 %v4752, %v5283
  %v5287 = vmul.f32 %v4753, %v5283
  %v5290 = vrot.slane %v5285, 4
  %v5291 = vrot.slane %v5286, 4
  %v5292 = vsel %vm186, %v5290, %v5291
  %5293 = vrot.lane.b32.xlu0 %v5292, 104
  %v5294 = vpop.permute.xlu0 %5293
  %v5296 = vadd.f32 %v5264, %v5294
  %v5298 = vrot.slane %v5287, 4
  %5299 = vrot.lane.b32.xlu0 %v5298, 104
  %v5300 = vpop.permute.xlu0 %5299
  %v5302 = vadd.f32 %v5274, %v5300
  %v5303 = vadd.f32 %v5275, %v5300
  %v5304 = vld [vmem:[%s5 + $0x1d] sm:$0x1]
  %v5305 = vlaneseq
  %v5306 = vshrl.u32 %v5305, 7
  %v5307 = vsub.s32 0, %v5306
  %v5308 = vrot.slane %v5304, %v5307
  %5310 = vrot.lane.b32.xlu0 %v5308, 32
  %v5311 = vpop.permute.xlu0 %5310
  %v5313 = vmul.f32 %v4751, %v5311
  %v5314 = vmul.f32 %v4752, %v5311
  %v5315 = vmul.f32 %v4753, %v5311
  %5317 = vrot.lane.b32.xlu0 %v5313, 96
  %v5318 = vpop.permute.xlu0 %5317
  %v5320 = vadd.f32 %v5296, %v5318
  %5323 = vrot.lane.b32.xlu0 %v5314, 96
  %v5324 = vpop.permute.xlu0 %5323
  %5325 = vrot.lane.b32.xlu0 %v5315, 96
  %v5326 = vpop.permute.xlu0 %5325
  %v5329 = vadd.f32 %v5302, %v5324
  %v5330 = vadd.f32 %v5303, %v5326
  %v5331 = vld [vmem:[%s5 + $0x22] sm:$0x1]
  %v5332 = vlaneseq
  %v5333 = vshrl.u32 %v5332, 7
  %v5334 = vsub.s32 0, %v5333
  %v5335 = vrot.slane %v5331, %v5334
  %5337 = vrot.lane.b32.xlu0 %v5335, 32
  %v5338 = vpop.permute.xlu0 %5337
  %v5340 = vmul.f32 %v4751, %v5338
  %v5341 = vmul.f32 %v4752, %v5338
  %v5342 = vmul.f32 %v4753, %v5338
  %v5345 = vrot.slane %v5340, 1
  %v5346 = vrot.slane %v5341, 1
  %v5347 = vsel %vm81, %v5345, %v5346
  %5348 = vrot.lane.b32.xlu0 %v5347, 96
  %v5349 = vpop.permute.xlu0 %5348
  %v5351 = vadd.f32 %v5320, %v5349
  %v5353 = vrot.slane %v5342, 1
  %v5354 = vsel %vm81, %v5346, %v5353
  %5355 = vrot.lane.b32.xlu0 %v5354, 96
  %v5356 = vpop.permute.xlu0 %5355
  %5357 = vrot.lane.b32.xlu0 %v5353, 96
  %v5358 = vpop.permute.xlu0 %5357
  %v5361 = vadd.f32 %v5329, %v5356
  %v5362 = vadd.f32 %v5330, %v5358
  %v5363 = vld [vmem:[%s5 + $0x27] sm:$0x1]
  %v5364 = vlaneseq
  %v5365 = vshrl.u32 %v5364, 7
  %v5366 = vsub.s32 0, %v5365
  %v5367 = vrot.slane %v5363, %v5366
  %5369 = vrot.lane.b32.xlu0 %v5367, 32
  %v5370 = vpop.permute.xlu0 %5369
  %v5372 = vmul.f32 %v4751, %v5370
  %v5373 = vmul.f32 %v4752, %v5370
  %v5374 = vmul.f32 %v4753, %v5370
  %v5377 = vrot.slane %v5372, 2
  %v5378 = vrot.slane %v5373, 2
  %v5379 = vsel %vm116, %v5377, %v5378
  %5380 = vrot.lane.b32.xlu0 %v5379, 96
  %v5381 = vpop.permute.xlu0 %5380
  %v5383 = vadd.f32 %v5351, %v5381
  %v5385 = vrot.slane %v5374, 2
  %v5386 = vsel %vm116, %v5378, %v5385
  %5387 = vrot.lane.b32.xlu0 %v5386, 96
  %v5388 = vpop.permute.xlu0 %5387
  %5389 = vrot.lane.b32.xlu0 %v5385, 96
  %v5390 = vpop.permute.xlu0 %5389
  %v5393 = vadd.f32 %v5361, %v5388
  %v5394 = vadd.f32 %v5362, %v5390
  %v5395 = vld [vmem:[%s5 + $0x2c] sm:$0x1]
  %v5396 = vlaneseq
  %v5397 = vshrl.u32 %v5396, 7
  %v5398 = vsub.s32 0, %v5397
  %v5399 = vrot.slane %v5395, %v5398
  %5401 = vrot.lane.b32.xlu0 %v5399, 32
  %v5402 = vpop.permute.xlu0 %5401
  %v5404 = vmul.f32 %v4751, %v5402
  %v5405 = vmul.f32 %v4752, %v5402
  %v5406 = vmul.f32 %v4753, %v5402
  %v5409 = vrot.slane %v5404, 3
  %v5410 = vrot.slane %v5405, 3
  %v5411 = vsel %vm151, %v5409, %v5410
  %5412 = vrot.lane.b32.xlu0 %v5411, 96
  %v5413 = vpop.permute.xlu0 %5412
  %v5415 = vadd.f32 %v5383, %v5413
  %v5417 = vrot.slane %v5406, 3
  %v5418 = vsel %vm151, %v5410, %v5417
  %5419 = vrot.lane.b32.xlu0 %v5418, 96
  %v5420 = vpop.permute.xlu0 %5419
  %5421 = vrot.lane.b32.xlu0 %v5417, 96
  %v5422 = vpop.permute.xlu0 %5421
  %v5425 = vadd.f32 %v5393, %v5420
  %v5426 = vadd.f32 %v5394, %v5422
  %v5427 = vld [vmem:[%s5 + $0x31] sm:$0x1]
  %v5428 = vlaneseq
  %v5429 = vshrl.u32 %v5428, 7
  %v5430 = vsub.s32 0, %v5429
  %v5431 = vrot.slane %v5427, %v5430
  %5433 = vrot.lane.b32.xlu0 %v5431, 32
  %v5434 = vpop.permute.xlu0 %5433
  %v5436 = vmul.f32 %v4751, %v5434
  %v5437 = vmul.f32 %v4752, %v5434
  %v5438 = vmul.f32 %v4753, %v5434
  %v5441 = vrot.slane %v5436, 4
  %v5442 = vrot.slane %v5437, 4
  %v5443 = vsel %vm186, %v5441, %v5442
  %5444 = vrot.lane.b32.xlu0 %v5443, 96
  %v5445 = vpop.permute.xlu0 %5444
  %v5447 = vadd.f32 %v5415, %v5445
  %v5449 = vrot.slane %v5438, 4
  %5450 = vrot.lane.b32.xlu0 %v5449, 96
  %v5451 = vpop.permute.xlu0 %5450
  %v5453 = vadd.f32 %v5425, %v5451
  %v5454 = vadd.f32 %v5426, %v5451
  %v5455 = vmax.f32 %v5447, 0.0
  %v5456 = vmax.f32 %v5453, 0.0
  %v5457 = vmax.f32 %v5454, 0.0
  %v5460 = vrot.slane %v5456, 4
  %v5461 = vrot.slane %v5457, 4
  %v5462 = vsel %vm186, %v5460, %v5461
  %v5463 = vld [vmem:[%s6 + $0x8] sm:$0xff]
  %v5464 = vld [vmem:[%s6 + $0x20] sm:$0xff]
  %v5465 = vld [vmem:[%s6 + $0x38] sm:$0xff]
  %v5466 = vld [vmem:[%s6 + $0x50] sm:$0xff]
  %v5467 = vld [vmem:[%s6 + $0x68] sm:$0xff]
  %v5468 = vld [vmem:[%s6 + $0x80] sm:$0xff]
  %v5469 = vld [vmem:[%s6 + $0x98] sm:$0xff]
  %v5470 = vld [vmem:[%s6 + $0xb0] sm:$0xff]
  %v5471 = vlaneseq
  %v5472 = vshrl.u32 %v5471, 7
  %v5473 = vsub.s32 0, %v5472
  %v5474 = vrot.slane %v3925, %v5473
  %v5476 = vsel %vm4655, %v5455, 0
  %v5478 = vsel %vm4655, %v5462, 0
  %5480 = vmatprep.subr.mxu0 0.0
  %5481 = vmatpush1.msra.mxu0 %v5463
  %5482 = vmatprep.subr.mxu0 0.0
  %5483 = vmatpush1.msra.mxu0 %v5464
  %5484 = vmatprep.subr.mxu0 0.0
  %5485 = vmatpush1.msra.mxu0 %v5465
  %5486 = vmatprep.subr.mxu0 0.0
  %5487 = vmatpush1.msra.mxu0 %v5466
  %5488 = vmatprep.subr.mxu0 0.0
  %5489 = vmatpush1.msra.mxu0 %v5467
  %5490 = vmatprep.subr.mxu0 0.0
  %5491 = vmatpush1.msra.mxu0 %v5468
  %5492 = vmatprep.subr.mxu0 0.0
  %5493 = vmatpush1.msra.mxu0 %v5469
  %5494 = vmatprep.subr.mxu0 0.0
  %5495 = vmatpush1.msra.mxu0 %v5470
  %5496 = vmatprep.subr.mxu0 0.0
  %5497 = vmatpush1.msra.mxu0 0.0
  %5498 = vmatprep.subr.mxu0 0.0
  %5499 = vmatpush1.msra.mxu0 0.0
  %5500 = vmatprep.subr.mxu0 0.0
  %5501 = vmatpush1.msra.mxu0 0.0
  %5502 = vmatprep.subr.mxu0 0.0
  %5503 = vmatpush1.msra.mxu0 0.0
  %5504 = vmatprep.subr.mxu0 0.0
  %5505 = vmatpush1.msra.mxu0 0.0
  %5506 = vmatprep.subr.mxu0 0.0
  %5507 = vmatpush1.msra.mxu0 0.0
  %5508 = vmatprep.subr.mxu0 0.0
  %5509 = vmatpush1.msra.mxu0 0.0
  %5510 = vmatprep.subr.mxu0 0.0
  %5511 = vmatpush1.msra.mxu0 0.0
  %5512 = vmatprep.subr.mxu0 0.0
  %5513 = vmatpush1.msra.mxu0 0.0
  %5514 = vmatprep.subr.mxu0 0.0
  %5515 = vmatpush1.msra.mxu0 0.0
  %5516 = vmatprep.subr.mxu0 0.0
  %5517 = vmatpush1.msra.mxu0 0.0
  %5518 = vmatprep.subr.mxu0 0.0
  %5519 = vmatpush1.msra.mxu0 0.0
  %5520 = vmatprep.subr.mxu0 0.0
  %5521 = vmatpush1.msra.mxu0 0.0
  %5522 = vmatprep.subr.mxu0 0.0
  %5523 = vmatpush1.msra.mxu0 0.0
  %5524 = vmatprep.subr.mxu0 0.0
  %5525 = vmatpush1.msra.mxu0 0.0
  %5526 = vmatprep.subr.mxu0 0.0
  %5527 = vmatpush1.msra.mxu0 0.0
  %5528 = vmatprep.subr.mxu0 0.0
  %5529 = vmatpush1.msra.mxu0 0.0
  %5530 = vmatprep.subr.mxu0 0.0
  %5531 = vmatpush1.msra.mxu0 0.0
  %5532 = vmatprep.subr.mxu0 0.0
  %5533 = vmatpush1.msra.mxu0 0.0
  %5534 = vmatprep.subr.mxu0 0.0
  %5535 = vmatpush1.msra.mxu0 0.0
  %5536 = vmatprep.subr.mxu0 0.0
  %5537 = vmatpush1.msra.mxu0 0.0
  %5538 = vmatprep.subr.mxu0 0.0
  %5539 = vmatpush1.msra.mxu0 0.0
  %5540 = vmatprep.subr.mxu0 0.0
  %5541 = vmatpush1.msra.mxu0 0.0
  %5542 = vmatprep.subr.mxu0 0.0
  %5543 = vmatpush1.msra.mxu0 0.0
  %5544 = vmatprep.mubr.f32.mxu0 0.0
  %5545 = vmatmul.mubr.f32.gmra.mrb[0].mxu0 %v5476
  %v5546 = vpop.f32.mrb[0].mxu0
  %v5547 = vadd.f32 %v5474, %v5546
  %v5548 = vpop.f32.mrb[0].mxu0
  %5549 = vmatprep.mubr.f32.mxu0 0.0
  %5550 = vmatmul.mubr.f32.gmra.mrb[0].mxu0 %v5478
  %v5551 = vpop.f32.mrb[0].mxu0
  %v5552 = vadd.f32 %v5474, %v5551
  %v5553 = vpop.f32.mrb[0].mxu0
  %5554 = vdwg.mxu0
  %v5555 = vld [vmem:[%s6 + $0x10] sm:$0xff]
  %v5556 = vld [vmem:[%s6 + $0x28] sm:$0xff]
  %v5557 = vld [vmem:[%s6 + $0x40] sm:$0xff]
  %v5558 = vld [vmem:[%s6 + $0x58] sm:$0xff]
  %v5559 = vld [vmem:[%s6 + $0x70] sm:$0xff]
  %v5560 = vld [vmem:[%s6 + $0x88] sm:$0xff]
  %v5561 = vld [vmem:[%s6 + $0xa0] sm:$0xff]
  %v5562 = vld [vmem:[%s6 + $0xb8] sm:$0xff]
  %v5563 = vlaneseq
  %v5564 = vshrl.u32 %v5563, 7
  %v5565 = vsub.s32 0, %v5564
  %v5566 = vrot.slane %v3926, %v5565
  %v5568 = vsel %vm4655, %v5547, 0
  %v5571 = vsel %vm4655, %v5552, 0
  %5573 = vmatprep.subr.mxu0 0.0
  %5574 = vmatpush1.msra.mxu0 %v5555
  %5575 = vmatprep.subr.mxu0 0.0
  %5576 = vmatpush1.msra.mxu0 %v5556
  %5577 = vmatprep.subr.mxu0 0.0
  %5578 = vmatpush1.msra.mxu0 %v5557
  %5579 = vmatprep.subr.mxu0 0.0
  %5580 = vmatpush1.msra.mxu0 %v5558
  %5581 = vmatprep.subr.mxu0 0.0
  %5582 = vmatpush1.msra.mxu0 %v5559
  %5583 = vmatprep.subr.mxu0 0.0
  %5584 = vmatpush1.msra.mxu0 %v5560
  %5585 = vmatprep.subr.mxu0 0.0
  %5586 = vmatpush1.msra.mxu0 %v5561
  %5587 = vmatprep.subr.mxu0 0.0
  %5588 = vmatpush1.msra.mxu0 %v5562
  %5589 = vmatprep.subr.mxu0 0.0
  %5590 = vmatpush1.msra.mxu0 0.0
  %5591 = vmatprep.subr.mxu0 0.0
  %5592 = vmatpush1.msra.mxu0 0.0
  %5593 = vmatprep.subr.mxu0 0.0
  %5594 = vmatpush1.msra.mxu0 0.0
  %5595 = vmatprep.subr.mxu0 0.0
  %5596 = vmatpush1.msra.mxu0 0.0
  %5597 = vmatprep.subr.mxu0 0.0
  %5598 = vmatpush1.msra.mxu0 0.0
  %5599 = vmatprep.subr.mxu0 0.0
  %5600 = vmatpush1.msra.mxu0 0.0
  %5601 = vmatprep.subr.mxu0 0.0
  %5602 = vmatpush1.msra.mxu0 0.0
  %5603 = vmatprep.subr.mxu0 0.0
  %5604 = vmatpush1.msra.mxu0 0.0
  %5605 = vmatprep.subr.mxu0 0.0
  %5606 = vmatpush1.msra.mxu0 0.0
  %5607 = vmatprep.subr.mxu0 0.0
  %5608 = vmatpush1.msra.mxu0 0.0
  %5609 = vmatprep.subr.mxu0 0.0
  %5610 = vmatpush1.msra.mxu0 0.0
  %5611 = vmatprep.subr.mxu0 0.0
  %5612 = vmatpush1.msra.mxu0 0.0
  %5613 = vmatprep.subr.mxu0 0.0
  %5614 = vmatpush1.msra.mxu0 0.0
  %5615 = vmatprep.subr.mxu0 0.0
  %5616 = vmatpush1.msra.mxu0 0.0
  %5617 = vmatprep.subr.mxu0 0.0
  %5618 = vmatpush1.msra.mxu0 0.0
  %5619 = vmatprep.subr.mxu0 0.0
  %5620 = vmatpush1.msra.mxu0 0.0
  %5621 = vmatprep.subr.mxu0 0.0
  %5622 = vmatpush1.msra.mxu0 0.0
  %5623 = vmatprep.subr.mxu0 0.0
  %5624 = vmatpush1.msra.mxu0 0.0
  %5625 = vmatprep.subr.mxu0 0.0
  %5626 = vmatpush1.msra.mxu0 0.0
  %5627 = vmatprep.subr.mxu0 0.0
  %5628 = vmatpush1.msra.mxu0 0.0
  %5629 = vmatprep.subr.mxu0 0.0
  %5630 = vmatpush1.msra.mxu0 0.0
  %5631 = vmatprep.subr.mxu0 0.0
  %5632 = vmatpush1.msra.mxu0 0.0
  %5633 = vmatprep.subr.mxu0 0.0
  %5634 = vmatpush1.msra.mxu0 0.0
  %5635 = vmatprep.subr.mxu0 0.0
  %5636 = vmatpush1.msra.mxu0 0.0
  %5637 = vmatprep.mubr.f32.mxu0 0.0
  %5638 = vmatmul.mubr.f32.gmra.mrb[0].mxu0 %v5568
  %v5639 = vpop.f32.mrb[0].mxu0
  %v5640 = vadd.f32 %v5566, %v5639
  %v5641 = vpop.f32.mrb[0].mxu0
  %5642 = vmatprep.mubr.f32.mxu0 0.0
  %5643 = vmatmul.mubr.f32.gmra.mrb[0].mxu0 %v5571
  %v5644 = vpop.f32.mrb[0].mxu0
  %v5645 = vadd.f32 %v5566, %v5644
  %v5646 = vpop.f32.mrb[0].mxu0
  %5647 = vdwg.mxu0
  %5648 = vst [vmem:[%s9] sm:$0xff] %v5640
  %5649 = vst [vmem:[%s9 + $0x8] sm:$0xff] %v5645
  // Predicated region
  $region34: #{_fused_forward.1} parent=0 // pred_check
    _
  $region35: #{_fused_forward.1} parent=0 // pred_check_branch
    %5651 = sbr.rel (0) target = $region37
  $region36: #{_fused_forward.1} parent=0 // pred_region
    _
  $region37: #{_fused_forward.1} parent=0 // pred_fallthru
    _
  // Predicated region
  $region38: #{_fused_forward.1} parent=0 // pred_check
    _
  $region39: #{_fused_forward.1} parent=0 // pred_check_branch
    %5653 = sbr.rel (0) target = $region41
  $region40: #{_fused_forward.1} parent=0 // pred_region
    _
  $region41: #{_fused_forward.1} parent=0 // pred_fallthru
    _
  // Predicated region
  $region42: #{_fused_forward.1} parent=0 // pred_check
    _
  $region43: #{_fused_forward.1} parent=0 // pred_check_branch
    %5655 = sbr.rel (0) target = $region45
  $region44: #{_fused_forward.1} parent=0 // pred_region
    _
  $region45: #{_fused_forward.1} parent=0 // pred_fallthru
    _
  // Predicated region
  $region46: #{_fused_forward.1} parent=0 // pred_check
    _
  $region47: #{_fused_forward.1} parent=0 // pred_check_branch
    %5657 = sbr.rel (0) target = $region49
  $region48: #{_fused_forward.1} parent=0 // pred_region
    _
  $region49: #{_fused_forward.1} parent=0 // pred_fallthru
    _

</llo_original>
